<compile_context>
chip_gen: v7x
topology: tpu7x:2x2x1
jax: 0.10.0
libtpu: 0.0.40
codegen_flags: <defaults>
</compile_context>

<pallas_src>
import functools
import math

import jax
import jax.numpy as jnp
from jax.experimental import pallas as pl
from jax.experimental.pallas import tpu as pltpu


# ----------------------------- kernel helpers -----------------------------


def _layernorm(x, gamma, beta, eps=1e-5):
    # x: [T, D] f32; gamma/beta: [1, D] f32 (broadcast over rows)
    mu = jnp.mean(x, axis=-1, keepdims=True)
    xc = x - mu
    var = jnp.mean(xc * xc, axis=-1, keepdims=True)
    return xc * jax.lax.rsqrt(var + eps) * gamma + beta


def _heads(x, num_heads):
    # [T, H*dh] f32 -> [H, T, dh], lane-layout-aware transpose.
    T, D = x.shape
    dh = D // num_heads
    return pltpu.einshape("thd->htd", x.reshape(T, num_heads, dh))


def _attention(q, k, v, wo, num_heads, causal):
    """Scaled-dot-product attention over all heads at once.

    q: [Tq, D] f32, k/v: [Tk, D] f32, wo: [D, D] bf16.
    Returns o @ wo : [Tq, D] f32 (output bias is folded into the caller's residual).
    """
    Tq, D = q.shape
    Tk = k.shape[0]
    dh = D // num_heads
    scale = 1.0 / math.sqrt(dh)

    qh = _heads(q, num_heads).astype(jnp.bfloat16)   # [H, Tq, dh]
    kh = _heads(k, num_heads).astype(jnp.bfloat16)   # [H, Tk, dh]
    vh = _heads(v, num_heads).astype(jnp.bfloat16)   # [H, Tk, dh]

    # One batched score matmul for all heads, f32 accumulation.
    s = jnp.einsum("hqd,hkd->hqk", qh, kh,
                   preferred_element_type=jnp.float32) * scale

    if causal:
        row = jax.lax.broadcasted_iota(jnp.int32, (Tq, Tk), 0)
        col = jax.lax.broadcasted_iota(jnp.int32, (Tq, Tk), 1)
        keep = (col <= row)[None, :, :]              # built once for all heads
        s = jnp.where(keep, s, -1e9)

    # Softmax in f32; denominator via approximate EUP reciprocal.
    m = jnp.max(s, axis=-1, keepdims=True)
    p = jnp.exp(s - m)
    p = p * pl.reciprocal(jnp.sum(p, axis=-1, keepdims=True), approx=True)

    # One batched P@V matmul for all heads, back to [Tq, D], then output proj.
    oh = jnp.einsum("hqk,hkd->hqd", p.astype(jnp.bfloat16), vh,
                    preferred_element_type=jnp.float32)
    o = pltpu.einshape("htd->thd", oh).reshape(Tq, D)
    return jnp.dot(o.astype(jnp.bfloat16), wo, preferred_element_type=jnp.float32)


def decoder_cell_kernel(num_heads, *refs):
    (s0_ref, h_ref,
     wqkv1, bqkv1, wo1, bo1, g1, be1,
     wq2, bq2, wkv2, bkv2, wo2, bo2, g2, be2,
     wf, bff, g3, be3,
     out_ref) = refs

    D = s0_ref.shape[-1]
    x = s0_ref[...].astype(jnp.float32)      # [T, D]
    henc = h_ref[...].astype(jnp.float32)    # [T, D]

    # --- sublayer 1: masked multi-head self-attention + AddNorm ---
    # Fused QKV: one [T, D] @ [D, 3D] MXU push + one fused bias add.
    qkv = jnp.dot(x.astype(jnp.bfloat16), wqkv1[...],
                  preferred_element_type=jnp.float32) + bqkv1[...]
    a1 = _attention(qkv[:, :D], qkv[:, D:2 * D], qkv[:, 2 * D:],
                    wo1[...], num_heads, causal=True)
    s1 = _layernorm(x + a1 + bo1[...], g1[...], be1[...])

    # --- sublayer 2: cross multi-head attention over encoder output + AddNorm ---
    q2 = jnp.dot(s1.astype(jnp.bfloat16), wq2[...],
                 preferred_element_type=jnp.float32) + bq2[...]
    kv2 = jnp.dot(henc.astype(jnp.bfloat16), wkv2[...],
                  preferred_element_type=jnp.float32) + bkv2[...]
    a2 = _attention(q2, kv2[:, :D], kv2[:, D:],
                    wo2[...], num_heads, causal=False)
    s2 = _layernorm(s1 + a2 + bo2[...], g2[...], be2[...])

    # --- sublayer 3: FFN (single Linear) + AddNorm (bias folded into residual) ---
    f = jnp.dot(s2.astype(jnp.bfloat16), wf[...],
                preferred_element_type=jnp.float32)
    s3 = _layernorm(s2 + f + bff[...], g3[...], be3[...])

    out_ref[...] = s3.astype(out_ref.dtype)


# ------------------------------- wrapper -----------------------------------


def decoder_cell(S0, H, params, num_heads):
    (wq1, bq1, wk1, bk1, wv1, bv1, wo1, bo1, g1, be1,
     wq2, bq2, wk2, bk2, wv2, bv2, wo2, bo2, g2, be2,
     wf, bff, g3, be3) = params

    B, T, D = S0.shape
    bf16 = jnp.bfloat16

    # Fuse projection weights/biases in the wrapper; matmul weights in bf16.
    wqkv1 = jnp.concatenate([wq1, wk1, wv1], axis=1).astype(bf16)   # [D, 3D]
    bqkv1 = jnp.concatenate([bq1, bk1, bv1], axis=1)                # [1, 3D]
    wkv2 = jnp.concatenate([wk2, wv2], axis=1).astype(bf16)         # [D, 2D]
    bkv2 = jnp.concatenate([bk2, bv2], axis=1)                      # [1, 2D]

    args = [S0, H,
            wqkv1, bqkv1, wo1.astype(bf16), bo1, g1, be1,
            wq2.astype(bf16), bq2, wkv2, bkv2, wo2.astype(bf16), bo2, g2, be2,
            wf.astype(bf16), bff, g3, be3]

    def act_spec():
        # one batch element per grid step (batch dim squeezed away)
        return pl.BlockSpec((None, T, D), lambda b: (b, 0, 0))

    def full_spec(a):
        shp = a.shape
        return pl.BlockSpec(shp, lambda b, _s=shp: (0,) * len(_s))

    in_specs = [act_spec(), act_spec()] + [full_spec(a) for a in args[2:]]

    kernel = functools.partial(decoder_cell_kernel, num_heads)
    return pl.pallas_call(
        kernel,
        out_shape=jax.ShapeDtypeStruct((B, T, D), S0.dtype),
        grid=(B,),
        in_specs=in_specs,
        out_specs=pl.BlockSpec((None, T, D), lambda b: (b, 0, 0)),
        compiler_params=pltpu.CompilerParams(
            dimension_semantics=("parallel",)),
    )(*args)


# ------------------------- pure-JAX reference (f32) -------------------------


def _ref_layernorm(x, g, b, eps=1e-5):
    mu = jnp.mean(x, axis=-1, keepdims=True)
    var = jnp.mean((x - mu) ** 2, axis=-1, keepdims=True)
    return (x - mu) / jnp.sqrt(var + eps) * g + b


def _ref_mha(xq, xkv, wq, bq, wk, bk, wv, bv, wo, bo, num_heads, causal):
    B, Tq, D = xq.shape
    Tk = xkv.shape[1]
    dh = D // num_heads
    q = (xq @ wq + bq).reshape(B, Tq, num_heads, dh).transpose(0, 2, 1, 3)
    k = (xkv @ wk + bk).reshape(B, Tk, num_heads, dh).transpose(0, 2, 1, 3)
    v = (xkv @ wv + bv).reshape(B, Tk, num_heads, dh).transpose(0, 2, 1, 3)
    s = jnp.einsum("bhqd,bhkd->bhqk", q, k) / math.sqrt(dh)
    if causal:
        keep = jnp.tril(jnp.ones((Tq, Tk), bool))
        s = jnp.where(keep[None, None], s, -1e9)
    p = jax.nn.softmax(s, axis=-1)
    o = jnp.einsum("bhqk,bhkd->bhqd", p, v).transpose(0, 2, 1, 3).reshape(B, Tq, D)
    return o @ wo + bo


def decoder_cell_ref(S0, H, params, num_heads):
    (wq1, bq1, wk1, bk1, wv1, bv1, wo1, bo1, g1, be1,
     wq2, bq2, wk2, bk2, wv2, bv2, wo2, bo2, g2, be2,
     wf, bff, g3, be3) = params
    a1 = _ref_mha(S0, S0, wq1, bq1, wk1, bk1, wv1, bv1, wo1, bo1, num_heads, True)
    s1 = _ref_layernorm(S0 + a1, g1, be1)
    a2 = _ref_mha(s1, H, wq2, bq2, wk2, bk2, wv2, bv2, wo2, bo2, num_heads, False)
    s2 = _ref_layernorm(s1 + a2, g2, be2)
    f = s2 @ wf + bff
    return _ref_layernorm(s2 + f, g3, be3)


# --------------------------------- main -------------------------------------


if __name__ == "__main__":
    # key_size = value_size = num_hiddens = norm_shape = D = 32, num_heads = 4
    B, T, D = 2, 8, 32
    num_heads = 4

    key = jax.random.PRNGKey(0)
    keys = jax.random.split(key, 16)

    def w(k):
        return jax.random.normal(k, (D, D), jnp.float32) * 0.02

    def zb():
        return jnp.zeros((1, D), jnp.float32)

    def ones_g():
        return jnp.ones((1, D), jnp.float32)

    params = [
        # attention1 (masked self-attention): wq,bq,wk,bk,wv,bv,wo,bo
        w(keys[0]), zb(), w(keys[1]), zb(), w(keys[2]), zb(), w(keys[3]), zb(),
        ones_g(), zb(),          # addnorm1 (gamma, beta)
        # attention2 (cross-attention)
        w(keys[4]), zb(), w(keys[5]), zb(), w(keys[6]), zb(), w(keys[7]), zb(),
        ones_g(), zb(),          # addnorm2
        # ffn: Linear(value_size, num_hiddens) with value_size == num_hiddens == D
        w(keys[8]), zb(),
        ones_g(), zb(),          # addnorm3
    ]

    S0 = jax.random.normal(keys[9], (B, T, D), jnp.float32)
    H = jax.random.normal(keys[10], (B, T, D), jnp.float32)

    out = decoder_cell(S0, H, params, num_heads)
    out = jax.block_until_ready(out)

    ref = decoder_cell_ref(S0, H, params, num_heads)
    assert out.shape == (B, T, D)
    # bf16 MXU operands + approx reciprocal => looser tolerance than the f32 ref.
    assert jnp.allclose(out, ref, atol=2e-2, rtol=2e-2), "mismatch vs JAX reference"

    print("KERNEL_OK")
</pallas_src>

<mosaic_0001>
module attributes {stable_mosaic.version = 11 : i64} {
  func.func @decoder_cell_kernel(%arg0: i32, %arg1: memref<1x8x32xf32, #tpu.memory_space<vmem>>, %arg2: memref<1x8x32xf32, #tpu.memory_space<vmem>>, %arg3: memref<32x96xbf16, #tpu.memory_space<vmem>>, %arg4: memref<1x96xf32, #tpu.memory_space<vmem>>, %arg5: memref<32x32xbf16, #tpu.memory_space<vmem>>, %arg6: memref<1x32xf32, #tpu.memory_space<vmem>>, %arg7: memref<1x32xf32, #tpu.memory_space<vmem>>, %arg8: memref<1x32xf32, #tpu.memory_space<vmem>>, %arg9: memref<32x32xbf16, #tpu.memory_space<vmem>>, %arg10: memref<1x32xf32, #tpu.memory_space<vmem>>, %arg11: memref<32x64xbf16, #tpu.memory_space<vmem>>, %arg12: memref<1x64xf32, #tpu.memory_space<vmem>>, %arg13: memref<32x32xbf16, #tpu.memory_space<vmem>>, %arg14: memref<1x32xf32, #tpu.memory_space<vmem>>, %arg15: memref<1x32xf32, #tpu.memory_space<vmem>>, %arg16: memref<1x32xf32, #tpu.memory_space<vmem>>, %arg17: memref<32x32xbf16, #tpu.memory_space<vmem>>, %arg18: memref<1x32xf32, #tpu.memory_space<vmem>>, %arg19: memref<1x32xf32, #tpu.memory_space<vmem>>, %arg20: memref<1x32xf32, #tpu.memory_space<vmem>>, %arg21: memref<1x8x32xf32, #tpu.memory_space<vmem>>) attributes {dimension_semantics = [#tpu.dimension_semantics<parallel>], iteration_bounds = array<i64: 2>, scalar_prefetch = 0 : i64, scratch_operands = 0 : i64, tpu.core_type = #tpu.core_type<tc>, window_params = [{transform_indices = @transform_0, window_bounds = array<i64: 1, 8, 32>}, {transform_indices = @transform_1, window_bounds = array<i64: 1, 8, 32>}, {pipeline_mode = #tpu.pipeline_mode<synchronous>, transform_indices = @transform_2, window_bounds = array<i64: 32, 96>}, {pipeline_mode = #tpu.pipeline_mode<synchronous>, transform_indices = @transform_3, window_bounds = array<i64: 1, 96>}, {pipeline_mode = #tpu.pipeline_mode<synchronous>, transform_indices = @transform_4, window_bounds = array<i64: 32, 32>}, {pipeline_mode = #tpu.pipeline_mode<synchronous>, transform_indices = @transform_5, window_bounds = array<i64: 1, 32>}, {pipeline_mode = #tpu.pipeline_mode<synchronous>, transform_indices = @transform_6, window_bounds = array<i64: 1, 32>}, {pipeline_mode = #tpu.pipeline_mode<synchronous>, transform_indices = @transform_7, window_bounds = array<i64: 1, 32>}, {pipeline_mode = #tpu.pipeline_mode<synchronous>, transform_indices = @transform_8, window_bounds = array<i64: 32, 32>}, {pipeline_mode = #tpu.pipeline_mode<synchronous>, transform_indices = @transform_9, window_bounds = array<i64: 1, 32>}, {pipeline_mode = #tpu.pipeline_mode<synchronous>, transform_indices = @transform_10, window_bounds = array<i64: 32, 64>}, {pipeline_mode = #tpu.pipeline_mode<synchronous>, transform_indices = @transform_11, window_bounds = array<i64: 1, 64>}, {pipeline_mode = #tpu.pipeline_mode<synchronous>, transform_indices = @transform_12, window_bounds = array<i64: 32, 32>}, {pipeline_mode = #tpu.pipeline_mode<synchronous>, transform_indices = @transform_13, window_bounds = array<i64: 1, 32>}, {pipeline_mode = #tpu.pipeline_mode<synchronous>, transform_indices = @transform_14, window_bounds = array<i64: 1, 32>}, {pipeline_mode = #tpu.pipeline_mode<synchronous>, transform_indices = @transform_15, window_bounds = array<i64: 1, 32>}, {pipeline_mode = #tpu.pipeline_mode<synchronous>, transform_indices = @transform_16, window_bounds = array<i64: 32, 32>}, {pipeline_mode = #tpu.pipeline_mode<synchronous>, transform_indices = @transform_17, window_bounds = array<i64: 1, 32>}, {pipeline_mode = #tpu.pipeline_mode<synchronous>, transform_indices = @transform_18, window_bounds = array<i64: 1, 32>}, {pipeline_mode = #tpu.pipeline_mode<synchronous>, transform_indices = @transform_19, window_bounds = array<i64: 1, 32>}, {transform_indices = @transform_20, window_bounds = array<i64: 1, 8, 32>}]} {
    %c0 = arith.constant 0 : index
    %c0_0 = arith.constant 0 : index
    %c0_1 = arith.constant 0 : index
    %0 = vector.load %arg1[%c0, %c0_0, %c0_1] : memref<1x8x32xf32, #tpu.memory_space<vmem>>, vector<1x8x32xf32>
    %1 = vector.shape_cast %0 : vector<1x8x32xf32> to vector<8x32xf32>
    %c0_2 = arith.constant 0 : index
    %c0_3 = arith.constant 0 : index
    %c0_4 = arith.constant 0 : index
    %2 = vector.load %arg2[%c0_2, %c0_3, %c0_4] : memref<1x8x32xf32, #tpu.memory_space<vmem>>, vector<1x8x32xf32>
    %3 = vector.shape_cast %2 : vector<1x8x32xf32> to vector<8x32xf32>
    %4 = arith.truncf %1 : vector<8x32xf32> to vector<8x32xbf16>
    %c0_5 = arith.constant 0 : index
    %c0_6 = arith.constant 0 : index
    %5 = vector.load %arg3[%c0_5, %c0_6] : memref<32x96xbf16, #tpu.memory_space<vmem>>, vector<32x96xbf16>
    %cst = arith.constant dense<0.000000e+00> : vector<8x96xf32>
    %6 = tpu.matmul %4, %5, %cst {dimension_numbers = #tpu.dot_dimension_numbers<[1], [0], [0], [1], [0, 0, 1, 1], [], []>} : vector<8x32xbf16>, vector<32x96xbf16>, vector<8x96xf32> -> vector<8x96xf32>
    %c0_7 = arith.constant 0 : index
    %c0_8 = arith.constant 0 : index
    %7 = vector.load %arg4[%c0_7, %c0_8] : memref<1x96xf32, #tpu.memory_space<vmem>>, vector<1x96xf32>
    %8 = vector.broadcast %7 : vector<1x96xf32> to vector<8x96xf32>
    %9 = arith.addf %6, %8 : vector<8x96xf32>
    %10 = vector.extract_strided_slice %9 {offsets = [0, 0], sizes = [8, 32], strides = [1, 1]} : vector<8x96xf32> to vector<8x32xf32>
    %11 = vector.extract_strided_slice %9 {offsets = [0, 32], sizes = [8, 32], strides = [1, 1]} : vector<8x96xf32> to vector<8x32xf32>
    %12 = vector.extract_strided_slice %9 {offsets = [0, 64], sizes = [8, 32], strides = [1, 1]} : vector<8x96xf32> to vector<8x32xf32>
    %c0_9 = arith.constant 0 : index
    %c0_10 = arith.constant 0 : index
    %13 = vector.load %arg5[%c0_9, %c0_10] : memref<32x32xbf16, #tpu.memory_space<vmem>>, vector<32x32xbf16>
    %14 = vector.shape_cast %10 : vector<8x32xf32> to vector<8x4x8xf32>
    %15 = tpu.transpose %14, [1, 0, 2] : vector<8x4x8xf32> -> vector<4x8x8xf32>
    %16 = arith.truncf %15 : vector<4x8x8xf32> to vector<4x8x8xbf16>
    %17 = vector.shape_cast %11 : vector<8x32xf32> to vector<8x4x8xf32>
    %18 = tpu.transpose %17, [1, 0, 2] : vector<8x4x8xf32> -> vector<4x8x8xf32>
    %19 = arith.truncf %18 : vector<4x8x8xf32> to vector<4x8x8xbf16>
    %20 = vector.shape_cast %12 : vector<8x32xf32> to vector<8x4x8xf32>
    %21 = tpu.transpose %20, [1, 0, 2] : vector<8x4x8xf32> -> vector<4x8x8xf32>
    %22 = arith.truncf %21 : vector<4x8x8xf32> to vector<4x8x8xbf16>
    "tpu.trace_start"() <{level = 10 : i32, message = "hqd,hkd->hqk"}> : () -> ()
    %cst_11 = arith.constant dense<0.000000e+00> : vector<4x8x8xf32>
    %23 = tpu.matmul %16, %19, %cst_11 {dimension_numbers = #tpu.dot_dimension_numbers<[2], [2], [1], [1], [0, 0, 0, 1, 1, 1], [0], [0]>} : vector<4x8x8xbf16>, vector<4x8x8xbf16>, vector<4x8x8xf32> -> vector<4x8x8xf32>
    "tpu.trace_stop"() : () -> ()
    %cst_12 = arith.constant 0.353553385 : f32
    %24 = vector.broadcast %cst_12 : f32 to vector<4x8x8xf32>
    %25 = arith.mulf %23, %24 : vector<4x8x8xf32>
    %26 = tpu.iota {dimensions = array<i32: 0>} : vector<8x8xi32>
    %27 = tpu.iota {dimensions = array<i32: 1>} : vector<8x8xi32>
    %28 = arith.cmpi sle, %27, %26 : vector<8x8xi32>
    %29 = vector.shape_cast %28 : vector<8x8xi1> to vector<1x8x8xi1>
    %cst_13 = arith.constant -1.000000e+09 : f32
    %30 = vector.shape_cast %29 : vector<1x8x8xi1> to vector<1x8x8xi1>
    %31 = vector.broadcast %30 : vector<1x8x8xi1> to vector<4x8x8xi1>
    %32 = vector.broadcast %cst_13 : f32 to vector<4x8x8xf32>
    %33 = arith.select %31, %25, %32 : vector<4x8x8xi1>, vector<4x8x8xf32>
    %cst_14 = arith.constant dense<0xFF800000> : vector<4x8xf32>
    %34 = vector.multi_reduction <maximumf>, %33, %cst_14 [2] : vector<4x8x8xf32> to vector<4x8xf32>
    %35 = vector.shape_cast %34 : vector<4x8xf32> to vector<4x8x1xf32>
    %36 = vector.broadcast %35 : vector<4x8x1xf32> to vector<4x8x8xf32>
    %37 = arith.subf %33, %36 : vector<4x8x8xf32>
    %38 = math.exp %37 : vector<4x8x8xf32>
    %cst_15 = arith.constant dense<0.000000e+00> : vector<4x8xf32>
    %39 = vector.multi_reduction <add>, %38, %cst_15 [2] : vector<4x8x8xf32> to vector<4x8xf32>
    %40 = vector.shape_cast %39 : vector<4x8xf32> to vector<4x8x1xf32>
    %41 = tpu.reciprocal %40 {approx = true} : vector<4x8x1xf32> -> vector<4x8x1xf32>
    %42 = vector.broadcast %41 : vector<4x8x1xf32> to vector<4x8x8xf32>
    %43 = arith.mulf %38, %42 : vector<4x8x8xf32>
    %44 = arith.truncf %43 : vector<4x8x8xf32> to vector<4x8x8xbf16>
    "tpu.trace_start"() <{level = 10 : i32, message = "hqk,hkd->hqd"}> : () -> ()
    %cst_16 = arith.constant dense<0.000000e+00> : vector<4x8x8xf32>
    %45 = tpu.matmul %44, %22, %cst_16 {dimension_numbers = #tpu.dot_dimension_numbers<[2], [1], [1], [2], [0, 0, 0, 1, 1, 2], [0], [0]>} : vector<4x8x8xbf16>, vector<4x8x8xbf16>, vector<4x8x8xf32> -> vector<4x8x8xf32>
    "tpu.trace_stop"() : () -> ()
    %46 = tpu.transpose %45, [1, 0, 2] : vector<4x8x8xf32> -> vector<8x4x8xf32>
    %47 = vector.shape_cast %46 : vector<8x4x8xf32> to vector<8x32xf32>
    %48 = arith.truncf %47 : vector<8x32xf32> to vector<8x32xbf16>
    %cst_17 = arith.constant dense<0.000000e+00> : vector<8x32xf32>
    %49 = tpu.matmul %48, %13, %cst_17 {dimension_numbers = #tpu.dot_dimension_numbers<[1], [0], [0], [1], [0, 0, 1, 1], [], []>} : vector<8x32xbf16>, vector<32x32xbf16>, vector<8x32xf32> -> vector<8x32xf32>
    %50 = arith.addf %1, %49 : vector<8x32xf32>
    %c0_18 = arith.constant 0 : index
    %c0_19 = arith.constant 0 : index
    %51 = vector.load %arg6[%c0_18, %c0_19] : memref<1x32xf32, #tpu.memory_space<vmem>>, vector<1x32xf32>
    %52 = vector.broadcast %51 : vector<1x32xf32> to vector<8x32xf32>
    %53 = arith.addf %50, %52 : vector<8x32xf32>
    %c0_20 = arith.constant 0 : index
    %c0_21 = arith.constant 0 : index
    %54 = vector.load %arg7[%c0_20, %c0_21] : memref<1x32xf32, #tpu.memory_space<vmem>>, vector<1x32xf32>
    %c0_22 = arith.constant 0 : index
    %c0_23 = arith.constant 0 : index
    %55 = vector.load %arg8[%c0_22, %c0_23] : memref<1x32xf32, #tpu.memory_space<vmem>>, vector<1x32xf32>
    %cst_24 = arith.constant dense<0.000000e+00> : vector<8xf32>
    %56 = vector.multi_reduction <add>, %53, %cst_24 [1] : vector<8x32xf32> to vector<8xf32>
    %57 = vector.shape_cast %56 : vector<8xf32> to vector<8x1xf32>
    %cst_25 = arith.constant 3.200000e+01 : f32
    %58 = vector.broadcast %cst_25 : f32 to vector<8x1xf32>
    %59 = arith.divf %57, %58 : vector<8x1xf32>
    %60 = vector.broadcast %59 : vector<8x1xf32> to vector<8x32xf32>
    %61 = arith.subf %53, %60 : vector<8x32xf32>
    %62 = arith.mulf %61, %61 : vector<8x32xf32>
    %cst_26 = arith.constant dense<0.000000e+00> : vector<8xf32>
    %63 = vector.multi_reduction <add>, %62, %cst_26 [1] : vector<8x32xf32> to vector<8xf32>
    %64 = vector.shape_cast %63 : vector<8xf32> to vector<8x1xf32>
    %cst_27 = arith.constant 3.200000e+01 : f32
    %65 = vector.broadcast %cst_27 : f32 to vector<8x1xf32>
    %66 = arith.divf %64, %65 : vector<8x1xf32>
    %cst_28 = arith.constant 9.99999974E-6 : f32
    %67 = vector.broadcast %cst_28 : f32 to vector<8x1xf32>
    %68 = arith.addf %66, %67 : vector<8x1xf32>
    %69 = math.rsqrt %68 : vector<8x1xf32>
    %70 = vector.broadcast %69 : vector<8x1xf32> to vector<8x32xf32>
    %71 = arith.mulf %61, %70 : vector<8x32xf32>
    %72 = vector.broadcast %54 : vector<1x32xf32> to vector<8x32xf32>
    %73 = arith.mulf %71, %72 : vector<8x32xf32>
    %74 = vector.broadcast %55 : vector<1x32xf32> to vector<8x32xf32>
    %75 = arith.addf %73, %74 : vector<8x32xf32>
    %76 = arith.truncf %75 : vector<8x32xf32> to vector<8x32xbf16>
    %c0_29 = arith.constant 0 : index
    %c0_30 = arith.constant 0 : index
    %77 = vector.load %arg9[%c0_29, %c0_30] : memref<32x32xbf16, #tpu.memory_space<vmem>>, vector<32x32xbf16>
    %cst_31 = arith.constant dense<0.000000e+00> : vector<8x32xf32>
    %78 = tpu.matmul %76, %77, %cst_31 {dimension_numbers = #tpu.dot_dimension_numbers<[1], [0], [0], [1], [0, 0, 1, 1], [], []>} : vector<8x32xbf16>, vector<32x32xbf16>, vector<8x32xf32> -> vector<8x32xf32>
    %c0_32 = arith.constant 0 : index
    %c0_33 = arith.constant 0 : index
    %79 = vector.load %arg10[%c0_32, %c0_33] : memref<1x32xf32, #tpu.memory_space<vmem>>, vector<1x32xf32>
    %80 = vector.broadcast %79 : vector<1x32xf32> to vector<8x32xf32>
    %81 = arith.addf %78, %80 : vector<8x32xf32>
    %82 = arith.truncf %3 : vector<8x32xf32> to vector<8x32xbf16>
    %c0_34 = arith.constant 0 : index
    %c0_35 = arith.constant 0 : index
    %83 = vector.load %arg11[%c0_34, %c0_35] : memref<32x64xbf16, #tpu.memory_space<vmem>>, vector<32x64xbf16>
    %cst_36 = arith.constant dense<0.000000e+00> : vector<8x64xf32>
    %84 = tpu.matmul %82, %83, %cst_36 {dimension_numbers = #tpu.dot_dimension_numbers<[1], [0], [0], [1], [0, 0, 1, 1], [], []>} : vector<8x32xbf16>, vector<32x64xbf16>, vector<8x64xf32> -> vector<8x64xf32>
    %c0_37 = arith.constant 0 : index
    %c0_38 = arith.constant 0 : index
    %85 = vector.load %arg12[%c0_37, %c0_38] : memref<1x64xf32, #tpu.memory_space<vmem>>, vector<1x64xf32>
    %86 = vector.broadcast %85 : vector<1x64xf32> to vector<8x64xf32>
    %87 = arith.addf %84, %86 : vector<8x64xf32>
    %88 = vector.extract_strided_slice %87 {offsets = [0, 0], sizes = [8, 32], strides = [1, 1]} : vector<8x64xf32> to vector<8x32xf32>
    %89 = vector.extract_strided_slice %87 {offsets = [0, 32], sizes = [8, 32], strides = [1, 1]} : vector<8x64xf32> to vector<8x32xf32>
    %c0_39 = arith.constant 0 : index
    %c0_40 = arith.constant 0 : index
    %90 = vector.load %arg13[%c0_39, %c0_40] : memref<32x32xbf16, #tpu.memory_space<vmem>>, vector<32x32xbf16>
    %91 = vector.shape_cast %81 : vector<8x32xf32> to vector<8x4x8xf32>
    %92 = tpu.transpose %91, [1, 0, 2] : vector<8x4x8xf32> -> vector<4x8x8xf32>
    %93 = arith.truncf %92 : vector<4x8x8xf32> to vector<4x8x8xbf16>
    %94 = vector.shape_cast %88 : vector<8x32xf32> to vector<8x4x8xf32>
    %95 = tpu.transpose %94, [1, 0, 2] : vector<8x4x8xf32> -> vector<4x8x8xf32>
    %96 = arith.truncf %95 : vector<4x8x8xf32> to vector<4x8x8xbf16>
    %97 = vector.shape_cast %89 : vector<8x32xf32> to vector<8x4x8xf32>
    %98 = tpu.transpose %97, [1, 0, 2] : vector<8x4x8xf32> -> vector<4x8x8xf32>
    %99 = arith.truncf %98 : vector<4x8x8xf32> to vector<4x8x8xbf16>
    "tpu.trace_start"() <{level = 10 : i32, message = "hqd,hkd->hqk"}> : () -> ()
    %cst_41 = arith.constant dense<0.000000e+00> : vector<4x8x8xf32>
    %100 = tpu.matmul %93, %96, %cst_41 {dimension_numbers = #tpu.dot_dimension_numbers<[2], [2], [1], [1], [0, 0, 0, 1, 1, 1], [0], [0]>} : vector<4x8x8xbf16>, vector<4x8x8xbf16>, vector<4x8x8xf32> -> vector<4x8x8xf32>
    "tpu.trace_stop"() : () -> ()
    %cst_42 = arith.constant 0.353553385 : f32
    %101 = vector.broadcast %cst_42 : f32 to vector<4x8x8xf32>
    %102 = arith.mulf %100, %101 : vector<4x8x8xf32>
    %cst_43 = arith.constant dense<0xFF800000> : vector<4x8xf32>
    %103 = vector.multi_reduction <maximumf>, %102, %cst_43 [2] : vector<4x8x8xf32> to vector<4x8xf32>
    %104 = vector.shape_cast %103 : vector<4x8xf32> to vector<4x8x1xf32>
    %105 = vector.broadcast %104 : vector<4x8x1xf32> to vector<4x8x8xf32>
    %106 = arith.subf %102, %105 : vector<4x8x8xf32>
    %107 = math.exp %106 : vector<4x8x8xf32>
    %cst_44 = arith.constant dense<0.000000e+00> : vector<4x8xf32>
    %108 = vector.multi_reduction <add>, %107, %cst_44 [2] : vector<4x8x8xf32> to vector<4x8xf32>
    %109 = vector.shape_cast %108 : vector<4x8xf32> to vector<4x8x1xf32>
    %110 = tpu.reciprocal %109 {approx = true} : vector<4x8x1xf32> -> vector<4x8x1xf32>
    %111 = vector.broadcast %110 : vector<4x8x1xf32> to vector<4x8x8xf32>
    %112 = arith.mulf %107, %111 : vector<4x8x8xf32>
    %113 = arith.truncf %112 : vector<4x8x8xf32> to vector<4x8x8xbf16>
    "tpu.trace_start"() <{level = 10 : i32, message = "hqk,hkd->hqd"}> : () -> ()
    %cst_45 = arith.constant dense<0.000000e+00> : vector<4x8x8xf32>
    %114 = tpu.matmul %113, %99, %cst_45 {dimension_numbers = #tpu.dot_dimension_numbers<[2], [1], [1], [2], [0, 0, 0, 1, 1, 2], [0], [0]>} : vector<4x8x8xbf16>, vector<4x8x8xbf16>, vector<4x8x8xf32> -> vector<4x8x8xf32>
    "tpu.trace_stop"() : () -> ()
    %115 = tpu.transpose %114, [1, 0, 2] : vector<4x8x8xf32> -> vector<8x4x8xf32>
    %116 = vector.shape_cast %115 : vector<8x4x8xf32> to vector<8x32xf32>
    %117 = arith.truncf %116 : vector<8x32xf32> to vector<8x32xbf16>
    %cst_46 = arith.constant dense<0.000000e+00> : vector<8x32xf32>
    %118 = tpu.matmul %117, %90, %cst_46 {dimension_numbers = #tpu.dot_dimension_numbers<[1], [0], [0], [1], [0, 0, 1, 1], [], []>} : vector<8x32xbf16>, vector<32x32xbf16>, vector<8x32xf32> -> vector<8x32xf32>
    %119 = arith.addf %75, %118 : vector<8x32xf32>
    %c0_47 = arith.constant 0 : index
    %c0_48 = arith.constant 0 : index
    %120 = vector.load %arg14[%c0_47, %c0_48] : memref<1x32xf32, #tpu.memory_space<vmem>>, vector<1x32xf32>
    %121 = vector.broadcast %120 : vector<1x32xf32> to vector<8x32xf32>
    %122 = arith.addf %119, %121 : vector<8x32xf32>
    %c0_49 = arith.constant 0 : index
    %c0_50 = arith.constant 0 : index
    %123 = vector.load %arg15[%c0_49, %c0_50] : memref<1x32xf32, #tpu.memory_space<vmem>>, vector<1x32xf32>
    %c0_51 = arith.constant 0 : index
    %c0_52 = arith.constant 0 : index
    %124 = vector.load %arg16[%c0_51, %c0_52] : memref<1x32xf32, #tpu.memory_space<vmem>>, vector<1x32xf32>
    %cst_53 = arith.constant dense<0.000000e+00> : vector<8xf32>
    %125 = vector.multi_reduction <add>, %122, %cst_53 [1] : vector<8x32xf32> to vector<8xf32>
    %126 = vector.shape_cast %125 : vector<8xf32> to vector<8x1xf32>
    %cst_54 = arith.constant 3.200000e+01 : f32
    %127 = vector.broadcast %cst_54 : f32 to vector<8x1xf32>
    %128 = arith.divf %126, %127 : vector<8x1xf32>
    %129 = vector.broadcast %128 : vector<8x1xf32> to vector<8x32xf32>
    %130 = arith.subf %122, %129 : vector<8x32xf32>
    %131 = arith.mulf %130, %130 : vector<8x32xf32>
    %cst_55 = arith.constant dense<0.000000e+00> : vector<8xf32>
    %132 = vector.multi_reduction <add>, %131, %cst_55 [1] : vector<8x32xf32> to vector<8xf32>
    %133 = vector.shape_cast %132 : vector<8xf32> to vector<8x1xf32>
    %cst_56 = arith.constant 3.200000e+01 : f32
    %134 = vector.broadcast %cst_56 : f32 to vector<8x1xf32>
    %135 = arith.divf %133, %134 : vector<8x1xf32>
    %cst_57 = arith.constant 9.99999974E-6 : f32
    %136 = vector.broadcast %cst_57 : f32 to vector<8x1xf32>
    %137 = arith.addf %135, %136 : vector<8x1xf32>
    %138 = math.rsqrt %137 : vector<8x1xf32>
    %139 = vector.broadcast %138 : vector<8x1xf32> to vector<8x32xf32>
    %140 = arith.mulf %130, %139 : vector<8x32xf32>
    %141 = vector.broadcast %123 : vector<1x32xf32> to vector<8x32xf32>
    %142 = arith.mulf %140, %141 : vector<8x32xf32>
    %143 = vector.broadcast %124 : vector<1x32xf32> to vector<8x32xf32>
    %144 = arith.addf %142, %143 : vector<8x32xf32>
    %145 = arith.truncf %144 : vector<8x32xf32> to vector<8x32xbf16>
    %c0_58 = arith.constant 0 : index
    %c0_59 = arith.constant 0 : index
    %146 = vector.load %arg17[%c0_58, %c0_59] : memref<32x32xbf16, #tpu.memory_space<vmem>>, vector<32x32xbf16>
    %cst_60 = arith.constant dense<0.000000e+00> : vector<8x32xf32>
    %147 = tpu.matmul %145, %146, %cst_60 {dimension_numbers = #tpu.dot_dimension_numbers<[1], [0], [0], [1], [0, 0, 1, 1], [], []>} : vector<8x32xbf16>, vector<32x32xbf16>, vector<8x32xf32> -> vector<8x32xf32>
    %148 = arith.addf %144, %147 : vector<8x32xf32>
    %c0_61 = arith.constant 0 : index
    %c0_62 = arith.constant 0 : index
    %149 = vector.load %arg18[%c0_61, %c0_62] : memref<1x32xf32, #tpu.memory_space<vmem>>, vector<1x32xf32>
    %150 = vector.broadcast %149 : vector<1x32xf32> to vector<8x32xf32>
    %151 = arith.addf %148, %150 : vector<8x32xf32>
    %c0_63 = arith.constant 0 : index
    %c0_64 = arith.constant 0 : index
    %152 = vector.load %arg19[%c0_63, %c0_64] : memref<1x32xf32, #tpu.memory_space<vmem>>, vector<1x32xf32>
    %c0_65 = arith.constant 0 : index
    %c0_66 = arith.constant 0 : index
    %153 = vector.load %arg20[%c0_65, %c0_66] : memref<1x32xf32, #tpu.memory_space<vmem>>, vector<1x32xf32>
    %cst_67 = arith.constant dense<0.000000e+00> : vector<8xf32>
    %154 = vector.multi_reduction <add>, %151, %cst_67 [1] : vector<8x32xf32> to vector<8xf32>
    %155 = vector.shape_cast %154 : vector<8xf32> to vector<8x1xf32>
    %cst_68 = arith.constant 3.200000e+01 : f32
    %156 = vector.broadcast %cst_68 : f32 to vector<8x1xf32>
    %157 = arith.divf %155, %156 : vector<8x1xf32>
    %158 = vector.broadcast %157 : vector<8x1xf32> to vector<8x32xf32>
    %159 = arith.subf %151, %158 : vector<8x32xf32>
    %160 = arith.mulf %159, %159 : vector<8x32xf32>
    %cst_69 = arith.constant dense<0.000000e+00> : vector<8xf32>
    %161 = vector.multi_reduction <add>, %160, %cst_69 [1] : vector<8x32xf32> to vector<8xf32>
    %162 = vector.shape_cast %161 : vector<8xf32> to vector<8x1xf32>
    %cst_70 = arith.constant 3.200000e+01 : f32
    %163 = vector.broadcast %cst_70 : f32 to vector<8x1xf32>
    %164 = arith.divf %162, %163 : vector<8x1xf32>
    %cst_71 = arith.constant 9.99999974E-6 : f32
    %165 = vector.broadcast %cst_71 : f32 to vector<8x1xf32>
    %166 = arith.addf %164, %165 : vector<8x1xf32>
    %167 = math.rsqrt %166 : vector<8x1xf32>
    %168 = vector.broadcast %167 : vector<8x1xf32> to vector<8x32xf32>
    %169 = arith.mulf %159, %168 : vector<8x32xf32>
    %170 = vector.broadcast %152 : vector<1x32xf32> to vector<8x32xf32>
    %171 = arith.mulf %169, %170 : vector<8x32xf32>
    %172 = vector.broadcast %153 : vector<1x32xf32> to vector<8x32xf32>
    %173 = arith.addf %171, %172 : vector<8x32xf32>
    %c0_72 = arith.constant 0 : index
    %c0_73 = arith.constant 0 : index
    %c0_74 = arith.constant 0 : index
    %174 = vector.load %arg21[%c0_72, %c0_73, %c0_74] : memref<1x8x32xf32, #tpu.memory_space<vmem>>, vector<1x8x32xf32>
    %175 = vector.shape_cast %174 : vector<1x8x32xf32> to vector<8x32xf32>
    %176 = vector.shape_cast %173 : vector<8x32xf32> to vector<1x8x32xf32>
    tpu.vector_store %arg21[%c0_72, %c0_73, %c0_74], %176 {strides = array<i32>} : memref<1x8x32xf32, #tpu.memory_space<vmem>>, vector<1x8x32xf32>,
    return
  }
  func.func @transform_0(%arg0: i32) -> (i32, i32, i32) {
    %c0_i32 = arith.constant 0 : i32
    %c0_i32_0 = arith.constant 0 : i32
    %c0_i32_1 = arith.constant 0 : i32
    return %arg0, %c0_i32, %c0_i32_0 : i32, i32, i32
  }
  func.func @transform_1(%arg0: i32) -> (i32, i32, i32) {
    %c0_i32 = arith.constant 0 : i32
    %c0_i32_0 = arith.constant 0 : i32
    %c0_i32_1 = arith.constant 0 : i32
    return %arg0, %c0_i32, %c0_i32_0 : i32, i32, i32
  }
  func.func @transform_2(%arg0: i32) -> (i32, i32) {
    %c0_i32 = arith.constant 0 : i32
    %c0_i32_0 = arith.constant 0 : i32
    %c0_i32_1 = arith.constant 0 : i32
    return %c0_i32, %c0_i32_0 : i32, i32
  }
  func.func @transform_3(%arg0: i32) -> (i32, i32) {
    %c0_i32 = arith.constant 0 : i32
    %c0_i32_0 = arith.constant 0 : i32
    %c0_i32_1 = arith.constant 0 : i32
    return %c0_i32, %c0_i32_0 : i32, i32
  }
  func.func @transform_4(%arg0: i32) -> (i32, i32) {
    %c0_i32 = arith.constant 0 : i32
    %c0_i32_0 = arith.constant 0 : i32
    %c0_i32_1 = arith.constant 0 : i32
    return %c0_i32, %c0_i32_0 : i32, i32
  }
  func.func @transform_5(%arg0: i32) -> (i32, i32) {
    %c0_i32 = arith.constant 0 : i32
    %c0_i32_0 = arith.constant 0 : i32
    %c0_i32_1 = arith.constant 0 : i32
    return %c0_i32, %c0_i32_0 : i32, i32
  }
  func.func @transform_6(%arg0: i32) -> (i32, i32) {
    %c0_i32 = arith.constant 0 : i32
    %c0_i32_0 = arith.constant 0 : i32
    %c0_i32_1 = arith.constant 0 : i32
    return %c0_i32, %c0_i32_0 : i32, i32
  }
  func.func @transform_7(%arg0: i32) -> (i32, i32) {
    %c0_i32 = arith.constant 0 : i32
    %c0_i32_0 = arith.constant 0 : i32
    %c0_i32_1 = arith.constant 0 : i32
    return %c0_i32, %c0_i32_0 : i32, i32
  }
  func.func @transform_8(%arg0: i32) -> (i32, i32) {
    %c0_i32 = arith.constant 0 : i32
    %c0_i32_0 = arith.constant 0 : i32
    %c0_i32_1 = arith.constant 0 : i32
    return %c0_i32, %c0_i32_0 : i32, i32
  }
  func.func @transform_9(%arg0: i32) -> (i32, i32) {
    %c0_i32 = arith.constant 0 : i32
    %c0_i32_0 = arith.constant 0 : i32
    %c0_i32_1 = arith.constant 0 : i32
    return %c0_i32, %c0_i32_0 : i32, i32
  }
  func.func @transform_10(%arg0: i32) -> (i32, i32) {
    %c0_i32 = arith.constant 0 : i32
    %c0_i32_0 = arith.constant 0 : i32
    %c0_i32_1 = arith.constant 0 : i32
    return %c0_i32, %c0_i32_0 : i32, i32
  }
  func.func @transform_11(%arg0: i32) -> (i32, i32) {
    %c0_i32 = arith.constant 0 : i32
    %c0_i32_0 = arith.constant 0 : i32
    %c0_i32_1 = arith.constant 0 : i32
    return %c0_i32, %c0_i32_0 : i32, i32
  }
  func.func @transform_12(%arg0: i32) -> (i32, i32) {
    %c0_i32 = arith.constant 0 : i32
    %c0_i32_0 = arith.constant 0 : i32
    %c0_i32_1 = arith.constant 0 : i32
    return %c0_i32, %c0_i32_0 : i32, i32
  }
  func.func @transform_13(%arg0: i32) -> (i32, i32) {
    %c0_i32 = arith.constant 0 : i32
    %c0_i32_0 = arith.constant 0 : i32
    %c0_i32_1 = arith.constant 0 : i32
    return %c0_i32, %c0_i32_0 : i32, i32
  }
  func.func @transform_14(%arg0: i32) -> (i32, i32) {
    %c0_i32 = arith.constant 0 : i32
    %c0_i32_0 = arith.constant 0 : i32
    %c0_i32_1 = arith.constant 0 : i32
    return %c0_i32, %c0_i32_0 : i32, i32
  }
  func.func @transform_15(%arg0: i32) -> (i32, i32) {
    %c0_i32 = arith.constant 0 : i32
    %c0_i32_0 = arith.constant 0 : i32
    %c0_i32_1 = arith.constant 0 : i32
    return %c0_i32, %c0_i32_0 : i32, i32
  }
  func.func @transform_16(%arg0: i32) -> (i32, i32) {
    %c0_i32 = arith.constant 0 : i32
    %c0_i32_0 = arith.constant 0 : i32
    %c0_i32_1 = arith.constant 0 : i32
    return %c0_i32, %c0_i32_0 : i32, i32
  }
  func.func @transform_17(%arg0: i32) -> (i32, i32) {
    %c0_i32 = arith.constant 0 : i32
    %c0_i32_0 = arith.constant 0 : i32
    %c0_i32_1 = arith.constant 0 : i32
    return %c0_i32, %c0_i32_0 : i32, i32
  }
  func.func @transform_18(%arg0: i32) -> (i32, i32) {
    %c0_i32 = arith.constant 0 : i32
    %c0_i32_0 = arith.constant 0 : i32
    %c0_i32_1 = arith.constant 0 : i32
    return %c0_i32, %c0_i32_0 : i32, i32
  }
  func.func @transform_19(%arg0: i32) -> (i32, i32) {
    %c0_i32 = arith.constant 0 : i32
    %c0_i32_0 = arith.constant 0 : i32
    %c0_i32_1 = arith.constant 0 : i32
    return %c0_i32, %c0_i32_0 : i32, i32
  }
  func.func @transform_20(%arg0: i32) -> (i32, i32, i32) {
    %c0_i32 = arith.constant 0 : i32
    %c0_i32_0 = arith.constant 0 : i32
    %c0_i32_1 = arith.constant 0 : i32
    return %arg0, %c0_i32, %c0_i32_0 : i32, i32, i32
  }
}

</mosaic_0001>

<llo_original>
// kernel: tpu_custom_call.1
$region0: #{tpu_custom_call.1}
  #allocation0 [shape = 'u32[]', space=smem, size = 0x4, offset = 0x4, fixed_abs, tag = 'smem constant byte address 0x4 - core index']
  #allocation1 [shape = 'u32[144,128]{1,0:T(1,128)}', space=vmem, size = 0x12000, scoped, tag = 'internal scratch']
  %s0 = inlined_call_operand.hbm [shape: f32[2,8,32], index: 0, kind: input, shape index: {}]
  %s1 = inlined_call_operand.hbm [shape: f32[2,8,32], index: 1, kind: input, shape index: {}]
  %s2 = inlined_call_operand.hbm [shape: bf16[32,96], index: 2, kind: input, shape index: {}]
  %s3 = inlined_call_operand.vmem [shape: f32[1,96], index: 3, kind: input, shape index: {}]
  %s4 = inlined_call_operand.hbm [shape: bf16[32,32], index: 4, kind: input, shape index: {}]
  %s5 = inlined_call_operand.hbm [shape: f32[1,32], index: 5, kind: input, shape index: {}]
  %s6 = inlined_call_operand.hbm [shape: f32[1,32], index: 6, kind: input, shape index: {}]
  %s7 = inlined_call_operand.hbm [shape: f32[1,32], index: 7, kind: input, shape index: {}]
  %s8 = inlined_call_operand.vmem [shape: bf16[32,32], index: 8, kind: input, shape index: {}]
  %s9 = inlined_call_operand.hbm [shape: f32[1,32], index: 9, kind: input, shape index: {}]
  %s10 = inlined_call_operand.vmem [shape: bf16[32,64], index: 10, kind: input, shape index: {}]
  %s11 = inlined_call_operand.hbm [shape: f32[1,64], index: 11, kind: input, shape index: {}]
  %s12 = inlined_call_operand.hbm [shape: bf16[32,32], index: 12, kind: input, shape index: {}]
  %s13 = inlined_call_operand.hbm [shape: f32[1,32], index: 13, kind: input, shape index: {}]
  %s14 = inlined_call_operand.vmem [shape: f32[1,32], index: 14, kind: input, shape index: {}]
  %s15 = inlined_call_operand.vmem [shape: f32[1,32], index: 15, kind: input, shape index: {}]
  %s16 = inlined_call_operand.vmem [shape: bf16[32,32], index: 16, kind: input, shape index: {}]
  %s17 = inlined_call_operand.vmem [shape: f32[1,32], index: 17, kind: input, shape index: {}]
  %s18 = inlined_call_operand.vmem [shape: f32[1,32], index: 18, kind: input, shape index: {}]
  %s19 = inlined_call_operand.vmem [shape: f32[1,32], index: 19, kind: input, shape index: {}]
  %s20 = inlined_call_operand.hbm [shape: f32[2,8,32], index: 20, kind: output, shape index: {}]
  %s21 = sld [smem:[#allocation0]]
  $region157: #{tpu_custom_call.1} parent=0
    _
  %s23 = ssub.s32 1, %s21
  %s24 = scalar_select 0, %s23, %s21
  $region1: #{tpu_custom_call.1} parent=0
    #allocation2 [shape = 'u8[8192]{0}', space=vmem, size = 0x2000, scoped, tag = 'input window, operand 0']
    #allocation3 [shape = 's32[2]{0}', space=sflag, size = 0x8, scoped, tag = 'scoped memory for tpu_custom_call.1']
    #allocation4 [shape = 's32[2]{0}', space=sflag, size = 0x8, scoped, tag = 'scoped memory for tpu_custom_call.1']
    #allocation5 [shape = 'u8[8192]{0}', space=vmem, size = 0x2000, scoped, tag = 'input window, operand 1']
    #allocation6 [shape = 's32[2]{0}', space=sflag, size = 0x8, scoped, tag = 'scoped memory for tpu_custom_call.1']
    #allocation7 [shape = 'u8[8192]{0}', space=vmem, size = 0x2000, scoped, tag = 'input window, operand 2, single buffered']
    #allocation8 [shape = 'u8[8192]{0}', space=vmem, size = 0x2000, scoped, tag = 'input window, operand 4, single buffered']
    #allocation9 [shape = 's32[1]{0}', space=sflag, size = 0x4, scoped, tag = 'scoped memory for tpu_custom_call.1']
    #allocation10 [shape = 'u8[512]{0}', space=vmem, size = 0x400, scoped, tag = 'input window, operand 5, single buffered']
    #allocation11 [shape = 'u8[512]{0}', space=vmem, size = 0x400, scoped, tag = 'input window, operand 6, single buffered']
    #allocation12 [shape = 's32[1]{0}', space=sflag, size = 0x4, scoped, tag = 'scoped memory for tpu_custom_call.1']
    #allocation13 [shape = 'u8[512]{0}', space=vmem, size = 0x400, scoped, tag = 'input window, operand 7, single buffered']
    #allocation14 [shape = 'u8[512]{0}', space=vmem, size = 0x400, scoped, tag = 'input window, operand 9, single buffered']
    #allocation15 [shape = 's32[1]{0}', space=sflag, size = 0x4, scoped, tag = 'scoped memory for tpu_custom_call.1']
    #allocation16 [shape = 'u8[512]{0}', space=vmem, size = 0x400, scoped, tag = 'input window, operand 11, single buffered']
    #allocation17 [shape = 'u8[8192]{0}', space=vmem, size = 0x2000, scoped, tag = 'input window, operand 12, single buffered']
    #allocation18 [shape = 's32[1]{0}', space=sflag, size = 0x4, scoped, tag = 'scoped memory for tpu_custom_call.1']
    #allocation19 [shape = 'u8[512]{0}', space=vmem, size = 0x400, scoped, tag = 'input window, operand 13, single buffered']
    #allocation20 [shape = 'u8[8192]{0}', space=vmem, size = 0x2000, scoped, tag = 'output window, operand 0']
    %25 = vsyncpa [#allocation3], 0
    %s26 = scalar_lea.sflag [#allocation3], 1
    %27 = vsyncpa %s26, 0
    %28 = vsyncpa [#allocation6], 0
    %s29 = scalar_lea.sflag [#allocation6], 1
    %30 = vsyncpa %s29, 0
    %31 = vsyncpa [#allocation9], 0
    %32 = vsyncpa [#allocation12], 0
    %33 = vsyncpa [#allocation15], 0
    %34 = vsyncpa [#allocation18], 0
    %35 = vsyncpa [#allocation4], 0
    %s36 = scalar_lea.sflag [#allocation4], 1
    %37 = vsyncpa %s36, 0
    loop: start=0, step=1, limit=4
    $region2: #{tpu_custom_call.1} parent=1 // loop_pre_header
      _
    $region3: #{tpu_custom_call.1} parent=1 // loop_header
      %s39 = sphi 0, %s43
      %p40 = scmp.ge.s32.totalorder %s39, 4
      %s49 = sphi 0, %s51
      %s52 = sphi 0, %s49
      %s53 = sphi 0, %s52
      %s69 = sphi 0, %s53
      %s75 = sphi 0, %s77
      %s78 = sphi 0, %s75
      %s79 = sphi 0, %s78
      %s95 = sphi 0, %s79
      %s99 = sphi 0, %s99
      %s101 = sphi 0, %s99
      %s102 = sphi 0, %s101
      %s116 = sphi 0, %s102
      %s120 = sphi 0, %s120
      %s122 = sphi 0, %s120
      %s123 = sphi 0, %s122
      %s137 = sphi 0, %s123
      %s141 = sphi 0, %s141
      %s143 = sphi 0, %s141
      %s144 = sphi 0, %s143
      %s158 = sphi 0, %s144
      %s162 = sphi 0, %s162
      %s164 = sphi 0, %s162
      %s165 = sphi 0, %s164
      %s179 = sphi 0, %s165
      %s183 = sphi 0, %s183
      %s185 = sphi 0, %s183
      %s186 = sphi 0, %s185
      %s200 = sphi 0, %s186
      %s204 = sphi 0, %s204
      %s206 = sphi 0, %s204
      %s207 = sphi 0, %s206
      %s221 = sphi 0, %s207
      %s225 = sphi 0, %s225
      %s227 = sphi 0, %s225
      %s228 = sphi 0, %s227
      %s242 = sphi 0, %s228
      %s246 = sphi 0, %s246
      %s248 = sphi 0, %s246
      %s249 = sphi 0, %s248
      %s263 = sphi 0, %s249
      %s267 = sphi 0, %s267
      %s269 = sphi 0, %s267
      %s270 = sphi 0, %s269
      %s284 = sphi 0, %s270
      %s288 = sphi 0, %s288
      %s290 = sphi 0, %s288
      %s291 = sphi 0, %s290
      %s305 = sphi 0, %s291
      %s309 = sphi 0, %s309
      %s311 = sphi 0, %s309
      %s312 = sphi 0, %s311
      %s326 = sphi 0, %s312
      %s330 = sphi 0, %s330
      %s332 = sphi 0, %s330
      %s333 = sphi 0, %s332
      %s347 = sphi 0, %s333
      %s351 = sphi 0, %s351
      %s353 = sphi 0, %s351
      %s354 = sphi 0, %s353
      %s368 = sphi 0, %s354
      %s372 = sphi 0, %s372
      %s374 = sphi 0, %s372
      %s375 = sphi 0, %s374
      %s389 = sphi 0, %s375
      %s393 = sphi 0, %s393
      %s395 = sphi 0, %s393
      %s396 = sphi 0, %s395
      %s410 = sphi 0, %s396
      %s414 = sphi 0, %s414
      %s416 = sphi 0, %s414
      %s417 = sphi 0, %s416
      %s431 = sphi 0, %s417
      %s435 = sphi 0, %s435
      %s437 = sphi 0, %s435
      %s438 = sphi 0, %s437
      %s452 = sphi 0, %s438
      %s456 = sphi 0, %s456
      %s458 = sphi 0, %s456
      %s459 = sphi 0, %s458
      %s473 = sphi 0, %s459
      %s479 = sphi 0, %s481
      %s482 = sphi 0, %s479
      %s483 = sphi 0, %s482
      %s499 = sphi 0, %s483
    $region4: #{tpu_custom_call.1} parent=1 // loop_header_branch
      %42 = sbr.rel (%p40) target = $region8
    $region5: #{tpu_custom_call.1} parent=1 // loop_body
      %s44 = ssub.s32 %s39, 1
      %s45 = ssub.s32 %s39, 2
      %s46 = sadd.s32 %s39, 1
      %s47 = ssub.s32 %s39, %s46
      %p48 = scmp.eq.s32.totalorder %s47, 0
      %s50 = sadd.s32 %s49, 1
      %s51 = scalar_select %p48, %s49, %s50
      %p54 = pneg %p48
      %p55 = scmp.eq.s32.totalorder %s39, 1
      %p56 = por %p54, %p55
      %p57 = scmp.ne.s32.totalorder %s49, %s52
      %p58 = scmp.eq.s32.totalorder %s39, 0
      %p59 = por %p57, %p58
      %p60 = scmp.ne.s32.totalorder %s49, %s52
      %p61 = scmp.eq.s32.totalorder %s44, 1
      %p62 = por %p60, %p61
      %p63 = scmp.ne.s32.totalorder %s52, %s53
      %p64 = scmp.eq.s32.totalorder %s44, 0
      %p65 = por %p63, %p64
      %p66 = scmp.ne.s32.totalorder %s52, %s53
      %p67 = scmp.eq.s32.totalorder %s45, 1
      %p68 = por %p66, %p67
      %p70 = scmp.ne.s32.totalorder %s53, %s69
      %p71 = scmp.eq.s32.totalorder %s45, 0
      %p72 = por %p70, %p71
      %s73 = ssub.s32 %s39, %s46
      %p74 = scmp.eq.s32.totalorder %s73, 0
      %s76 = sadd.s32 %s75, 1
      %s77 = scalar_select %p74, %s75, %s76
      %p80 = pneg %p74
      %p81 = scmp.eq.s32.totalorder %s39, 1
      %p82 = por %p80, %p81
      %p83 = scmp.ne.s32.totalorder %s75, %s78
      %p84 = scmp.eq.s32.totalorder %s39, 0
      %p85 = por %p83, %p84
      %p86 = scmp.ne.s32.totalorder %s75, %s78
      %p87 = scmp.eq.s32.totalorder %s44, 1
      %p88 = por %p86, %p87
      %p89 = scmp.ne.s32.totalorder %s78, %s79
      %p90 = scmp.eq.s32.totalorder %s44, 0
      %p91 = por %p89, %p90
      %p92 = scmp.ne.s32.totalorder %s78, %s79
      %p93 = scmp.eq.s32.totalorder %s45, 1
      %p94 = por %p92, %p93
      %p96 = scmp.ne.s32.totalorder %s79, %s95
      %p97 = scmp.eq.s32.totalorder %s45, 0
      %p98 = por %p96, %p97
      %s100 = sadd.s32 %s99, 1
      %p103 = scmp.eq.s32.totalorder %s39, 1
      %p104 = scmp.ne.s32.totalorder %s99, %s101
      %p105 = scmp.eq.s32.totalorder %s39, 0
      %p106 = por %p104, %p105
      %p107 = scmp.ne.s32.totalorder %s99, %s101
      %p108 = scmp.eq.s32.totalorder %s44, 1
      %p109 = por %p107, %p108
      %p110 = scmp.ne.s32.totalorder %s101, %s102
      %p111 = scmp.eq.s32.totalorder %s44, 0
      %p112 = por %p110, %p111
      %p113 = scmp.ne.s32.totalorder %s101, %s102
      %p114 = scmp.eq.s32.totalorder %s45, 1
      %p115 = por %p113, %p114
      %p117 = scmp.ne.s32.totalorder %s102, %s116
      %p118 = scmp.eq.s32.totalorder %s45, 0
      %p119 = por %p117, %p118
      %s121 = sadd.s32 %s120, 1
      %p124 = scmp.eq.s32.totalorder %s39, 1
      %p125 = scmp.ne.s32.totalorder %s120, %s122
      %p126 = scmp.eq.s32.totalorder %s39, 0
      %p127 = por %p125, %p126
      %p128 = scmp.ne.s32.totalorder %s120, %s122
      %p129 = scmp.eq.s32.totalorder %s44, 1
      %p130 = por %p128, %p129
      %p131 = scmp.ne.s32.totalorder %s122, %s123
      %p132 = scmp.eq.s32.totalorder %s44, 0
      %p133 = por %p131, %p132
      %p134 = scmp.ne.s32.totalorder %s122, %s123
      %p135 = scmp.eq.s32.totalorder %s45, 1
      %p136 = por %p134, %p135
      %p138 = scmp.ne.s32.totalorder %s123, %s137
      %p139 = scmp.eq.s32.totalorder %s45, 0
      %p140 = por %p138, %p139
      %s142 = sadd.s32 %s141, 1
      %p145 = scmp.eq.s32.totalorder %s39, 1
      %p146 = scmp.ne.s32.totalorder %s141, %s143
      %p147 = scmp.eq.s32.totalorder %s39, 0
      %p148 = por %p146, %p147
      %p149 = scmp.ne.s32.totalorder %s141, %s143
      %p150 = scmp.eq.s32.totalorder %s44, 1
      %p151 = por %p149, %p150
      %p152 = scmp.ne.s32.totalorder %s143, %s144
      %p153 = scmp.eq.s32.totalorder %s44, 0
      %p154 = por %p152, %p153
      %p155 = scmp.ne.s32.totalorder %s143, %s144
      %p156 = scmp.eq.s32.totalorder %s45, 1
      %p157 = por %p155, %p156
      %p159 = scmp.ne.s32.totalorder %s144, %s158
      %p160 = scmp.eq.s32.totalorder %s45, 0
      %p161 = por %p159, %p160
      %s163 = sadd.s32 %s162, 1
      %p166 = scmp.eq.s32.totalorder %s39, 1
      %p167 = scmp.ne.s32.totalorder %s162, %s164
      %p168 = scmp.eq.s32.totalorder %s39, 0
      %p169 = por %p167, %p168
      %p170 = scmp.ne.s32.totalorder %s162, %s164
      %p171 = scmp.eq.s32.totalorder %s44, 1
      %p172 = por %p170, %p171
      %p173 = scmp.ne.s32.totalorder %s164, %s165
      %p174 = scmp.eq.s32.totalorder %s44, 0
      %p175 = por %p173, %p174
      %p176 = scmp.ne.s32.totalorder %s164, %s165
      %p177 = scmp.eq.s32.totalorder %s45, 1
      %p178 = por %p176, %p177
      %p180 = scmp.ne.s32.totalorder %s165, %s179
      %p181 = scmp.eq.s32.totalorder %s45, 0
      %p182 = por %p180, %p181
      %s184 = sadd.s32 %s183, 1
      %p187 = scmp.eq.s32.totalorder %s39, 1
      %p188 = scmp.ne.s32.totalorder %s183, %s185
      %p189 = scmp.eq.s32.totalorder %s39, 0
      %p190 = por %p188, %p189
      %p191 = scmp.ne.s32.totalorder %s183, %s185
      %p192 = scmp.eq.s32.totalorder %s44, 1
      %p193 = por %p191, %p192
      %p194 = scmp.ne.s32.totalorder %s185, %s186
      %p195 = scmp.eq.s32.totalorder %s44, 0
      %p196 = por %p194, %p195
      %p197 = scmp.ne.s32.totalorder %s185, %s186
      %p198 = scmp.eq.s32.totalorder %s45, 1
      %p199 = por %p197, %p198
      %p201 = scmp.ne.s32.totalorder %s186, %s200
      %p202 = scmp.eq.s32.totalorder %s45, 0
      %p203 = por %p201, %p202
      %s205 = sadd.s32 %s204, 1
      %p208 = scmp.eq.s32.totalorder %s39, 1
      %p209 = scmp.ne.s32.totalorder %s204, %s206
      %p210 = scmp.eq.s32.totalorder %s39, 0
      %p211 = por %p209, %p210
      %p212 = scmp.ne.s32.totalorder %s204, %s206
      %p213 = scmp.eq.s32.totalorder %s44, 1
      %p214 = por %p212, %p213
      %p215 = scmp.ne.s32.totalorder %s206, %s207
      %p216 = scmp.eq.s32.totalorder %s44, 0
      %p217 = por %p215, %p216
      %p218 = scmp.ne.s32.totalorder %s206, %s207
      %p219 = scmp.eq.s32.totalorder %s45, 1
      %p220 = por %p218, %p219
      %p222 = scmp.ne.s32.totalorder %s207, %s221
      %p223 = scmp.eq.s32.totalorder %s45, 0
      %p224 = por %p222, %p223
      %s226 = sadd.s32 %s225, 1
      %p229 = scmp.eq.s32.totalorder %s39, 1
      %p230 = scmp.ne.s32.totalorder %s225, %s227
      %p231 = scmp.eq.s32.totalorder %s39, 0
      %p232 = por %p230, %p231
      %p233 = scmp.ne.s32.totalorder %s225, %s227
      %p234 = scmp.eq.s32.totalorder %s44, 1
      %p235 = por %p233, %p234
      %p236 = scmp.ne.s32.totalorder %s227, %s228
      %p237 = scmp.eq.s32.totalorder %s44, 0
      %p238 = por %p236, %p237
      %p239 = scmp.ne.s32.totalorder %s227, %s228
      %p240 = scmp.eq.s32.totalorder %s45, 1
      %p241 = por %p239, %p240
      %p243 = scmp.ne.s32.totalorder %s228, %s242
      %p244 = scmp.eq.s32.totalorder %s45, 0
      %p245 = por %p243, %p244
      %s247 = sadd.s32 %s246, 1
      %p250 = scmp.eq.s32.totalorder %s39, 1
      %p251 = scmp.ne.s32.totalorder %s246, %s248
      %p252 = scmp.eq.s32.totalorder %s39, 0
      %p253 = por %p251, %p252
      %p254 = scmp.ne.s32.totalorder %s246, %s248
      %p255 = scmp.eq.s32.totalorder %s44, 1
      %p256 = por %p254, %p255
      %p257 = scmp.ne.s32.totalorder %s248, %s249
      %p258 = scmp.eq.s32.totalorder %s44, 0
      %p259 = por %p257, %p258
      %p260 = scmp.ne.s32.totalorder %s248, %s249
      %p261 = scmp.eq.s32.totalorder %s45, 1
      %p262 = por %p260, %p261
      %p264 = scmp.ne.s32.totalorder %s249, %s263
      %p265 = scmp.eq.s32.totalorder %s45, 0
      %p266 = por %p264, %p265
      %s268 = sadd.s32 %s267, 1
      %p271 = scmp.eq.s32.totalorder %s39, 1
      %p272 = scmp.ne.s32.totalorder %s267, %s269
      %p273 = scmp.eq.s32.totalorder %s39, 0
      %p274 = por %p272, %p273
      %p275 = scmp.ne.s32.totalorder %s267, %s269
      %p276 = scmp.eq.s32.totalorder %s44, 1
      %p277 = por %p275, %p276
      %p278 = scmp.ne.s32.totalorder %s269, %s270
      %p279 = scmp.eq.s32.totalorder %s44, 0
      %p280 = por %p278, %p279
      %p281 = scmp.ne.s32.totalorder %s269, %s270
      %p282 = scmp.eq.s32.totalorder %s45, 1
      %p283 = por %p281, %p282
      %p285 = scmp.ne.s32.totalorder %s270, %s284
      %p286 = scmp.eq.s32.totalorder %s45, 0
      %p287 = por %p285, %p286
      %s289 = sadd.s32 %s288, 1
      %p292 = scmp.eq.s32.totalorder %s39, 1
      %p293 = scmp.ne.s32.totalorder %s288, %s290
      %p294 = scmp.eq.s32.totalorder %s39, 0
      %p295 = por %p293, %p294
      %p296 = scmp.ne.s32.totalorder %s288, %s290
      %p297 = scmp.eq.s32.totalorder %s44, 1
      %p298 = por %p296, %p297
      %p299 = scmp.ne.s32.totalorder %s290, %s291
      %p300 = scmp.eq.s32.totalorder %s44, 0
      %p301 = por %p299, %p300
      %p302 = scmp.ne.s32.totalorder %s290, %s291
      %p303 = scmp.eq.s32.totalorder %s45, 1
      %p304 = por %p302, %p303
      %p306 = scmp.ne.s32.totalorder %s291, %s305
      %p307 = scmp.eq.s32.totalorder %s45, 0
      %p308 = por %p306, %p307
      %s310 = sadd.s32 %s309, 1
      %p313 = scmp.eq.s32.totalorder %s39, 1
      %p314 = scmp.ne.s32.totalorder %s309, %s311
      %p315 = scmp.eq.s32.totalorder %s39, 0
      %p316 = por %p314, %p315
      %p317 = scmp.ne.s32.totalorder %s309, %s311
      %p318 = scmp.eq.s32.totalorder %s44, 1
      %p319 = por %p317, %p318
      %p320 = scmp.ne.s32.totalorder %s311, %s312
      %p321 = scmp.eq.s32.totalorder %s44, 0
      %p322 = por %p320, %p321
      %p323 = scmp.ne.s32.totalorder %s311, %s312
      %p324 = scmp.eq.s32.totalorder %s45, 1
      %p325 = por %p323, %p324
      %p327 = scmp.ne.s32.totalorder %s312, %s326
      %p328 = scmp.eq.s32.totalorder %s45, 0
      %p329 = por %p327, %p328
      %s331 = sadd.s32 %s330, 1
      %p334 = scmp.eq.s32.totalorder %s39, 1
      %p335 = scmp.ne.s32.totalorder %s330, %s332
      %p336 = scmp.eq.s32.totalorder %s39, 0
      %p337 = por %p335, %p336
      %p338 = scmp.ne.s32.totalorder %s330, %s332
      %p339 = scmp.eq.s32.totalorder %s44, 1
      %p340 = por %p338, %p339
      %p341 = scmp.ne.s32.totalorder %s332, %s333
      %p342 = scmp.eq.s32.totalorder %s44, 0
      %p343 = por %p341, %p342
      %p344 = scmp.ne.s32.totalorder %s332, %s333
      %p345 = scmp.eq.s32.totalorder %s45, 1
      %p346 = por %p344, %p345
      %p348 = scmp.ne.s32.totalorder %s333, %s347
      %p349 = scmp.eq.s32.totalorder %s45, 0
      %p350 = por %p348, %p349
      %s352 = sadd.s32 %s351, 1
      %p355 = scmp.eq.s32.totalorder %s39, 1
      %p356 = scmp.ne.s32.totalorder %s351, %s353
      %p357 = scmp.eq.s32.totalorder %s39, 0
      %p358 = por %p356, %p357
      %p359 = scmp.ne.s32.totalorder %s351, %s353
      %p360 = scmp.eq.s32.totalorder %s44, 1
      %p361 = por %p359, %p360
      %p362 = scmp.ne.s32.totalorder %s353, %s354
      %p363 = scmp.eq.s32.totalorder %s44, 0
      %p364 = por %p362, %p363
      %p365 = scmp.ne.s32.totalorder %s353, %s354
      %p366 = scmp.eq.s32.totalorder %s45, 1
      %p367 = por %p365, %p366
      %p369 = scmp.ne.s32.totalorder %s354, %s368
      %p370 = scmp.eq.s32.totalorder %s45, 0
      %p371 = por %p369, %p370
      %s373 = sadd.s32 %s372, 1
      %p376 = scmp.eq.s32.totalorder %s39, 1
      %p377 = scmp.ne.s32.totalorder %s372, %s374
      %p378 = scmp.eq.s32.totalorder %s39, 0
      %p379 = por %p377, %p378
      %p380 = scmp.ne.s32.totalorder %s372, %s374
      %p381 = scmp.eq.s32.totalorder %s44, 1
      %p382 = por %p380, %p381
      %p383 = scmp.ne.s32.totalorder %s374, %s375
      %p384 = scmp.eq.s32.totalorder %s44, 0
      %p385 = por %p383, %p384
      %p386 = scmp.ne.s32.totalorder %s374, %s375
      %p387 = scmp.eq.s32.totalorder %s45, 1
      %p388 = por %p386, %p387
      %p390 = scmp.ne.s32.totalorder %s375, %s389
      %p391 = scmp.eq.s32.totalorder %s45, 0
      %p392 = por %p390, %p391
      %s394 = sadd.s32 %s393, 1
      %p397 = scmp.eq.s32.totalorder %s39, 1
      %p398 = scmp.ne.s32.totalorder %s393, %s395
      %p399 = scmp.eq.s32.totalorder %s39, 0
      %p400 = por %p398, %p399
      %p401 = scmp.ne.s32.totalorder %s393, %s395
      %p402 = scmp.eq.s32.totalorder %s44, 1
      %p403 = por %p401, %p402
      %p404 = scmp.ne.s32.totalorder %s395, %s396
      %p405 = scmp.eq.s32.totalorder %s44, 0
      %p406 = por %p404, %p405
      %p407 = scmp.ne.s32.totalorder %s395, %s396
      %p408 = scmp.eq.s32.totalorder %s45, 1
      %p409 = por %p407, %p408
      %p411 = scmp.ne.s32.totalorder %s396, %s410
      %p412 = scmp.eq.s32.totalorder %s45, 0
      %p413 = por %p411, %p412
      %s415 = sadd.s32 %s414, 1
      %p418 = scmp.eq.s32.totalorder %s39, 1
      %p419 = scmp.ne.s32.totalorder %s414, %s416
      %p420 = scmp.eq.s32.totalorder %s39, 0
      %p421 = por %p419, %p420
      %p422 = scmp.ne.s32.totalorder %s414, %s416
      %p423 = scmp.eq.s32.totalorder %s44, 1
      %p424 = por %p422, %p423
      %p425 = scmp.ne.s32.totalorder %s416, %s417
      %p426 = scmp.eq.s32.totalorder %s44, 0
      %p427 = por %p425, %p426
      %p428 = scmp.ne.s32.totalorder %s416, %s417
      %p429 = scmp.eq.s32.totalorder %s45, 1
      %p430 = por %p428, %p429
      %p432 = scmp.ne.s32.totalorder %s417, %s431
      %p433 = scmp.eq.s32.totalorder %s45, 0
      %p434 = por %p432, %p433
      %s436 = sadd.s32 %s435, 1
      %p439 = scmp.eq.s32.totalorder %s39, 1
      %p440 = scmp.ne.s32.totalorder %s435, %s437
      %p441 = scmp.eq.s32.totalorder %s39, 0
      %p442 = por %p440, %p441
      %p443 = scmp.ne.s32.totalorder %s435, %s437
      %p444 = scmp.eq.s32.totalorder %s44, 1
      %p445 = por %p443, %p444
      %p446 = scmp.ne.s32.totalorder %s437, %s438
      %p447 = scmp.eq.s32.totalorder %s44, 0
      %p448 = por %p446, %p447
      %p449 = scmp.ne.s32.totalorder %s437, %s438
      %p450 = scmp.eq.s32.totalorder %s45, 1
      %p451 = por %p449, %p450
      %p453 = scmp.ne.s32.totalorder %s438, %s452
      %p454 = scmp.eq.s32.totalorder %s45, 0
      %p455 = por %p453, %p454
      %s457 = sadd.s32 %s456, 1
      %p460 = scmp.eq.s32.totalorder %s39, 1
      %p461 = scmp.ne.s32.totalorder %s456, %s458
      %p462 = scmp.eq.s32.totalorder %s39, 0
      %p463 = por %p461, %p462
      %p464 = scmp.ne.s32.totalorder %s456, %s458
      %p465 = scmp.eq.s32.totalorder %s44, 1
      %p466 = por %p464, %p465
      %p467 = scmp.ne.s32.totalorder %s458, %s459
      %p468 = scmp.eq.s32.totalorder %s44, 0
      %p469 = por %p467, %p468
      %p470 = scmp.ne.s32.totalorder %s458, %s459
      %p471 = scmp.eq.s32.totalorder %s45, 1
      %p472 = por %p470, %p471
      %p474 = scmp.ne.s32.totalorder %s459, %s473
      %p475 = scmp.eq.s32.totalorder %s45, 0
      %p476 = por %p474, %p475
      %s477 = ssub.s32 %s39, %s46
      %p478 = scmp.eq.s32.totalorder %s477, 0
      %s480 = sadd.s32 %s479, 1
      %s481 = scalar_select %p478, %s479, %s480
      %p484 = pneg %p478
      %p485 = scmp.eq.s32.totalorder %s39, 1
      %p486 = por %p484, %p485
      %p487 = scmp.ne.s32.totalorder %s479, %s482
      %p488 = scmp.eq.s32.totalorder %s39, 0
      %p489 = por %p487, %p488
      %p490 = scmp.ne.s32.totalorder %s479, %s482
      %p491 = scmp.eq.s32.totalorder %s44, 1
      %p492 = por %p490, %p491
      %p493 = scmp.ne.s32.totalorder %s482, %s483
      %p494 = scmp.eq.s32.totalorder %s44, 0
      %p495 = por %p493, %p494
      %p496 = scmp.ne.s32.totalorder %s482, %s483
      %p497 = scmp.eq.s32.totalorder %s45, 1
      %p498 = por %p496, %p497
      %p500 = scmp.ne.s32.totalorder %s483, %s499
      %p501 = scmp.eq.s32.totalorder %s45, 0
      %p502 = por %p500, %p501
      %p503 = scmp.le.s32.totalorder 1, %s39
      %p504 = scmp.lt.s32.totalorder %s39, 3
      %p505 = pnand %p503, %p504
      %p506 = pneg %p505
      // Predicated region
      $region9: #{tpu_custom_call.1} parent=5 // pred_check
        _
      $region10: #{tpu_custom_call.1} parent=5 // pred_check_branch
        %508 = sbr.rel (%p505) target = $region12
      $region11: #{tpu_custom_call.1} parent=5 // pred_region
        %s509 = ssub.s32 %s39, 1
        // Predicated region
        $region13: #{tpu_custom_call.1} parent=11 // pred_check
          %p510 = pneg %p112
        $region14: #{tpu_custom_call.1} parent=11 // pred_check_branch
          %512 = sbr.rel (%p510) target = $region16
        $region15: #{tpu_custom_call.1} parent=11 // pred_region
          %s514 = ssub.s32 256, 256
          %515 = vsyncadd [#allocation6], %s514
          %s516 = sshll.u32 [#allocation7], 4
          %s517 = int_to_ptr.vmem [resolvable:$true] %s516
          %522 = dma.hbm_to_vmem [thread:$0]  %s2, 256, %s517, [#allocation6], 64, 64, 4
        $region16: #{tpu_custom_call.1} parent=11 // pred_fallthru
          _
        // Predicated region
        $region17: #{tpu_custom_call.1} parent=11 // pred_check
          %p523 = pneg %p133
        $region18: #{tpu_custom_call.1} parent=11 // pred_check_branch
          %525 = sbr.rel (%p523) target = $region20
        $region19: #{tpu_custom_call.1} parent=11 // pred_region
          _
        $region20: #{tpu_custom_call.1} parent=11 // pred_fallthru
          _
        // Predicated region
        $region21: #{tpu_custom_call.1} parent=11 // pred_check
          %p526 = pneg %p154
        $region22: #{tpu_custom_call.1} parent=11 // pred_check_branch
          %528 = sbr.rel (%p526) target = $region24
        $region23: #{tpu_custom_call.1} parent=11 // pred_region
          %s530 = ssub.s32 256, 256
          %531 = vsyncadd [#allocation9], %s530
          %s532 = sshll.u32 [#allocation8], 4
          %s533 = int_to_ptr.vmem [resolvable:$true] %s532
          %538 = dma.hbm_to_vmem [thread:$0]  %s4, 256, %s533, [#allocation9], 64, 64, 4
        $region24: #{tpu_custom_call.1} parent=11 // pred_fallthru
          _
        // Predicated region
        $region25: #{tpu_custom_call.1} parent=11 // pred_check
          %p539 = pneg %p175
        $region26: #{tpu_custom_call.1} parent=11 // pred_check_branch
          %541 = sbr.rel (%p539) target = $region28
        $region27: #{tpu_custom_call.1} parent=11 // pred_region
          %s543 = ssub.s32 16, 16
          %544 = vsyncadd [#allocation9], %s543
          %s546 = sshll.u32 [#allocation10], 4
          %s547 = int_to_ptr.vmem [resolvable:$true] %s546
          %549 = dma.hbm_to_vmem [thread:$0]  %s5, 16, %s547, [#allocation9]
        $region28: #{tpu_custom_call.1} parent=11 // pred_fallthru
          _
        // Predicated region
        $region29: #{tpu_custom_call.1} parent=11 // pred_check
          %p550 = pneg %p196
        $region30: #{tpu_custom_call.1} parent=11 // pred_check_branch
          %552 = sbr.rel (%p550) target = $region32
        $region31: #{tpu_custom_call.1} parent=11 // pred_region
          %s554 = ssub.s32 16, 16
          %555 = vsyncadd [#allocation12], %s554
          %s557 = sshll.u32 [#allocation11], 4
          %s558 = int_to_ptr.vmem [resolvable:$true] %s557
          %560 = dma.hbm_to_vmem [thread:$0]  %s6, 16, %s558, [#allocation12]
        $region32: #{tpu_custom_call.1} parent=11 // pred_fallthru
          _
        // Predicated region
        $region33: #{tpu_custom_call.1} parent=11 // pred_check
          %p561 = pneg %p217
        $region34: #{tpu_custom_call.1} parent=11 // pred_check_branch
          %563 = sbr.rel (%p561) target = $region36
        $region35: #{tpu_custom_call.1} parent=11 // pred_region
          %s565 = ssub.s32 16, 16
          %566 = vsyncadd [#allocation12], %s565
          %s568 = sshll.u32 [#allocation13], 4
          %s569 = int_to_ptr.vmem [resolvable:$true] %s568
          %571 = dma.hbm_to_vmem [thread:$0]  %s7, 16, %s569, [#allocation12]
        $region36: #{tpu_custom_call.1} parent=11 // pred_fallthru
          _
        // Predicated region
        $region37: #{tpu_custom_call.1} parent=11 // pred_check
          %p572 = pneg %p238
        $region38: #{tpu_custom_call.1} parent=11 // pred_check_branch
          %574 = sbr.rel (%p572) target = $region40
        $region39: #{tpu_custom_call.1} parent=11 // pred_region
          _
        $region40: #{tpu_custom_call.1} parent=11 // pred_fallthru
          _
        // Predicated region
        $region41: #{tpu_custom_call.1} parent=11 // pred_check
          %p575 = pneg %p259
        $region42: #{tpu_custom_call.1} parent=11 // pred_check_branch
          %577 = sbr.rel (%p575) target = $region44
        $region43: #{tpu_custom_call.1} parent=11 // pred_region
          %s579 = ssub.s32 16, 16
          %580 = vsyncadd [#allocation15], %s579
          %s582 = sshll.u32 [#allocation14], 4
          %s583 = int_to_ptr.vmem [resolvable:$true] %s582
          %585 = dma.hbm_to_vmem [thread:$0]  %s9, 16, %s583, [#allocation15]
        $region44: #{tpu_custom_call.1} parent=11 // pred_fallthru
          _
        // Predicated region
        $region45: #{tpu_custom_call.1} parent=11 // pred_check
          %p586 = pneg %p280
        $region46: #{tpu_custom_call.1} parent=11 // pred_check_branch
          %588 = sbr.rel (%p586) target = $region48
        $region47: #{tpu_custom_call.1} parent=11 // pred_region
          _
        $region48: #{tpu_custom_call.1} parent=11 // pred_fallthru
          _
        // Predicated region
        $region49: #{tpu_custom_call.1} parent=11 // pred_check
          %p589 = pneg %p301
        $region50: #{tpu_custom_call.1} parent=11 // pred_check_branch
          %591 = sbr.rel (%p589) target = $region52
        $region51: #{tpu_custom_call.1} parent=11 // pred_region
          %s593 = ssub.s32 16, 16
          %594 = vsyncadd [#allocation15], %s593
          %s596 = sshll.u32 [#allocation16], 4
          %s597 = int_to_ptr.vmem [resolvable:$true] %s596
          %599 = dma.hbm_to_vmem [thread:$0]  %s11, 16, %s597, [#allocation15]
        $region52: #{tpu_custom_call.1} parent=11 // pred_fallthru
          _
        // Predicated region
        $region53: #{tpu_custom_call.1} parent=11 // pred_check
          %p600 = pneg %p322
        $region54: #{tpu_custom_call.1} parent=11 // pred_check_branch
          %602 = sbr.rel (%p600) target = $region56
        $region55: #{tpu_custom_call.1} parent=11 // pred_region
          %s604 = ssub.s32 256, 256
          %605 = vsyncadd [#allocation18], %s604
          %s606 = sshll.u32 [#allocation17], 4
          %s607 = int_to_ptr.vmem [resolvable:$true] %s606
          %612 = dma.hbm_to_vmem [thread:$0]  %s12, 256, %s607, [#allocation18], 64, 64, 4
        $region56: #{tpu_custom_call.1} parent=11 // pred_fallthru
          _
        // Predicated region
        $region57: #{tpu_custom_call.1} parent=11 // pred_check
          %p613 = pneg %p343
        $region58: #{tpu_custom_call.1} parent=11 // pred_check_branch
          %615 = sbr.rel (%p613) target = $region60
        $region59: #{tpu_custom_call.1} parent=11 // pred_region
          %s617 = ssub.s32 16, 16
          %618 = vsyncadd [#allocation18], %s617
          %s620 = sshll.u32 [#allocation19], 4
          %s621 = int_to_ptr.vmem [resolvable:$true] %s620
          %623 = dma.hbm_to_vmem [thread:$0]  %s13, 16, %s621, [#allocation18]
        $region60: #{tpu_custom_call.1} parent=11 // pred_fallthru
          _
        // Predicated region
        $region61: #{tpu_custom_call.1} parent=11 // pred_check
          %p624 = pneg %p364
        $region62: #{tpu_custom_call.1} parent=11 // pred_check_branch
          %626 = sbr.rel (%p624) target = $region64
        $region63: #{tpu_custom_call.1} parent=11 // pred_region
          _
        $region64: #{tpu_custom_call.1} parent=11 // pred_fallthru
          _
        // Predicated region
        $region65: #{tpu_custom_call.1} parent=11 // pred_check
          %p627 = pneg %p385
        $region66: #{tpu_custom_call.1} parent=11 // pred_check_branch
          %629 = sbr.rel (%p627) target = $region68
        $region67: #{tpu_custom_call.1} parent=11 // pred_region
          _
        $region68: #{tpu_custom_call.1} parent=11 // pred_fallthru
          _
        // Predicated region
        $region69: #{tpu_custom_call.1} parent=11 // pred_check
          %p630 = pneg %p406
        $region70: #{tpu_custom_call.1} parent=11 // pred_check_branch
          %632 = sbr.rel (%p630) target = $region72
        $region71: #{tpu_custom_call.1} parent=11 // pred_region
          _
        $region72: #{tpu_custom_call.1} parent=11 // pred_fallthru
          _
        // Predicated region
        $region73: #{tpu_custom_call.1} parent=11 // pred_check
          %p633 = pneg %p427
        $region74: #{tpu_custom_call.1} parent=11 // pred_check_branch
          %635 = sbr.rel (%p633) target = $region76
        $region75: #{tpu_custom_call.1} parent=11 // pred_region
          _
        $region76: #{tpu_custom_call.1} parent=11 // pred_fallthru
          _
        // Predicated region
        $region77: #{tpu_custom_call.1} parent=11 // pred_check
          %p636 = pneg %p448
        $region78: #{tpu_custom_call.1} parent=11 // pred_check_branch
          %638 = sbr.rel (%p636) target = $region80
        $region79: #{tpu_custom_call.1} parent=11 // pred_region
          _
        $region80: #{tpu_custom_call.1} parent=11 // pred_fallthru
          _
        // Predicated region
        $region81: #{tpu_custom_call.1} parent=11 // pred_check
          %p639 = pneg %p469
        $region82: #{tpu_custom_call.1} parent=11 // pred_check_branch
          %641 = sbr.rel (%p639) target = $region84
        $region83: #{tpu_custom_call.1} parent=11 // pred_region
          _
        $region84: #{tpu_custom_call.1} parent=11 // pred_fallthru
          _
      $region12: #{tpu_custom_call.1} parent=5 // pred_fallthru
        _
      %p642 = scmp.lt.s32.totalorder %s39, 2
      // Predicated region
      $region85: #{tpu_custom_call.1} parent=5 // pred_check
        %p643 = pneg %p642
      $region86: #{tpu_custom_call.1} parent=5 // pred_check_branch
        %645 = sbr.rel (%p643) target = $region88
      $region87: #{tpu_custom_call.1} parent=5 // pred_region
        // Predicated region
        $region89: #{tpu_custom_call.1} parent=87 // pred_check
          %p646 = pneg %p59
        $region90: #{tpu_custom_call.1} parent=87 // pred_check_branch
          %648 = sbr.rel (%p646) target = $region92
        $region91: #{tpu_custom_call.1} parent=87 // pred_region
          %s649 = sand.u32 %s49, 1
          %s650 = scalar_lea.sflag [#allocation3], %s649
          %s651 = sand.u32 %s49, 1
          %s652 = smul.addr %s651, 8
          %s653 = scalar_lea.vmem [#allocation2], %s652
          %s655 = ssub.s32 128, 128
          %656 = vsyncadd %s650, %s655
          %s657 = smul.addr %s39, 128
          %s658 = scalar_lea.hbm %s0, %s657
          %s660 = sshll.u32 %s653, 4
          %s661 = int_to_ptr.vmem [resolvable:$true] %s660
          %663 = dma.hbm_to_vmem [thread:$0]  %s658, 128, %s661, %s650
        $region92: #{tpu_custom_call.1} parent=87 // pred_fallthru
          _
        // Predicated region
        $region93: #{tpu_custom_call.1} parent=87 // pred_check
          %p664 = pneg %p85
        $region94: #{tpu_custom_call.1} parent=87 // pred_check_branch
          %666 = sbr.rel (%p664) target = $region96
        $region95: #{tpu_custom_call.1} parent=87 // pred_region
          %s667 = sand.u32 %s39, 1
          %s668 = scalar_lea.sflag [#allocation6], %s667
          %s669 = sand.u32 %s75, 1
          %s670 = smul.addr %s669, 8
          %s671 = scalar_lea.vmem [#allocation5], %s670
          %s673 = ssub.s32 128, 128
          %674 = vsyncadd %s668, %s673
          %s675 = smul.addr %s39, 128
          %s676 = scalar_lea.hbm %s1, %s675
          %s678 = sshll.u32 %s671, 4
          %s679 = int_to_ptr.vmem [resolvable:$true] %s678
          %681 = dma.hbm_to_vmem [thread:$0]  %s676, 128, %s679, %s668
        $region96: #{tpu_custom_call.1} parent=87 // pred_fallthru
          _
      $region88: #{tpu_custom_call.1} parent=5 // pred_fallthru
        _
      %p682 = scmp.le.s32.totalorder 1, %s39
      %p683 = scmp.lt.s32.totalorder %s39, 3
      %p684 = pnand %p682, %p683
      %p685 = pneg %p684
      // Predicated region
      $region97: #{tpu_custom_call.1} parent=5 // pred_check
        _
      $region98: #{tpu_custom_call.1} parent=5 // pred_check_branch
        %687 = sbr.rel (%p684) target = $region100
      $region99: #{tpu_custom_call.1} parent=5 // pred_region
        %s688 = ssub.s32 %s39, 1
        %s689 = sand.u32 %s52, 1
        %s690 = scalar_lea.sflag [#allocation3], %s689
        %s691 = sand.u32 %s52, 1
        %s692 = smul.addr %s691, 8
        %s693 = scalar_lea.vmem [#allocation2], %s692
        // Predicated region
        $region101: #{tpu_custom_call.1} parent=99 // pred_check
          %p694 = pneg %p65
        $region102: #{tpu_custom_call.1} parent=99 // pred_check_branch
          %696 = sbr.rel (%p694) target = $region104
        $region103: #{tpu_custom_call.1} parent=99 // pred_region
          %697 = dma.done %s690, 128
        $region104: #{tpu_custom_call.1} parent=99 // pred_fallthru
          _
        %s698 = sand.u32 %s44, 1
        %s699 = scalar_lea.sflag [#allocation6], %s698
        %s700 = sand.u32 %s78, 1
        %s701 = smul.addr %s700, 8
        %s702 = scalar_lea.vmem [#allocation5], %s701
        // Predicated region
        $region105: #{tpu_custom_call.1} parent=99 // pred_check
          %p703 = pneg %p91
        $region106: #{tpu_custom_call.1} parent=99 // pred_check_branch
          %705 = sbr.rel (%p703) target = $region108
        $region107: #{tpu_custom_call.1} parent=99 // pred_region
          %706 = dma.done %s699, 128
        $region108: #{tpu_custom_call.1} parent=99 // pred_fallthru
          _
        // Predicated region
        $region109: #{tpu_custom_call.1} parent=99 // pred_check
          %p707 = pneg %p112
        $region110: #{tpu_custom_call.1} parent=99 // pred_check_branch
          %709 = sbr.rel (%p707) target = $region112
        $region111: #{tpu_custom_call.1} parent=99 // pred_region
          %710 = dma.done [#allocation6], 256
        $region112: #{tpu_custom_call.1} parent=99 // pred_fallthru
          _
        // Predicated region
        $region113: #{tpu_custom_call.1} parent=99 // pred_check
          %p711 = pneg %p154
        $region114: #{tpu_custom_call.1} parent=99 // pred_check_branch
          %713 = sbr.rel (%p711) target = $region116
        $region115: #{tpu_custom_call.1} parent=99 // pred_region
          %714 = dma.done [#allocation9], 256
        $region116: #{tpu_custom_call.1} parent=99 // pred_fallthru
          _
        // Predicated region
        $region117: #{tpu_custom_call.1} parent=99 // pred_check
          %p715 = pneg %p175
        $region118: #{tpu_custom_call.1} parent=99 // pred_check_branch
          %717 = sbr.rel (%p715) target = $region120
        $region119: #{tpu_custom_call.1} parent=99 // pred_region
          %718 = dma.done [#allocation9], 16
        $region120: #{tpu_custom_call.1} parent=99 // pred_fallthru
          _
        // Predicated region
        $region121: #{tpu_custom_call.1} parent=99 // pred_check
          %p719 = pneg %p196
        $region122: #{tpu_custom_call.1} parent=99 // pred_check_branch
          %721 = sbr.rel (%p719) target = $region124
        $region123: #{tpu_custom_call.1} parent=99 // pred_region
          %722 = dma.done [#allocation12], 16
        $region124: #{tpu_custom_call.1} parent=99 // pred_fallthru
          _
        // Predicated region
        $region125: #{tpu_custom_call.1} parent=99 // pred_check
          %p723 = pneg %p217
        $region126: #{tpu_custom_call.1} parent=99 // pred_check_branch
          %725 = sbr.rel (%p723) target = $region128
        $region127: #{tpu_custom_call.1} parent=99 // pred_region
          %726 = dma.done [#allocation12], 16
        $region128: #{tpu_custom_call.1} parent=99 // pred_fallthru
          _
        // Predicated region
        $region129: #{tpu_custom_call.1} parent=99 // pred_check
          %p727 = pneg %p259
        $region130: #{tpu_custom_call.1} parent=99 // pred_check_branch
          %729 = sbr.rel (%p727) target = $region132
        $region131: #{tpu_custom_call.1} parent=99 // pred_region
          %730 = dma.done [#allocation15], 16
        $region132: #{tpu_custom_call.1} parent=99 // pred_fallthru
          _
        // Predicated region
        $region133: #{tpu_custom_call.1} parent=99 // pred_check
          %p731 = pneg %p301
        $region134: #{tpu_custom_call.1} parent=99 // pred_check_branch
          %733 = sbr.rel (%p731) target = $region136
        $region135: #{tpu_custom_call.1} parent=99 // pred_region
          %734 = dma.done [#allocation15], 16
        $region136: #{tpu_custom_call.1} parent=99 // pred_fallthru
          _
        // Predicated region
        $region137: #{tpu_custom_call.1} parent=99 // pred_check
          %p735 = pneg %p322
        $region138: #{tpu_custom_call.1} parent=99 // pred_check_branch
          %737 = sbr.rel (%p735) target = $region140
        $region139: #{tpu_custom_call.1} parent=99 // pred_region
          %738 = dma.done [#allocation18], 256
        $region140: #{tpu_custom_call.1} parent=99 // pred_fallthru
          _
        // Predicated region
        $region141: #{tpu_custom_call.1} parent=99 // pred_check
          %p739 = pneg %p343
        $region142: #{tpu_custom_call.1} parent=99 // pred_check_branch
          %741 = sbr.rel (%p739) target = $region144
        $region143: #{tpu_custom_call.1} parent=99 // pred_region
          %742 = dma.done [#allocation18], 16
        $region144: #{tpu_custom_call.1} parent=99 // pred_fallthru
          _
        %s743 = sand.u32 %s52, 1
        %s744 = scalar_lea.sflag [#allocation3], %s743
        %s745 = sand.u32 %s52, 1
        %s746 = smul.addr %s745, 8
        %s747 = scalar_lea.vmem [#allocation2], %s746
        %p748 = pneg %p65
        %p749 = pneg %p62
        %s750 = sand.u32 %s44, 1
        %s751 = scalar_lea.sflag [#allocation6], %s750
        %s752 = sand.u32 %s78, 1
        %s753 = smul.addr %s752, 8
        %s754 = scalar_lea.vmem [#allocation5], %s753
        %p755 = pneg %p91
        %p756 = pneg %p88
        %p757 = pneg %p112
        %p758 = pneg %p109
        %p759 = pneg %p133
        %p760 = pneg %p130
        %p761 = pneg %p154
        %p762 = pneg %p151
        %p763 = pneg %p175
        %p764 = pneg %p172
        %p765 = pneg %p196
        %p766 = pneg %p193
        %p767 = pneg %p217
        %p768 = pneg %p214
        %p769 = pneg %p238
        %p770 = pneg %p235
        %p771 = pneg %p259
        %p772 = pneg %p256
        %p773 = pneg %p280
        %p774 = pneg %p277
        %p775 = pneg %p301
        %p776 = pneg %p298
        %p777 = pneg %p322
        %p778 = pneg %p319
        %p779 = pneg %p343
        %p780 = pneg %p340
        %p781 = pneg %p364
        %p782 = pneg %p361
        %p783 = pneg %p385
        %p784 = pneg %p382
        %p785 = pneg %p406
        %p786 = pneg %p403
        %p787 = pneg %p427
        %p788 = pneg %p424
        %p789 = pneg %p448
        %p790 = pneg %p445
        %p791 = pneg %p469
        %p792 = pneg %p466
        %p793 = pneg %p495
        %p794 = pneg %p492
        %s795 = sand.u32 %s482, 1
        %s796 = scalar_lea.sflag [#allocation4], %s795
        %s797 = sand.u32 %s482, 1
        %s798 = smul.addr %s797, 8
        %s799 = scalar_lea.vmem [#allocation20], %s798
        %v801 = vld [vmem:[%s693] sm:$0xff]
        %v802 = vld [vmem:[%s702] sm:$0xff]
        %v803 = vpack.c.bf16 %v801, %v801
        %v804 = vld [vmem:[#allocation7] sm:$0xf]
        %v805 = vld [vmem:[#allocation7 + $0x4] sm:$0xf]
        %v806 = vld [vmem:[#allocation7 + $0x8] sm:$0xf]
        %v807 = vld [vmem:[#allocation7 + $0xc] sm:$0xf]
        %v808 = vld [vmem:[%s3] sm:$0x1]
        %v810 = vlaneseq
        %v811 = vshrl.u32 %v810, 7
        %v812 = vsub.s32 0, %v811
        %v813 = vrot.slane %v808, %v812
        %v819 = vunpack.c.l.b16 %v804
        %v820 = vunpack.c.l.b16 %v805
        %v821 = vunpack.c.l.b16 %v806
        %v822 = vunpack.c.l.b16 %v807
        %v823 = vpack.c.b16 %v820, %v819
        %v824 = vpack.c.b16 %v822, %v821
        %vm827 = vcmask 261120
        %v829 = vsel %vm827, %v803, 0
        %831 = vmatprep.subr.bf16.mxu0 0
        %832 = vmatpush1.bf16.msra.mxu0 %v823
        %833 = vmatprep.subr.bf16.mxu0 0
        %834 = vmatpush1.bf16.msra.mxu0 %v824
        %835 = vmatprep.subr.bf16.mxu0 0
        %836 = vmatpush1.bf16.msra.mxu0 0
        %837 = vmatprep.subr.bf16.mxu0 0
        %838 = vmatpush1.bf16.msra.mxu0 0
        %839 = vmatprep.subr.bf16.mxu0 0
        %840 = vmatpush1.bf16.msra.mxu0 0
        %841 = vmatprep.subr.bf16.mxu0 0
        %842 = vmatpush1.bf16.msra.mxu0 0
        %843 = vmatprep.subr.bf16.mxu0 0
        %844 = vmatpush1.bf16.msra.mxu0 0
        %845 = vmatprep.subr.bf16.mxu0 0
        %846 = vmatpush1.bf16.msra.mxu0 0
        %847 = vmatprep.subr.bf16.mxu0 0
        %848 = vmatpush1.bf16.msra.mxu0 0
        %849 = vmatprep.subr.bf16.mxu0 0
        %850 = vmatpush1.bf16.msra.mxu0 0
        %851 = vmatprep.subr.bf16.mxu0 0
        %852 = vmatpush1.bf16.msra.mxu0 0
        %853 = vmatprep.subr.bf16.mxu0 0
        %854 = vmatpush1.bf16.msra.mxu0 0
        %855 = vmatprep.subr.bf16.mxu0 0
        %856 = vmatpush1.bf16.msra.mxu0 0
        %857 = vmatprep.subr.bf16.mxu0 0
        %858 = vmatpush1.bf16.msra.mxu0 0
        %859 = vmatprep.subr.bf16.mxu0 0
        %860 = vmatpush1.bf16.msra.mxu0 0
        %861 = vmatprep.subr.bf16.mxu0 0
        %862 = vmatpush1.bf16.msra.mxu0 0
        %863 = vmatprep.mubr.bf16.mxu0 0
        %864 = vmatmul.mubr.bf16.gmra.mrb[0].mxu0 %v829
        %v865 = vpop.f32.mrb[0].mxu0
        %v866 = vadd.f32 %v813, %v865
        %v867 = vpop.f32.mrb[0].mxu0
        %v868 = vpop.f32.mrb[0].mxu0
        %v869 = vpop.f32.mrb[0].mxu0
        %870 = vdwg.mxu0
        %v871 = vld [vmem:[#allocation8] sm:$0xf]
        %v872 = vld [vmem:[#allocation8 + $0x4] sm:$0xf]
        %v873 = vld [vmem:[#allocation8 + $0x8] sm:$0xf]
        %v874 = vld [vmem:[#allocation8 + $0xc] sm:$0xf]
        %876 = vrot.lane.b32.xlu0 %v866, 120
        %v877 = vpop.permute.xlu0 %876
        %879 = vrot.lane.b32.xlu0 %v866, 112
        %v880 = vpop.permute.xlu0 %879
        %882 = vrot.lane.b32.xlu0 %v866, 104
        %v883 = vpop.permute.xlu0 %882
        %v885 = vcombine.low %v866, %v880
        %v886 = vcombine.high %v866, %v880
        %v888 = vunpack.c.l.s4 1983009808
        %v889 = vunpack.c.0.s8 %v888
        %v890 = vlaneseq
        %v891 = vshrl.u32 %v890, 7
        %v892 = vsub.s32 %v889, %v891
        %v893 = vrot.slane %v885, %v892
        %v895 = vunpack.c.l.s4 1983009808
        %v896 = vunpack.c.0.s8 %v895
        %v897 = vlaneseq
        %v898 = vshrl.u32 %v897, 7
        %v899 = vsub.s32 %v896, %v898
        %v900 = vrot.slane %v886, %v899
        %v901 = vcombine.low %v877, %v883
        %v902 = vcombine.high %v877, %v883
        %v904 = vunpack.c.l.s4 1983009808
        %v905 = vunpack.c.0.s8 %v904
        %v906 = vlaneseq
        %v907 = vshrl.u32 %v906, 7
        %v908 = vsub.s32 %v905, %v907
        %v909 = vrot.slane %v901, %v908
        %v911 = vunpack.c.l.s4 1983009808
        %v912 = vunpack.c.0.s8 %v911
        %v913 = vlaneseq
        %v914 = vshrl.u32 %v913, 7
        %v915 = vsub.s32 %v912, %v914
        %v916 = vrot.slane %v902, %v915
        %v917 = vcombine.low %v893, %v909
        %v918 = vcombine.high %v893, %v909
        %v920 = vunpack.c.l.s4 1934713408
        %v921 = vunpack.c.0.s8 %v920
        %v922 = vlaneseq
        %v923 = vshrl.u32 %v922, 7
        %v924 = vsub.s32 %v921, %v923
        %v925 = vrot.slane %v917, %v924
        %v927 = vunpack.c.l.s4 1934713408
        %v928 = vunpack.c.0.s8 %v927
        %v929 = vlaneseq
        %v930 = vshrl.u32 %v929, 7
        %v931 = vsub.s32 %v928, %v930
        %v932 = vrot.slane %v918, %v931
        %v933 = vcombine.low %v900, %v916
        %v934 = vcombine.high %v900, %v916
        %v936 = vunpack.c.l.s4 1934713408
        %v937 = vunpack.c.0.s8 %v936
        %v938 = vlaneseq
        %v939 = vshrl.u32 %v938, 7
        %v940 = vsub.s32 %v937, %v939
        %v941 = vrot.slane %v933, %v940
        %v943 = vunpack.c.l.s4 1934713408
        %v944 = vunpack.c.0.s8 %v943
        %v945 = vlaneseq
        %v946 = vshrl.u32 %v945, 7
        %v947 = vsub.s32 %v944, %v946
        %v948 = vrot.slane %v934, %v947
        %v949 = vcombine.high %v925, 0.0
        %v950 = vcombine.high %v932, 0.0
        %v951 = vcombine.high %v941, 0.0
        %v952 = vcombine.high %v948, 0.0
        %v953 = vcombine.low %v925, %v932
        %v955 = vunpack.c.l.s4 1983009808
        %v956 = vunpack.c.0.s8 %v955
        %v957 = vlaneseq
        %v958 = vshrl.u32 %v957, 7
        %v959 = vsub.s32 %v956, %v958
        %v960 = vrot.slane %v953, %v959
        %v961 = vcombine.low %v949, %v950
        %v963 = vunpack.c.l.s4 1983009808
        %v964 = vunpack.c.0.s8 %v963
        %v965 = vlaneseq
        %v966 = vshrl.u32 %v965, 7
        %v967 = vsub.s32 %v964, %v966
        %v968 = vrot.slane %v961, %v967
        %v969 = vcombine.low %v941, %v948
        %v971 = vunpack.c.l.s4 1983009808
        %v972 = vunpack.c.0.s8 %v971
        %v973 = vlaneseq
        %v974 = vshrl.u32 %v973, 7
        %v975 = vsub.s32 %v972, %v974
        %v976 = vrot.slane %v969, %v975
        %v977 = vcombine.low %v951, %v952
        %v979 = vunpack.c.l.s4 1983009808
        %v980 = vunpack.c.0.s8 %v979
        %v981 = vlaneseq
        %v982 = vshrl.u32 %v981, 7
        %v983 = vsub.s32 %v980, %v982
        %v984 = vrot.slane %v977, %v983
        %v985 = vcombine.low %v960, %v968
        %v986 = vcombine.high %v960, %v968
        %v988 = vunpack.c.l.s4 1934713408
        %v989 = vunpack.c.0.s8 %v988
        %v990 = vlaneseq
        %v991 = vshrl.u32 %v990, 7
        %v992 = vsub.s32 %v989, %v991
        %v993 = vrot.slane %v985, %v992
        %v995 = vunpack.c.l.s4 1934713408
        %v996 = vunpack.c.0.s8 %v995
        %v997 = vlaneseq
        %v998 = vshrl.u32 %v997, 7
        %v999 = vsub.s32 %v996, %v998
        %v1000 = vrot.slane %v986, %v999
        %v1001 = vcombine.low %v976, %v984
        %v1002 = vcombine.high %v976, %v984
        %v1004 = vunpack.c.l.s4 1934713408
        %v1005 = vunpack.c.0.s8 %v1004
        %v1006 = vlaneseq
        %v1007 = vshrl.u32 %v1006, 7
        %v1008 = vsub.s32 %v1005, %v1007
        %v1009 = vrot.slane %v1001, %v1008
        %v1011 = vunpack.c.l.s4 1934713408
        %v1012 = vunpack.c.0.s8 %v1011
        %v1013 = vlaneseq
        %v1014 = vshrl.u32 %v1013, 7
        %v1015 = vsub.s32 %v1012, %v1014
        %v1016 = vrot.slane %v1002, %v1015
        %v1017 = vcombine.low %v993, %v1009
        %v1018 = vcombine.high %v993, %v1009
        %v1019 = vcombine.low %v1000, %v1016
        %v1020 = vcombine.high %v1000, %v1016
        %v1021 = vpack.c.bf16 %v1017, %v1017
        %v1022 = vpack.c.bf16 %v1018, %v1018
        %v1023 = vpack.c.bf16 %v1019, %v1019
        %v1024 = vpack.c.bf16 %v1020, %v1020
        %1025 = vrot.lane.b32.xlu0 %v866, 96
        %v1026 = vpop.permute.xlu0 %1025
        %1027 = vrot.lane.b32.xlu0 %v877, 96
        %v1028 = vpop.permute.xlu0 %1027
        %1029 = vrot.lane.b32.xlu0 %v880, 96
        %v1030 = vpop.permute.xlu0 %1029
        %1031 = vrot.lane.b32.xlu0 %v883, 96
        %v1032 = vpop.permute.xlu0 %1031
        %v1037 = vcombine.low %v1026, %v1030
        %v1038 = vcombine.high %v1026, %v1030
        %v1040 = vunpack.c.l.s4 1983009808
        %v1041 = vunpack.c.0.s8 %v1040
        %v1042 = vlaneseq
        %v1043 = vshrl.u32 %v1042, 7
        %v1044 = vsub.s32 %v1041, %v1043
        %v1045 = vrot.slane %v1037, %v1044
        %v1047 = vunpack.c.l.s4 1983009808
        %v1048 = vunpack.c.0.s8 %v1047
        %v1049 = vlaneseq
        %v1050 = vshrl.u32 %v1049, 7
        %v1051 = vsub.s32 %v1048, %v1050
        %v1052 = vrot.slane %v1038, %v1051
        %v1053 = vcombine.low %v1028, %v1032
        %v1054 = vcombine.high %v1028, %v1032
        %v1056 = vunpack.c.l.s4 1983009808
        %v1057 = vunpack.c.0.s8 %v1056
        %v1058 = vlaneseq
        %v1059 = vshrl.u32 %v1058, 7
        %v1060 = vsub.s32 %v1057, %v1059
        %v1061 = vrot.slane %v1053, %v1060
        %v1063 = vunpack.c.l.s4 1983009808
        %v1064 = vunpack.c.0.s8 %v1063
        %v1065 = vlaneseq
        %v1066 = vshrl.u32 %v1065, 7
        %v1067 = vsub.s32 %v1064, %v1066
        %v1068 = vrot.slane %v1054, %v1067
        %v1069 = vcombine.low %v1045, %v1061
        %v1070 = vcombine.high %v1045, %v1061
        %v1072 = vunpack.c.l.s4 1934713408
        %v1073 = vunpack.c.0.s8 %v1072
        %v1074 = vlaneseq
        %v1075 = vshrl.u32 %v1074, 7
        %v1076 = vsub.s32 %v1073, %v1075
        %v1077 = vrot.slane %v1069, %v1076
        %v1079 = vunpack.c.l.s4 1934713408
        %v1080 = vunpack.c.0.s8 %v1079
        %v1081 = vlaneseq
        %v1082 = vshrl.u32 %v1081, 7
        %v1083 = vsub.s32 %v1080, %v1082
        %v1084 = vrot.slane %v1070, %v1083
        %v1085 = vcombine.low %v1052, %v1068
        %v1086 = vcombine.high %v1052, %v1068
        %v1088 = vunpack.c.l.s4 1934713408
        %v1089 = vunpack.c.0.s8 %v1088
        %v1090 = vlaneseq
        %v1091 = vshrl.u32 %v1090, 7
        %v1092 = vsub.s32 %v1089, %v1091
        %v1093 = vrot.slane %v1085, %v1092
        %v1095 = vunpack.c.l.s4 1934713408
        %v1096 = vunpack.c.0.s8 %v1095
        %v1097 = vlaneseq
        %v1098 = vshrl.u32 %v1097, 7
        %v1099 = vsub.s32 %v1096, %v1098
        %v1100 = vrot.slane %v1086, %v1099
        %v1101 = vcombine.high %v1077, 0.0
        %v1102 = vcombine.high %v1084, 0.0
        %v1103 = vcombine.high %v1093, 0.0
        %v1104 = vcombine.high %v1100, 0.0
        %v1105 = vcombine.low %v1077, %v1084
        %v1107 = vunpack.c.l.s4 1983009808
        %v1108 = vunpack.c.0.s8 %v1107
        %v1109 = vlaneseq
        %v1110 = vshrl.u32 %v1109, 7
        %v1111 = vsub.s32 %v1108, %v1110
        %v1112 = vrot.slane %v1105, %v1111
        %v1113 = vcombine.low %v1101, %v1102
        %v1115 = vunpack.c.l.s4 1983009808
        %v1116 = vunpack.c.0.s8 %v1115
        %v1117 = vlaneseq
        %v1118 = vshrl.u32 %v1117, 7
        %v1119 = vsub.s32 %v1116, %v1118
        %v1120 = vrot.slane %v1113, %v1119
        %v1121 = vcombine.low %v1093, %v1100
        %v1123 = vunpack.c.l.s4 1983009808
        %v1124 = vunpack.c.0.s8 %v1123
        %v1125 = vlaneseq
        %v1126 = vshrl.u32 %v1125, 7
        %v1127 = vsub.s32 %v1124, %v1126
        %v1128 = vrot.slane %v1121, %v1127
        %v1129 = vcombine.low %v1103, %v1104
        %v1131 = vunpack.c.l.s4 1983009808
        %v1132 = vunpack.c.0.s8 %v1131
        %v1133 = vlaneseq
        %v1134 = vshrl.u32 %v1133, 7
        %v1135 = vsub.s32 %v1132, %v1134
        %v1136 = vrot.slane %v1129, %v1135
        %v1137 = vcombine.low %v1112, %v1120
        %v1138 = vcombine.high %v1112, %v1120
        %v1140 = vunpack.c.l.s4 1934713408
        %v1141 = vunpack.c.0.s8 %v1140
        %v1142 = vlaneseq
        %v1143 = vshrl.u32 %v1142, 7
        %v1144 = vsub.s32 %v1141, %v1143
        %v1145 = vrot.slane %v1137, %v1144
        %v1147 = vunpack.c.l.s4 1934713408
        %v1148 = vunpack.c.0.s8 %v1147
        %v1149 = vlaneseq
        %v1150 = vshrl.u32 %v1149, 7
        %v1151 = vsub.s32 %v1148, %v1150
        %v1152 = vrot.slane %v1138, %v1151
        %v1153 = vcombine.low %v1128, %v1136
        %v1154 = vcombine.high %v1128, %v1136
        %v1156 = vunpack.c.l.s4 1934713408
        %v1157 = vunpack.c.0.s8 %v1156
        %v1158 = vlaneseq
        %v1159 = vshrl.u32 %v1158, 7
        %v1160 = vsub.s32 %v1157, %v1159
        %v1161 = vrot.slane %v1153, %v1160
        %v1163 = vunpack.c.l.s4 1934713408
        %v1164 = vunpack.c.0.s8 %v1163
        %v1165 = vlaneseq
        %v1166 = vshrl.u32 %v1165, 7
        %v1167 = vsub.s32 %v1164, %v1166
        %v1168 = vrot.slane %v1154, %v1167
        %v1169 = vcombine.low %v1145, %v1161
        %v1170 = vcombine.high %v1145, %v1161
        %v1171 = vcombine.low %v1152, %v1168
        %v1172 = vcombine.high %v1152, %v1168
        %v1173 = vpack.c.bf16 %v1169, %v1169
        %v1174 = vpack.c.bf16 %v1170, %v1170
        %v1175 = vpack.c.bf16 %v1171, %v1171
        %v1176 = vpack.c.bf16 %v1172, %v1172
        %1177 = vrot.lane.b32.xlu0 %v866, 64
        %v1178 = vpop.permute.xlu0 %1177
        %1179 = vrot.lane.b32.xlu0 %v877, 64
        %v1180 = vpop.permute.xlu0 %1179
        %1181 = vrot.lane.b32.xlu0 %v880, 64
        %v1182 = vpop.permute.xlu0 %1181
        %1183 = vrot.lane.b32.xlu0 %v883, 64
        %v1184 = vpop.permute.xlu0 %1183
        %v1189 = vcombine.low %v1178, %v1182
        %v1190 = vcombine.high %v1178, %v1182
        %v1192 = vunpack.c.l.s4 1983009808
        %v1193 = vunpack.c.0.s8 %v1192
        %v1194 = vlaneseq
        %v1195 = vshrl.u32 %v1194, 7
        %v1196 = vsub.s32 %v1193, %v1195
        %v1197 = vrot.slane %v1189, %v1196
        %v1199 = vunpack.c.l.s4 1983009808
        %v1200 = vunpack.c.0.s8 %v1199
        %v1201 = vlaneseq
        %v1202 = vshrl.u32 %v1201, 7
        %v1203 = vsub.s32 %v1200, %v1202
        %v1204 = vrot.slane %v1190, %v1203
        %v1205 = vcombine.low %v1180, %v1184
        %v1206 = vcombine.high %v1180, %v1184
        %v1208 = vunpack.c.l.s4 1983009808
        %v1209 = vunpack.c.0.s8 %v1208
        %v1210 = vlaneseq
        %v1211 = vshrl.u32 %v1210, 7
        %v1212 = vsub.s32 %v1209, %v1211
        %v1213 = vrot.slane %v1205, %v1212
        %v1215 = vunpack.c.l.s4 1983009808
        %v1216 = vunpack.c.0.s8 %v1215
        %v1217 = vlaneseq
        %v1218 = vshrl.u32 %v1217, 7
        %v1219 = vsub.s32 %v1216, %v1218
        %v1220 = vrot.slane %v1206, %v1219
        %v1221 = vcombine.low %v1197, %v1213
        %v1222 = vcombine.high %v1197, %v1213
        %v1224 = vunpack.c.l.s4 1934713408
        %v1225 = vunpack.c.0.s8 %v1224
        %v1226 = vlaneseq
        %v1227 = vshrl.u32 %v1226, 7
        %v1228 = vsub.s32 %v1225, %v1227
        %v1229 = vrot.slane %v1221, %v1228
        %v1231 = vunpack.c.l.s4 1934713408
        %v1232 = vunpack.c.0.s8 %v1231
        %v1233 = vlaneseq
        %v1234 = vshrl.u32 %v1233, 7
        %v1235 = vsub.s32 %v1232, %v1234
        %v1236 = vrot.slane %v1222, %v1235
        %v1237 = vcombine.low %v1204, %v1220
        %v1238 = vcombine.high %v1204, %v1220
        %v1240 = vunpack.c.l.s4 1934713408
        %v1241 = vunpack.c.0.s8 %v1240
        %v1242 = vlaneseq
        %v1243 = vshrl.u32 %v1242, 7
        %v1244 = vsub.s32 %v1241, %v1243
        %v1245 = vrot.slane %v1237, %v1244
        %v1247 = vunpack.c.l.s4 1934713408
        %v1248 = vunpack.c.0.s8 %v1247
        %v1249 = vlaneseq
        %v1250 = vshrl.u32 %v1249, 7
        %v1251 = vsub.s32 %v1248, %v1250
        %v1252 = vrot.slane %v1238, %v1251
        %v1253 = vcombine.high %v1229, 0.0
        %v1254 = vcombine.high %v1236, 0.0
        %v1255 = vcombine.high %v1245, 0.0
        %v1256 = vcombine.high %v1252, 0.0
        %v1257 = vcombine.low %v1229, %v1236
        %v1259 = vunpack.c.l.s4 1983009808
        %v1260 = vunpack.c.0.s8 %v1259
        %v1261 = vlaneseq
        %v1262 = vshrl.u32 %v1261, 7
        %v1263 = vsub.s32 %v1260, %v1262
        %v1264 = vrot.slane %v1257, %v1263
        %v1265 = vcombine.low %v1253, %v1254
        %v1267 = vunpack.c.l.s4 1983009808
        %v1268 = vunpack.c.0.s8 %v1267
        %v1269 = vlaneseq
        %v1270 = vshrl.u32 %v1269, 7
        %v1271 = vsub.s32 %v1268, %v1270
        %v1272 = vrot.slane %v1265, %v1271
        %v1273 = vcombine.low %v1245, %v1252
        %v1275 = vunpack.c.l.s4 1983009808
        %v1276 = vunpack.c.0.s8 %v1275
        %v1277 = vlaneseq
        %v1278 = vshrl.u32 %v1277, 7
        %v1279 = vsub.s32 %v1276, %v1278
        %v1280 = vrot.slane %v1273, %v1279
        %v1281 = vcombine.low %v1255, %v1256
        %v1283 = vunpack.c.l.s4 1983009808
        %v1284 = vunpack.c.0.s8 %v1283
        %v1285 = vlaneseq
        %v1286 = vshrl.u32 %v1285, 7
        %v1287 = vsub.s32 %v1284, %v1286
        %v1288 = vrot.slane %v1281, %v1287
        %v1289 = vcombine.low %v1264, %v1272
        %v1290 = vcombine.high %v1264, %v1272
        %v1292 = vunpack.c.l.s4 1934713408
        %v1293 = vunpack.c.0.s8 %v1292
        %v1294 = vlaneseq
        %v1295 = vshrl.u32 %v1294, 7
        %v1296 = vsub.s32 %v1293, %v1295
        %v1297 = vrot.slane %v1289, %v1296
        %v1299 = vunpack.c.l.s4 1934713408
        %v1300 = vunpack.c.0.s8 %v1299
        %v1301 = vlaneseq
        %v1302 = vshrl.u32 %v1301, 7
        %v1303 = vsub.s32 %v1300, %v1302
        %v1304 = vrot.slane %v1290, %v1303
        %v1305 = vcombine.low %v1280, %v1288
        %v1306 = vcombine.high %v1280, %v1288
        %v1308 = vunpack.c.l.s4 1934713408
        %v1309 = vunpack.c.0.s8 %v1308
        %v1310 = vlaneseq
        %v1311 = vshrl.u32 %v1310, 7
        %v1312 = vsub.s32 %v1309, %v1311
        %v1313 = vrot.slane %v1305, %v1312
        %v1315 = vunpack.c.l.s4 1934713408
        %v1316 = vunpack.c.0.s8 %v1315
        %v1317 = vlaneseq
        %v1318 = vshrl.u32 %v1317, 7
        %v1319 = vsub.s32 %v1316, %v1318
        %v1320 = vrot.slane %v1306, %v1319
        %v1321 = vcombine.low %v1297, %v1313
        %v1322 = vcombine.high %v1297, %v1313
        %v1323 = vcombine.low %v1304, %v1320
        %v1324 = vcombine.high %v1304, %v1320
        %v1325 = vpack.c.bf16 %v1321, %v1321
        %v1326 = vpack.c.bf16 %v1322, %v1322
        %v1327 = vpack.c.bf16 %v1323, %v1323
        %v1328 = vpack.c.bf16 %v1324, %v1324
        %vm1329 = vcmask 64512
        %v1331 = vsel %vm1329, %v1021, 0
        %v1334 = vsel %vm1329, %v1173, 0
        %1336 = vmatprep.subr.bf16.mxu0 0
        %1337 = vmatpush1.bf16.xpose.msra.mxu0 %v1334
        %1338 = vmatprep.subr.bf16.mxu0 0
        %1339 = vmatpush1.bf16.xpose.msra.mxu0 0
        %1340 = vmatprep.subr.bf16.mxu0 0
        %1341 = vmatpush1.bf16.xpose.msra.mxu0 0
        %1342 = vmatprep.subr.bf16.mxu0 0
        %1343 = vmatpush1.bf16.xpose.msra.mxu0 0
        %1344 = vmatprep.subr.bf16.mxu0 0
        %1345 = vmatpush1.bf16.xpose.msra.mxu0 0
        %1346 = vmatprep.subr.bf16.mxu0 0
        %1347 = vmatpush1.bf16.xpose.msra.mxu0 0
        %1348 = vmatprep.subr.bf16.mxu0 0
        %1349 = vmatpush1.bf16.xpose.msra.mxu0 0
        %1350 = vmatprep.subr.bf16.mxu0 0
        %1351 = vmatpush1.bf16.xpose.msra.mxu0 0
        %1352 = vmatprep.subr.bf16.mxu0 0
        %1353 = vmatpush1.bf16.xpose.msra.mxu0 0
        %1354 = vmatprep.subr.bf16.mxu0 0
        %1355 = vmatpush1.bf16.xpose.msra.mxu0 0
        %1356 = vmatprep.subr.bf16.mxu0 0
        %1357 = vmatpush1.bf16.xpose.msra.mxu0 0
        %1358 = vmatprep.subr.bf16.mxu0 0
        %1359 = vmatpush1.bf16.xpose.msra.mxu0 0
        %1360 = vmatprep.subr.bf16.mxu0 0
        %1361 = vmatpush1.bf16.xpose.msra.mxu0 0
        %1362 = vmatprep.subr.bf16.mxu0 0
        %1363 = vmatpush1.bf16.xpose.msra.mxu0 0
        %1364 = vmatprep.subr.bf16.mxu0 0
        %1365 = vmatpush1.bf16.xpose.msra.mxu0 0
        %1366 = vmatprep.subr.bf16.mxu0 0
        %1367 = vmatpush1.bf16.xpose.msra.mxu0 0
        %1368 = vmatprep.mubr.bf16.mxu0 0
        %1369 = vmatmul.mubr.bf16.gmra.mrb[0].mxu0 %v1331
        %v1370 = vpop.f32.mrb[0].mxu0
        %v1371 = vadd.f32 0.0, %v1370
        %v1372 = vpop.f32.mrb[0].mxu0
        %v1373 = vpop.f32.mrb[0].mxu0
        %v1374 = vpop.f32.mrb[0].mxu0
        %1375 = vdwg.mxu0
        %v1377 = vsel %vm1329, %v1022, 0
        %v1380 = vsel %vm1329, %v1174, 0
        %1382 = vmatprep.subr.bf16.mxu0 0
        %1383 = vmatpush1.bf16.xpose.msra.mxu0 %v1380
        %1384 = vmatprep.subr.bf16.mxu0 0
        %1385 = vmatpush1.bf16.xpose.msra.mxu0 0
        %1386 = vmatprep.subr.bf16.mxu0 0
        %1387 = vmatpush1.bf16.xpose.msra.mxu0 0
        %1388 = vmatprep.subr.bf16.mxu0 0
        %1389 = vmatpush1.bf16.xpose.msra.mxu0 0
        %1390 = vmatprep.subr.bf16.mxu0 0
        %1391 = vmatpush1.bf16.xpose.msra.mxu0 0
        %1392 = vmatprep.subr.bf16.mxu0 0
        %1393 = vmatpush1.bf16.xpose.msra.mxu0 0
        %1394 = vmatprep.subr.bf16.mxu0 0
        %1395 = vmatpush1.bf16.xpose.msra.mxu0 0
        %1396 = vmatprep.subr.bf16.mxu0 0
        %1397 = vmatpush1.bf16.xpose.msra.mxu0 0
        %1398 = vmatprep.subr.bf16.mxu0 0
        %1399 = vmatpush1.bf16.xpose.msra.mxu0 0
        %1400 = vmatprep.subr.bf16.mxu0 0
        %1401 = vmatpush1.bf16.xpose.msra.mxu0 0
        %1402 = vmatprep.subr.bf16.mxu0 0
        %1403 = vmatpush1.bf16.xpose.msra.mxu0 0
        %1404 = vmatprep.subr.bf16.mxu0 0
        %1405 = vmatpush1.bf16.xpose.msra.mxu0 0
        %1406 = vmatprep.subr.bf16.mxu0 0
        %1407 = vmatpush1.bf16.xpose.msra.mxu0 0
        %1408 = vmatprep.subr.bf16.mxu0 0
        %1409 = vmatpush1.bf16.xpose.msra.mxu0 0
        %1410 = vmatprep.subr.bf16.mxu0 0
        %1411 = vmatpush1.bf16.xpose.msra.mxu0 0
        %1412 = vmatprep.subr.bf16.mxu0 0
        %1413 = vmatpush1.bf16.xpose.msra.mxu0 0
        %1414 = vmatprep.mubr.bf16.mxu0 0
        %1415 = vmatmul.mubr.bf16.gmra.mrb[0].mxu0 %v1377
        %v1416 = vpop.f32.mrb[0].mxu0
        %v1417 = vadd.f32 0.0, %v1416
        %v1418 = vpop.f32.mrb[0].mxu0
        %v1419 = vpop.f32.mrb[0].mxu0
        %v1420 = vpop.f32.mrb[0].mxu0
        %1421 = vdwg.mxu0
        %v1423 = vsel %vm1329, %v1023, 0
        %v1426 = vsel %vm1329, %v1175, 0
        %1428 = vmatprep.subr.bf16.mxu0 0
        %1429 = vmatpush1.bf16.xpose.msra.mxu0 %v1426
        %1430 = vmatprep.subr.bf16.mxu0 0
        %1431 = vmatpush1.bf16.xpose.msra.mxu0 0
        %1432 = vmatprep.subr.bf16.mxu0 0
        %1433 = vmatpush1.bf16.xpose.msra.mxu0 0
        %1434 = vmatprep.subr.bf16.mxu0 0
        %1435 = vmatpush1.bf16.xpose.msra.mxu0 0
        %1436 = vmatprep.subr.bf16.mxu0 0
        %1437 = vmatpush1.bf16.xpose.msra.mxu0 0
        %1438 = vmatprep.subr.bf16.mxu0 0
        %1439 = vmatpush1.bf16.xpose.msra.mxu0 0
        %1440 = vmatprep.subr.bf16.mxu0 0
        %1441 = vmatpush1.bf16.xpose.msra.mxu0 0
        %1442 = vmatprep.subr.bf16.mxu0 0
        %1443 = vmatpush1.bf16.xpose.msra.mxu0 0
        %1444 = vmatprep.subr.bf16.mxu0 0
        %1445 = vmatpush1.bf16.xpose.msra.mxu0 0
        %1446 = vmatprep.subr.bf16.mxu0 0
        %1447 = vmatpush1.bf16.xpose.msra.mxu0 0
        %1448 = vmatprep.subr.bf16.mxu0 0
        %1449 = vmatpush1.bf16.xpose.msra.mxu0 0
        %1450 = vmatprep.subr.bf16.mxu0 0
        %1451 = vmatpush1.bf16.xpose.msra.mxu0 0
        %1452 = vmatprep.subr.bf16.mxu0 0
        %1453 = vmatpush1.bf16.xpose.msra.mxu0 0
        %1454 = vmatprep.subr.bf16.mxu0 0
        %1455 = vmatpush1.bf16.xpose.msra.mxu0 0
        %1456 = vmatprep.subr.bf16.mxu0 0
        %1457 = vmatpush1.bf16.xpose.msra.mxu0 0
        %1458 = vmatprep.subr.bf16.mxu0 0
        %1459 = vmatpush1.bf16.xpose.msra.mxu0 0
        %1460 = vmatprep.mubr.bf16.mxu0 0
        %1461 = vmatmul.mubr.bf16.gmra.mrb[0].mxu0 %v1423
        %v1462 = vpop.f32.mrb[0].mxu0
        %v1463 = vadd.f32 0.0, %v1462
        %v1464 = vpop.f32.mrb[0].mxu0
        %v1465 = vpop.f32.mrb[0].mxu0
        %v1466 = vpop.f32.mrb[0].mxu0
        %1467 = vdwg.mxu0
        %v1469 = vsel %vm1329, %v1024, 0
        %v1472 = vsel %vm1329, %v1176, 0
        %1474 = vmatprep.subr.bf16.mxu0 0
        %1475 = vmatpush1.bf16.xpose.msra.mxu0 %v1472
        %1476 = vmatprep.subr.bf16.mxu0 0
        %1477 = vmatpush1.bf16.xpose.msra.mxu0 0
        %1478 = vmatprep.subr.bf16.mxu0 0
        %1479 = vmatpush1.bf16.xpose.msra.mxu0 0
        %1480 = vmatprep.subr.bf16.mxu0 0
        %1481 = vmatpush1.bf16.xpose.msra.mxu0 0
        %1482 = vmatprep.subr.bf16.mxu0 0
        %1483 = vmatpush1.bf16.xpose.msra.mxu0 0
        %1484 = vmatprep.subr.bf16.mxu0 0
        %1485 = vmatpush1.bf16.xpose.msra.mxu0 0
        %1486 = vmatprep.subr.bf16.mxu0 0
        %1487 = vmatpush1.bf16.xpose.msra.mxu0 0
        %1488 = vmatprep.subr.bf16.mxu0 0
        %1489 = vmatpush1.bf16.xpose.msra.mxu0 0
        %1490 = vmatprep.subr.bf16.mxu0 0
        %1491 = vmatpush1.bf16.xpose.msra.mxu0 0
        %1492 = vmatprep.subr.bf16.mxu0 0
        %1493 = vmatpush1.bf16.xpose.msra.mxu0 0
        %1494 = vmatprep.subr.bf16.mxu0 0
        %1495 = vmatpush1.bf16.xpose.msra.mxu0 0
        %1496 = vmatprep.subr.bf16.mxu0 0
        %1497 = vmatpush1.bf16.xpose.msra.mxu0 0
        %1498 = vmatprep.subr.bf16.mxu0 0
        %1499 = vmatpush1.bf16.xpose.msra.mxu0 0
        %1500 = vmatprep.subr.bf16.mxu0 0
        %1501 = vmatpush1.bf16.xpose.msra.mxu0 0
        %1502 = vmatprep.subr.bf16.mxu0 0
        %1503 = vmatpush1.bf16.xpose.msra.mxu0 0
        %1504 = vmatprep.subr.bf16.mxu0 0
        %1505 = vmatpush1.bf16.xpose.msra.mxu0 0
        %1506 = vmatprep.mubr.bf16.mxu0 0
        %1507 = vmatmul.mubr.bf16.gmra.mrb[0].mxu0 %v1469
        %v1508 = vpop.f32.mrb[0].mxu0
        %v1509 = vadd.f32 0.0, %v1508
        %v1510 = vpop.f32.mrb[0].mxu0
        %v1511 = vpop.f32.mrb[0].mxu0
        %v1512 = vpop.f32.mrb[0].mxu0
        %1513 = vdwg.mxu0
        %v1514 = vmul.f32 %v1371, 0.35355338
        %v1515 = vmul.f32 %v1417, 0.35355338
        %v1516 = vmul.f32 %v1463, 0.35355338
        %v1517 = vmul.f32 %v1509, 0.35355338
        %v1518 = vlaneseq
        %v1519 = vshrl.u32 %v1518, 7
        %v1520 = vlaneseq
        %v1521 = vand.u32 %v1520, 127
        %vm1522 = vcmp.le.s32.totalorder %v1521, %v1519
        %v1523 = vsel %vm1522, 1, 0
        %vm1524 = vcmp.eq.s32.totalorder %v1523, 1
        %v1525 = vsel %vm1524, %v1514, -1e+09
        %v1526 = vsel %vm1524, %v1515, -1e+09
        %v1527 = vsel %vm1524, %v1516, -1e+09
        %v1528 = vsel %vm1524, %v1517, -1e+09
        %v1529 = vsel %vm1329, %v1525, -inf
        %1530 = vmax.xlane.f32.xlu0 %v1529
        %v1531 = vpop.xlane.xlu0 %1530
        %v1532 = vsel %vm1329, %v1526, -inf
        %1533 = vmax.xlane.f32.xlu0 %v1532
        %v1534 = vpop.xlane.xlu0 %1533
        %v1535 = vsel %vm1329, %v1527, -inf
        %1536 = vmax.xlane.f32.xlu0 %v1535
        %v1537 = vpop.xlane.xlu0 %1536
        %v1538 = vsel %vm1329, %v1528, -inf
        %1539 = vmax.xlane.f32.xlu0 %v1538
        %v1540 = vpop.xlane.xlu0 %1539
        %v1541 = vsub.f32 %v1525, %v1531
        %v1542 = vsub.f32 %v1526, %v1534
        %v1543 = vsub.f32 %v1527, %v1537
        %v1544 = vsub.f32 %v1528, %v1540
        %v1545 = vmul.f32 %v1541, 1.442695
        %v1546 = vpow.pop %v1545
        %v1547 = vmul.f32 %v1542, 1.442695
        %v1548 = vpow.pop %v1547
        %v1549 = vmul.f32 %v1543, 1.442695
        %v1550 = vpow.pop %v1549
        %v1551 = vmul.f32 %v1544, 1.442695
        %v1552 = vpow.pop %v1551
        %v1553 = vsel %vm1329, %v1546, 0.0
        %1554 = vadd.xlane.f32.xlu0 %v1553
        %v1555 = vpop.xlane.xlu0 %1554
        %v1556 = vsel %vm1329, %v1548, 0.0
        %1557 = vadd.xlane.f32.xlu0 %v1556
        %v1558 = vpop.xlane.xlu0 %1557
        %v1559 = vsel %vm1329, %v1550, 0.0
        %1560 = vadd.xlane.f32.xlu0 %v1559
        %v1561 = vpop.xlane.xlu0 %1560
        %v1562 = vsel %vm1329, %v1552, 0.0
        %1563 = vadd.xlane.f32.xlu0 %v1562
        %v1564 = vpop.xlane.xlu0 %1563
        %v1565 = vrcp.pop %v1555
        %v1566 = vrcp.pop %v1558
        %v1567 = vrcp.pop %v1561
        %v1568 = vrcp.pop %v1564
        %v1569 = vmul.f32 %v1546, %v1565
        %v1570 = vmul.f32 %v1548, %v1566
        %v1571 = vmul.f32 %v1550, %v1567
        %v1572 = vmul.f32 %v1552, %v1568
        %v1573 = vpack.c.bf16 %v1569, %v1569
        %v1574 = vpack.c.bf16 %v1570, %v1570
        %v1575 = vpack.c.bf16 %v1571, %v1571
        %v1576 = vpack.c.bf16 %v1572, %v1572
        %v1578 = vsel %vm1329, %v1573, 0
        %vm1580 = vcmask 1043456
        %v1582 = vsel %vm1580, %v1325, 0
        %1584 = vmatprep.subr.bf16.mxu0 0
        %1585 = vmatpush1.bf16.msra.mxu0 %v1582
        %1586 = vmatprep.subr.bf16.mxu0 0
        %1587 = vmatpush1.bf16.msra.mxu0 0
        %1588 = vmatprep.subr.bf16.mxu0 0
        %1589 = vmatpush1.bf16.msra.mxu0 0
        %1590 = vmatprep.subr.bf16.mxu0 0
        %1591 = vmatpush1.bf16.msra.mxu0 0
        %1592 = vmatprep.subr.bf16.mxu0 0
        %1593 = vmatpush1.bf16.msra.mxu0 0
        %1594 = vmatprep.subr.bf16.mxu0 0
        %1595 = vmatpush1.bf16.msra.mxu0 0
        %1596 = vmatprep.subr.bf16.mxu0 0
        %1597 = vmatpush1.bf16.msra.mxu0 0
        %1598 = vmatprep.subr.bf16.mxu0 0
        %1599 = vmatpush1.bf16.msra.mxu0 0
        %1600 = vmatprep.subr.bf16.mxu0 0
        %1601 = vmatpush1.bf16.msra.mxu0 0
        %1602 = vmatprep.subr.bf16.mxu0 0
        %1603 = vmatpush1.bf16.msra.mxu0 0
        %1604 = vmatprep.subr.bf16.mxu0 0
        %1605 = vmatpush1.bf16.msra.mxu0 0
        %1606 = vmatprep.subr.bf16.mxu0 0
        %1607 = vmatpush1.bf16.msra.mxu0 0
        %1608 = vmatprep.subr.bf16.mxu0 0
        %1609 = vmatpush1.bf16.msra.mxu0 0
        %1610 = vmatprep.subr.bf16.mxu0 0
        %1611 = vmatpush1.bf16.msra.mxu0 0
        %1612 = vmatprep.subr.bf16.mxu0 0
        %1613 = vmatpush1.bf16.msra.mxu0 0
        %1614 = vmatprep.subr.bf16.mxu0 0
        %1615 = vmatpush1.bf16.msra.mxu0 0
        %1616 = vmatprep.mubr.bf16.mxu0 0
        %1617 = vmatmul.mubr.bf16.gmra.mrb[0].mxu0 %v1578
        %v1618 = vpop.f32.mrb[0].mxu0
        %v1619 = vadd.f32 0.0, %v1618
        %v1620 = vpop.f32.mrb[0].mxu0
        %v1621 = vpop.f32.mrb[0].mxu0
        %v1622 = vpop.f32.mrb[0].mxu0
        %1623 = vdwg.mxu0
        %v1625 = vsel %vm1329, %v1574, 0
        %v1628 = vsel %vm1580, %v1326, 0
        %1630 = vmatprep.subr.bf16.mxu0 0
        %1631 = vmatpush1.bf16.msra.mxu0 %v1628
        %1632 = vmatprep.subr.bf16.mxu0 0
        %1633 = vmatpush1.bf16.msra.mxu0 0
        %1634 = vmatprep.subr.bf16.mxu0 0
        %1635 = vmatpush1.bf16.msra.mxu0 0
        %1636 = vmatprep.subr.bf16.mxu0 0
        %1637 = vmatpush1.bf16.msra.mxu0 0
        %1638 = vmatprep.subr.bf16.mxu0 0
        %1639 = vmatpush1.bf16.msra.mxu0 0
        %1640 = vmatprep.subr.bf16.mxu0 0
        %1641 = vmatpush1.bf16.msra.mxu0 0
        %1642 = vmatprep.subr.bf16.mxu0 0
        %1643 = vmatpush1.bf16.msra.mxu0 0
        %1644 = vmatprep.subr.bf16.mxu0 0
        %1645 = vmatpush1.bf16.msra.mxu0 0
        %1646 = vmatprep.subr.bf16.mxu0 0
        %1647 = vmatpush1.bf16.msra.mxu0 0
        %1648 = vmatprep.subr.bf16.mxu0 0
        %1649 = vmatpush1.bf16.msra.mxu0 0
        %1650 = vmatprep.subr.bf16.mxu0 0
        %1651 = vmatpush1.bf16.msra.mxu0 0
        %1652 = vmatprep.subr.bf16.mxu0 0
        %1653 = vmatpush1.bf16.msra.mxu0 0
        %1654 = vmatprep.subr.bf16.mxu0 0
        %1655 = vmatpush1.bf16.msra.mxu0 0
        %1656 = vmatprep.subr.bf16.mxu0 0
        %1657 = vmatpush1.bf16.msra.mxu0 0
        %1658 = vmatprep.subr.bf16.mxu0 0
        %1659 = vmatpush1.bf16.msra.mxu0 0
        %1660 = vmatprep.subr.bf16.mxu0 0
        %1661 = vmatpush1.bf16.msra.mxu0 0
        %1662 = vmatprep.mubr.bf16.mxu0 0
        %1663 = vmatmul.mubr.bf16.gmra.mrb[0].mxu0 %v1625
        %v1664 = vpop.f32.mrb[0].mxu0
        %v1665 = vadd.f32 0.0, %v1664
        %v1666 = vpop.f32.mrb[0].mxu0
        %v1667 = vpop.f32.mrb[0].mxu0
        %v1668 = vpop.f32.mrb[0].mxu0
        %1669 = vdwg.mxu0
        %v1671 = vsel %vm1329, %v1575, 0
        %v1674 = vsel %vm1580, %v1327, 0
        %1676 = vmatprep.subr.bf16.mxu0 0
        %1677 = vmatpush1.bf16.msra.mxu0 %v1674
        %1678 = vmatprep.subr.bf16.mxu0 0
        %1679 = vmatpush1.bf16.msra.mxu0 0
        %1680 = vmatprep.subr.bf16.mxu0 0
        %1681 = vmatpush1.bf16.msra.mxu0 0
        %1682 = vmatprep.subr.bf16.mxu0 0
        %1683 = vmatpush1.bf16.msra.mxu0 0
        %1684 = vmatprep.subr.bf16.mxu0 0
        %1685 = vmatpush1.bf16.msra.mxu0 0
        %1686 = vmatprep.subr.bf16.mxu0 0
        %1687 = vmatpush1.bf16.msra.mxu0 0
        %1688 = vmatprep.subr.bf16.mxu0 0
        %1689 = vmatpush1.bf16.msra.mxu0 0
        %1690 = vmatprep.subr.bf16.mxu0 0
        %1691 = vmatpush1.bf16.msra.mxu0 0
        %1692 = vmatprep.subr.bf16.mxu0 0
        %1693 = vmatpush1.bf16.msra.mxu0 0
        %1694 = vmatprep.subr.bf16.mxu0 0
        %1695 = vmatpush1.bf16.msra.mxu0 0
        %1696 = vmatprep.subr.bf16.mxu0 0
        %1697 = vmatpush1.bf16.msra.mxu0 0
        %1698 = vmatprep.subr.bf16.mxu0 0
        %1699 = vmatpush1.bf16.msra.mxu0 0
        %1700 = vmatprep.subr.bf16.mxu0 0
        %1701 = vmatpush1.bf16.msra.mxu0 0
        %1702 = vmatprep.subr.bf16.mxu0 0
        %1703 = vmatpush1.bf16.msra.mxu0 0
        %1704 = vmatprep.subr.bf16.mxu0 0
        %1705 = vmatpush1.bf16.msra.mxu0 0
        %1706 = vmatprep.subr.bf16.mxu0 0
        %1707 = vmatpush1.bf16.msra.mxu0 0
        %1708 = vmatprep.mubr.bf16.mxu0 0
        %1709 = vmatmul.mubr.bf16.gmra.mrb[0].mxu0 %v1671
        %v1710 = vpop.f32.mrb[0].mxu0
        %v1711 = vadd.f32 0.0, %v1710
        %v1712 = vpop.f32.mrb[0].mxu0
        %v1713 = vpop.f32.mrb[0].mxu0
        %v1714 = vpop.f32.mrb[0].mxu0
        %1715 = vdwg.mxu0
        %v1717 = vsel %vm1329, %v1576, 0
        %v1720 = vsel %vm1580, %v1328, 0
        %1722 = vmatprep.subr.bf16.mxu0 0
        %1723 = vmatpush1.bf16.msra.mxu0 %v1720
        %1724 = vmatprep.subr.bf16.mxu0 0
        %1725 = vmatpush1.bf16.msra.mxu0 0
        %1726 = vmatprep.subr.bf16.mxu0 0
        %1727 = vmatpush1.bf16.msra.mxu0 0
        %1728 = vmatprep.subr.bf16.mxu0 0
        %1729 = vmatpush1.bf16.msra.mxu0 0
        %1730 = vmatprep.subr.bf16.mxu0 0
        %1731 = vmatpush1.bf16.msra.mxu0 0
        %1732 = vmatprep.subr.bf16.mxu0 0
        %1733 = vmatpush1.bf16.msra.mxu0 0
        %1734 = vmatprep.subr.bf16.mxu0 0
        %1735 = vmatpush1.bf16.msra.mxu0 0
        %1736 = vmatprep.subr.bf16.mxu0 0
        %1737 = vmatpush1.bf16.msra.mxu0 0
        %1738 = vmatprep.subr.bf16.mxu0 0
        %1739 = vmatpush1.bf16.msra.mxu0 0
        %1740 = vmatprep.subr.bf16.mxu0 0
        %1741 = vmatpush1.bf16.msra.mxu0 0
        %1742 = vmatprep.subr.bf16.mxu0 0
        %1743 = vmatpush1.bf16.msra.mxu0 0
        %1744 = vmatprep.subr.bf16.mxu0 0
        %1745 = vmatpush1.bf16.msra.mxu0 0
        %1746 = vmatprep.subr.bf16.mxu0 0
        %1747 = vmatpush1.bf16.msra.mxu0 0
        %1748 = vmatprep.subr.bf16.mxu0 0
        %1749 = vmatpush1.bf16.msra.mxu0 0
        %1750 = vmatprep.subr.bf16.mxu0 0
        %1751 = vmatpush1.bf16.msra.mxu0 0
        %1752 = vmatprep.subr.bf16.mxu0 0
        %1753 = vmatpush1.bf16.msra.mxu0 0
        %1754 = vmatprep.mubr.bf16.mxu0 0
        %1755 = vmatmul.mubr.bf16.gmra.mrb[0].mxu0 %v1717
        %v1756 = vpop.f32.mrb[0].mxu0
        %v1757 = vadd.f32 0.0, %v1756
        %v1758 = vpop.f32.mrb[0].mxu0
        %v1759 = vpop.f32.mrb[0].mxu0
        %v1760 = vpop.f32.mrb[0].mxu0
        %1761 = vdwg.mxu0
        %v1762 = vcombine.low %v1619, %v1711
        %v1763 = vcombine.high %v1619, %v1711
        %v1765 = vunpack.c.l.s4 1983009808
        %v1766 = vunpack.c.0.s8 %v1765
        %v1767 = vlaneseq
        %v1768 = vshrl.u32 %v1767, 7
        %v1769 = vsub.s32 %v1766, %v1768
        %v1770 = vrot.slane %v1762, %v1769
        %v1772 = vunpack.c.l.s4 1983009808
        %v1773 = vunpack.c.0.s8 %v1772
        %v1774 = vlaneseq
        %v1775 = vshrl.u32 %v1774, 7
        %v1776 = vsub.s32 %v1773, %v1775
        %v1777 = vrot.slane %v1763, %v1776
        %v1778 = vcombine.low %v1665, %v1757
        %v1779 = vcombine.high %v1665, %v1757
        %v1781 = vunpack.c.l.s4 1983009808
        %v1782 = vunpack.c.0.s8 %v1781
        %v1783 = vlaneseq
        %v1784 = vshrl.u32 %v1783, 7
        %v1785 = vsub.s32 %v1782, %v1784
        %v1786 = vrot.slane %v1778, %v1785
        %v1788 = vunpack.c.l.s4 1983009808
        %v1789 = vunpack.c.0.s8 %v1788
        %v1790 = vlaneseq
        %v1791 = vshrl.u32 %v1790, 7
        %v1792 = vsub.s32 %v1789, %v1791
        %v1793 = vrot.slane %v1779, %v1792
        %v1794 = vcombine.low %v1770, %v1786
        %v1795 = vcombine.high %v1770, %v1786
        %v1797 = vunpack.c.l.s4 1934713408
        %v1798 = vunpack.c.0.s8 %v1797
        %v1799 = vlaneseq
        %v1800 = vshrl.u32 %v1799, 7
        %v1801 = vsub.s32 %v1798, %v1800
        %v1802 = vrot.slane %v1794, %v1801
        %v1804 = vunpack.c.l.s4 1934713408
        %v1805 = vunpack.c.0.s8 %v1804
        %v1806 = vlaneseq
        %v1807 = vshrl.u32 %v1806, 7
        %v1808 = vsub.s32 %v1805, %v1807
        %v1809 = vrot.slane %v1795, %v1808
        %v1810 = vcombine.low %v1777, %v1793
        %v1811 = vcombine.high %v1777, %v1793
        %v1813 = vunpack.c.l.s4 1934713408
        %v1814 = vunpack.c.0.s8 %v1813
        %v1815 = vlaneseq
        %v1816 = vshrl.u32 %v1815, 7
        %v1817 = vsub.s32 %v1814, %v1816
        %v1818 = vrot.slane %v1810, %v1817
        %v1820 = vunpack.c.l.s4 1934713408
        %v1821 = vunpack.c.0.s8 %v1820
        %v1822 = vlaneseq
        %v1823 = vshrl.u32 %v1822, 7
        %v1824 = vsub.s32 %v1821, %v1823
        %v1825 = vrot.slane %v1811, %v1824
        %v1826 = vcombine.high %v1802, 0.0
        %v1827 = vcombine.high %v1809, 0.0
        %v1828 = vcombine.high %v1818, 0.0
        %v1829 = vcombine.high %v1825, 0.0
        %v1830 = vcombine.low %v1802, %v1809
        %v1832 = vunpack.c.l.s4 1983009808
        %v1833 = vunpack.c.0.s8 %v1832
        %v1834 = vlaneseq
        %v1835 = vshrl.u32 %v1834, 7
        %v1836 = vsub.s32 %v1833, %v1835
        %v1837 = vrot.slane %v1830, %v1836
        %v1838 = vcombine.low %v1826, %v1827
        %v1840 = vunpack.c.l.s4 1983009808
        %v1841 = vunpack.c.0.s8 %v1840
        %v1842 = vlaneseq
        %v1843 = vshrl.u32 %v1842, 7
        %v1844 = vsub.s32 %v1841, %v1843
        %v1845 = vrot.slane %v1838, %v1844
        %v1846 = vcombine.low %v1818, %v1825
        %v1848 = vunpack.c.l.s4 1983009808
        %v1849 = vunpack.c.0.s8 %v1848
        %v1850 = vlaneseq
        %v1851 = vshrl.u32 %v1850, 7
        %v1852 = vsub.s32 %v1849, %v1851
        %v1853 = vrot.slane %v1846, %v1852
        %v1854 = vcombine.low %v1828, %v1829
        %v1856 = vunpack.c.l.s4 1983009808
        %v1857 = vunpack.c.0.s8 %v1856
        %v1858 = vlaneseq
        %v1859 = vshrl.u32 %v1858, 7
        %v1860 = vsub.s32 %v1857, %v1859
        %v1861 = vrot.slane %v1854, %v1860
        %v1862 = vcombine.low %v1837, %v1845
        %v1863 = vcombine.high %v1837, %v1845
        %v1865 = vunpack.c.l.s4 1934713408
        %v1866 = vunpack.c.0.s8 %v1865
        %v1867 = vlaneseq
        %v1868 = vshrl.u32 %v1867, 7
        %v1869 = vsub.s32 %v1866, %v1868
        %v1870 = vrot.slane %v1862, %v1869
        %v1872 = vunpack.c.l.s4 1934713408
        %v1873 = vunpack.c.0.s8 %v1872
        %v1874 = vlaneseq
        %v1875 = vshrl.u32 %v1874, 7
        %v1876 = vsub.s32 %v1873, %v1875
        %v1877 = vrot.slane %v1863, %v1876
        %v1878 = vcombine.low %v1853, %v1861
        %v1879 = vcombine.high %v1853, %v1861
        %v1881 = vunpack.c.l.s4 1934713408
        %v1882 = vunpack.c.0.s8 %v1881
        %v1883 = vlaneseq
        %v1884 = vshrl.u32 %v1883, 7
        %v1885 = vsub.s32 %v1882, %v1884
        %v1886 = vrot.slane %v1878, %v1885
        %v1888 = vunpack.c.l.s4 1934713408
        %v1889 = vunpack.c.0.s8 %v1888
        %v1890 = vlaneseq
        %v1891 = vshrl.u32 %v1890, 7
        %v1892 = vsub.s32 %v1889, %v1891
        %v1893 = vrot.slane %v1879, %v1892
        %v1894 = vcombine.low %v1870, %v1886
        %v1895 = vcombine.high %v1870, %v1886
        %v1896 = vcombine.low %v1877, %v1893
        %v1897 = vcombine.high %v1877, %v1893
        %1899 = vrot.lane.b32.xlu0 %v1895, 8
        %v1900 = vpop.permute.xlu0 %1899
        %1903 = vrot.lane.b32.xlu0 %v1896, 16
        %v1904 = vpop.permute.xlu0 %1903
        %1907 = vrot.lane.b32.xlu0 %v1897, 24
        %v1908 = vpop.permute.xlu0 %1907
        %v1910 = vsel %vm1329, %v1894, %v1900
        %vm1911 = vcmask 130048
        %v1912 = vsel %vm1911, %v1910, %v1904
        %vm1913 = vcmask 195584
        %v1914 = vsel %vm1913, %v1912, %v1908
        %v1915 = vpack.c.bf16 %v1914, %v1914
        %v1920 = vunpack.c.l.b16 %v871
        %v1921 = vunpack.c.l.b16 %v872
        %v1922 = vunpack.c.l.b16 %v873
        %v1923 = vunpack.c.l.b16 %v874
        %v1924 = vpack.c.b16 %v1921, %v1920
        %v1925 = vpack.c.b16 %v1923, %v1922
        %v1929 = vsel %vm827, %v1915, 0
        %1931 = vmatprep.subr.bf16.mxu0 0
        %1932 = vmatpush1.bf16.msra.mxu0 %v1924
        %1933 = vmatprep.subr.bf16.mxu0 0
        %1934 = vmatpush1.bf16.msra.mxu0 %v1925
        %1935 = vmatprep.subr.bf16.mxu0 0
        %1936 = vmatpush1.bf16.msra.mxu0 0
        %1937 = vmatprep.subr.bf16.mxu0 0
        %1938 = vmatpush1.bf16.msra.mxu0 0
        %1939 = vmatprep.subr.bf16.mxu0 0
        %1940 = vmatpush1.bf16.msra.mxu0 0
        %1941 = vmatprep.subr.bf16.mxu0 0
        %1942 = vmatpush1.bf16.msra.mxu0 0
        %1943 = vmatprep.subr.bf16.mxu0 0
        %1944 = vmatpush1.bf16.msra.mxu0 0
        %1945 = vmatprep.subr.bf16.mxu0 0
        %1946 = vmatpush1.bf16.msra.mxu0 0
        %1947 = vmatprep.subr.bf16.mxu0 0
        %1948 = vmatpush1.bf16.msra.mxu0 0
        %1949 = vmatprep.subr.bf16.mxu0 0
        %1950 = vmatpush1.bf16.msra.mxu0 0
        %1951 = vmatprep.subr.bf16.mxu0 0
        %1952 = vmatpush1.bf16.msra.mxu0 0
        %1953 = vmatprep.subr.bf16.mxu0 0
        %1954 = vmatpush1.bf16.msra.mxu0 0
        %1955 = vmatprep.subr.bf16.mxu0 0
        %1956 = vmatpush1.bf16.msra.mxu0 0
        %1957 = vmatprep.subr.bf16.mxu0 0
        %1958 = vmatpush1.bf16.msra.mxu0 0
        %1959 = vmatprep.subr.bf16.mxu0 0
        %1960 = vmatpush1.bf16.msra.mxu0 0
        %1961 = vmatprep.subr.bf16.mxu0 0
        %1962 = vmatpush1.bf16.msra.mxu0 0
        %1963 = vmatprep.mubr.bf16.mxu0 0
        %1964 = vmatmul.mubr.bf16.gmra.mrb[0].mxu0 %v1929
        %v1965 = vpop.f32.mrb[0].mxu0
        %v1966 = vadd.f32 0.0, %v1965
        %v1967 = vpop.f32.mrb[0].mxu0
        %v1968 = vpop.f32.mrb[0].mxu0
        %v1969 = vpop.f32.mrb[0].mxu0
        %1970 = vdwg.mxu0
        %v1971 = vadd.f32 %v801, %v1966
        %v1972 = vld [vmem:[#allocation10] sm:$0x1]
        %v1974 = vlaneseq
        %v1975 = vshrl.u32 %v1974, 7
        %v1976 = vsub.s32 0, %v1975
        %v1977 = vrot.slane %v1972, %v1976
        %v1979 = vadd.f32 %v1971, %v1977
        %v1980 = vld [vmem:[#allocation11] sm:$0x1]
        %v1981 = vld [vmem:[#allocation13] sm:$0x1]
        %v1982 = vsel %vm827, %v1979, 0.0
        %1983 = vadd.xlane.f32.xlu0 %v1982
        %v1984 = vpop.xlane.xlu0 %1983
        %v1985 = vrcp.pop 32.0
        %v1986 = vmul.f32 %v1984, %v1985
        %v1987 = vsub.f32 %v1979, %v1986
        %v1988 = vmul.f32 %v1987, %v1987
        %v1989 = vsel %vm827, %v1988, 0.0
        %1990 = vadd.xlane.f32.xlu0 %v1989
        %v1991 = vpop.xlane.xlu0 %1990
        %v1992 = vmul.f32 %v1991, %v1985
        %v1993 = vadd.f32 %v1992, 1e-05
        %v1994 = vrsqrt.pop %v1993
        %v1995 = vmul.f32 %v1987, %v1994
        %v1997 = vlaneseq
        %v1998 = vshrl.u32 %v1997, 7
        %v1999 = vsub.s32 0, %v1998
        %v2000 = vrot.slane %v1980, %v1999
        %v2002 = vmul.f32 %v1995, %v2000
        %v2004 = vlaneseq
        %v2005 = vshrl.u32 %v2004, 7
        %v2006 = vsub.s32 0, %v2005
        %v2007 = vrot.slane %v1981, %v2006
        %v2009 = vadd.f32 %v2002, %v2007
        %v2010 = vpack.c.bf16 %v2009, %v2009
        %v2011 = vld [vmem:[%s8] sm:$0xf]
        %v2012 = vld [vmem:[%s8 + $0x4] sm:$0xf]
        %v2013 = vld [vmem:[%s8 + $0x8] sm:$0xf]
        %v2014 = vld [vmem:[%s8 + $0xc] sm:$0xf]
        %v2015 = vld [vmem:[#allocation14] sm:$0x1]
        %v2017 = vlaneseq
        %v2018 = vshrl.u32 %v2017, 7
        %v2019 = vsub.s32 0, %v2018
        %v2020 = vrot.slane %v2015, %v2019
        %v2026 = vunpack.c.l.b16 %v2011
        %v2027 = vunpack.c.l.b16 %v2012
        %v2028 = vunpack.c.l.b16 %v2013
        %v2029 = vunpack.c.l.b16 %v2014
        %v2030 = vpack.c.b16 %v2027, %v2026
        %v2031 = vpack.c.b16 %v2029, %v2028
        %v2035 = vsel %vm827, %v2010, 0
        %2037 = vmatprep.subr.bf16.mxu0 0
        %2038 = vmatpush1.bf16.msra.mxu0 %v2030
        %2039 = vmatprep.subr.bf16.mxu0 0
        %2040 = vmatpush1.bf16.msra.mxu0 %v2031
        %2041 = vmatprep.subr.bf16.mxu0 0
        %2042 = vmatpush1.bf16.msra.mxu0 0
        %2043 = vmatprep.subr.bf16.mxu0 0
        %2044 = vmatpush1.bf16.msra.mxu0 0
        %2045 = vmatprep.subr.bf16.mxu0 0
        %2046 = vmatpush1.bf16.msra.mxu0 0
        %2047 = vmatprep.subr.bf16.mxu0 0
        %2048 = vmatpush1.bf16.msra.mxu0 0
        %2049 = vmatprep.subr.bf16.mxu0 0
        %2050 = vmatpush1.bf16.msra.mxu0 0
        %2051 = vmatprep.subr.bf16.mxu0 0
        %2052 = vmatpush1.bf16.msra.mxu0 0
        %2053 = vmatprep.subr.bf16.mxu0 0
        %2054 = vmatpush1.bf16.msra.mxu0 0
        %2055 = vmatprep.subr.bf16.mxu0 0
        %2056 = vmatpush1.bf16.msra.mxu0 0
        %2057 = vmatprep.subr.bf16.mxu0 0
        %2058 = vmatpush1.bf16.msra.mxu0 0
        %2059 = vmatprep.subr.bf16.mxu0 0
        %2060 = vmatpush1.bf16.msra.mxu0 0
        %2061 = vmatprep.subr.bf16.mxu0 0
        %2062 = vmatpush1.bf16.msra.mxu0 0
        %2063 = vmatprep.subr.bf16.mxu0 0
        %2064 = vmatpush1.bf16.msra.mxu0 0
        %2065 = vmatprep.subr.bf16.mxu0 0
        %2066 = vmatpush1.bf16.msra.mxu0 0
        %2067 = vmatprep.subr.bf16.mxu0 0
        %2068 = vmatpush1.bf16.msra.mxu0 0
        %2069 = vmatprep.mubr.bf16.mxu0 0
        %2070 = vmatmul.mubr.bf16.gmra.mrb[0].mxu0 %v2035
        %v2071 = vpop.f32.mrb[0].mxu0
        %v2072 = vadd.f32 %v2020, %v2071
        %v2073 = vpop.f32.mrb[0].mxu0
        %v2074 = vpop.f32.mrb[0].mxu0
        %v2075 = vpop.f32.mrb[0].mxu0
        %2076 = vdwg.mxu0
        %v2077 = vpack.c.bf16 %v802, %v802
        %v2078 = vld [vmem:[%s10] sm:$0xf]
        %v2079 = vld [vmem:[%s10 + $0x4] sm:$0xf]
        %v2080 = vld [vmem:[%s10 + $0x8] sm:$0xf]
        %v2081 = vld [vmem:[%s10 + $0xc] sm:$0xf]
        %v2082 = vld [vmem:[#allocation16] sm:$0x1]
        %v2084 = vlaneseq
        %v2085 = vshrl.u32 %v2084, 7
        %v2086 = vsub.s32 0, %v2085
        %v2087 = vrot.slane %v2082, %v2086
        %v2093 = vunpack.c.l.b16 %v2078
        %v2094 = vunpack.c.l.b16 %v2079
        %v2095 = vunpack.c.l.b16 %v2080
        %v2096 = vunpack.c.l.b16 %v2081
        %v2097 = vpack.c.b16 %v2094, %v2093
        %v2098 = vpack.c.b16 %v2096, %v2095
        %v2102 = vsel %vm827, %v2077, 0
        %2104 = vmatprep.subr.bf16.mxu0 0
        %2105 = vmatpush1.bf16.msra.mxu0 %v2097
        %2106 = vmatprep.subr.bf16.mxu0 0
        %2107 = vmatpush1.bf16.msra.mxu0 %v2098
        %2108 = vmatprep.subr.bf16.mxu0 0
        %2109 = vmatpush1.bf16.msra.mxu0 0
        %2110 = vmatprep.subr.bf16.mxu0 0
        %2111 = vmatpush1.bf16.msra.mxu0 0
        %2112 = vmatprep.subr.bf16.mxu0 0
        %2113 = vmatpush1.bf16.msra.mxu0 0
        %2114 = vmatprep.subr.bf16.mxu0 0
        %2115 = vmatpush1.bf16.msra.mxu0 0
        %2116 = vmatprep.subr.bf16.mxu0 0
        %2117 = vmatpush1.bf16.msra.mxu0 0
        %2118 = vmatprep.subr.bf16.mxu0 0
        %2119 = vmatpush1.bf16.msra.mxu0 0
        %2120 = vmatprep.subr.bf16.mxu0 0
        %2121 = vmatpush1.bf16.msra.mxu0 0
        %2122 = vmatprep.subr.bf16.mxu0 0
        %2123 = vmatpush1.bf16.msra.mxu0 0
        %2124 = vmatprep.subr.bf16.mxu0 0
        %2125 = vmatpush1.bf16.msra.mxu0 0
        %2126 = vmatprep.subr.bf16.mxu0 0
        %2127 = vmatpush1.bf16.msra.mxu0 0
        %2128 = vmatprep.subr.bf16.mxu0 0
        %2129 = vmatpush1.bf16.msra.mxu0 0
        %2130 = vmatprep.subr.bf16.mxu0 0
        %2131 = vmatpush1.bf16.msra.mxu0 0
        %2132 = vmatprep.subr.bf16.mxu0 0
        %2133 = vmatpush1.bf16.msra.mxu0 0
        %2134 = vmatprep.subr.bf16.mxu0 0
        %2135 = vmatpush1.bf16.msra.mxu0 0
        %2136 = vmatprep.mubr.bf16.mxu0 0
        %2137 = vmatmul.mubr.bf16.gmra.mrb[0].mxu0 %v2102
        %v2138 = vpop.f32.mrb[0].mxu0
        %v2139 = vadd.f32 %v2087, %v2138
        %v2140 = vpop.f32.mrb[0].mxu0
        %v2141 = vpop.f32.mrb[0].mxu0
        %v2142 = vpop.f32.mrb[0].mxu0
        %2143 = vdwg.mxu0
        %v2144 = vld [vmem:[#allocation17] sm:$0xf]
        %v2145 = vld [vmem:[#allocation17 + $0x4] sm:$0xf]
        %v2146 = vld [vmem:[#allocation17 + $0x8] sm:$0xf]
        %v2147 = vld [vmem:[#allocation17 + $0xc] sm:$0xf]
        %2149 = vrot.lane.b32.xlu0 %v2072, 120
        %v2150 = vpop.permute.xlu0 %2149
        %2152 = vrot.lane.b32.xlu0 %v2072, 112
        %v2153 = vpop.permute.xlu0 %2152
        %2155 = vrot.lane.b32.xlu0 %v2072, 104
        %v2156 = vpop.permute.xlu0 %2155
        %v2158 = vcombine.low %v2072, %v2153
        %v2159 = vcombine.high %v2072, %v2153
        %v2161 = vunpack.c.l.s4 1983009808
        %v2162 = vunpack.c.0.s8 %v2161
        %v2163 = vlaneseq
        %v2164 = vshrl.u32 %v2163, 7
        %v2165 = vsub.s32 %v2162, %v2164
        %v2166 = vrot.slane %v2158, %v2165
        %v2168 = vunpack.c.l.s4 1983009808
        %v2169 = vunpack.c.0.s8 %v2168
        %v2170 = vlaneseq
        %v2171 = vshrl.u32 %v2170, 7
        %v2172 = vsub.s32 %v2169, %v2171
        %v2173 = vrot.slane %v2159, %v2172
        %v2174 = vcombine.low %v2150, %v2156
        %v2175 = vcombine.high %v2150, %v2156
        %v2177 = vunpack.c.l.s4 1983009808
        %v2178 = vunpack.c.0.s8 %v2177
        %v2179 = vlaneseq
        %v2180 = vshrl.u32 %v2179, 7
        %v2181 = vsub.s32 %v2178, %v2180
        %v2182 = vrot.slane %v2174, %v2181
        %v2184 = vunpack.c.l.s4 1983009808
        %v2185 = vunpack.c.0.s8 %v2184
        %v2186 = vlaneseq
        %v2187 = vshrl.u32 %v2186, 7
        %v2188 = vsub.s32 %v2185, %v2187
        %v2189 = vrot.slane %v2175, %v2188
        %v2190 = vcombine.low %v2166, %v2182
        %v2191 = vcombine.high %v2166, %v2182
        %v2193 = vunpack.c.l.s4 1934713408
        %v2194 = vunpack.c.0.s8 %v2193
        %v2195 = vlaneseq
        %v2196 = vshrl.u32 %v2195, 7
        %v2197 = vsub.s32 %v2194, %v2196
        %v2198 = vrot.slane %v2190, %v2197
        %v2200 = vunpack.c.l.s4 1934713408
        %v2201 = vunpack.c.0.s8 %v2200
        %v2202 = vlaneseq
        %v2203 = vshrl.u32 %v2202, 7
        %v2204 = vsub.s32 %v2201, %v2203
        %v2205 = vrot.slane %v2191, %v2204
        %v2206 = vcombine.low %v2173, %v2189
        %v2207 = vcombine.high %v2173, %v2189
        %v2209 = vunpack.c.l.s4 1934713408
        %v2210 = vunpack.c.0.s8 %v2209
        %v2211 = vlaneseq
        %v2212 = vshrl.u32 %v2211, 7
        %v2213 = vsub.s32 %v2210, %v2212
        %v2214 = vrot.slane %v2206, %v2213
        %v2216 = vunpack.c.l.s4 1934713408
        %v2217 = vunpack.c.0.s8 %v2216
        %v2218 = vlaneseq
        %v2219 = vshrl.u32 %v2218, 7
        %v2220 = vsub.s32 %v2217, %v2219
        %v2221 = vrot.slane %v2207, %v2220
        %v2222 = vcombine.high %v2198, 0.0
        %v2223 = vcombine.high %v2205, 0.0
        %v2224 = vcombine.high %v2214, 0.0
        %v2225 = vcombine.high %v2221, 0.0
        %v2226 = vcombine.low %v2198, %v2205
        %v2228 = vunpack.c.l.s4 1983009808
        %v2229 = vunpack.c.0.s8 %v2228
        %v2230 = vlaneseq
        %v2231 = vshrl.u32 %v2230, 7
        %v2232 = vsub.s32 %v2229, %v2231
        %v2233 = vrot.slane %v2226, %v2232
        %v2234 = vcombine.low %v2222, %v2223
        %v2236 = vunpack.c.l.s4 1983009808
        %v2237 = vunpack.c.0.s8 %v2236
        %v2238 = vlaneseq
        %v2239 = vshrl.u32 %v2238, 7
        %v2240 = vsub.s32 %v2237, %v2239
        %v2241 = vrot.slane %v2234, %v2240
        %v2242 = vcombine.low %v2214, %v2221
        %v2244 = vunpack.c.l.s4 1983009808
        %v2245 = vunpack.c.0.s8 %v2244
        %v2246 = vlaneseq
        %v2247 = vshrl.u32 %v2246, 7
        %v2248 = vsub.s32 %v2245, %v2247
        %v2249 = vrot.slane %v2242, %v2248
        %v2250 = vcombine.low %v2224, %v2225
        %v2252 = vunpack.c.l.s4 1983009808
        %v2253 = vunpack.c.0.s8 %v2252
        %v2254 = vlaneseq
        %v2255 = vshrl.u32 %v2254, 7
        %v2256 = vsub.s32 %v2253, %v2255
        %v2257 = vrot.slane %v2250, %v2256
        %v2258 = vcombine.low %v2233, %v2241
        %v2259 = vcombine.high %v2233, %v2241
        %v2261 = vunpack.c.l.s4 1934713408
        %v2262 = vunpack.c.0.s8 %v2261
        %v2263 = vlaneseq
        %v2264 = vshrl.u32 %v2263, 7
        %v2265 = vsub.s32 %v2262, %v2264
        %v2266 = vrot.slane %v2258, %v2265
        %v2268 = vunpack.c.l.s4 1934713408
        %v2269 = vunpack.c.0.s8 %v2268
        %v2270 = vlaneseq
        %v2271 = vshrl.u32 %v2270, 7
        %v2272 = vsub.s32 %v2269, %v2271
        %v2273 = vrot.slane %v2259, %v2272
        %v2274 = vcombine.low %v2249, %v2257
        %v2275 = vcombine.high %v2249, %v2257
        %v2277 = vunpack.c.l.s4 1934713408
        %v2278 = vunpack.c.0.s8 %v2277
        %v2279 = vlaneseq
        %v2280 = vshrl.u32 %v2279, 7
        %v2281 = vsub.s32 %v2278, %v2280
        %v2282 = vrot.slane %v2274, %v2281
        %v2284 = vunpack.c.l.s4 1934713408
        %v2285 = vunpack.c.0.s8 %v2284
        %v2286 = vlaneseq
        %v2287 = vshrl.u32 %v2286, 7
        %v2288 = vsub.s32 %v2285, %v2287
        %v2289 = vrot.slane %v2275, %v2288
        %v2290 = vcombine.low %v2266, %v2282
        %v2291 = vcombine.high %v2266, %v2282
        %v2292 = vcombine.low %v2273, %v2289
        %v2293 = vcombine.high %v2273, %v2289
        %v2294 = vpack.c.bf16 %v2290, %v2290
        %v2295 = vpack.c.bf16 %v2291, %v2291
        %v2296 = vpack.c.bf16 %v2292, %v2292
        %v2297 = vpack.c.bf16 %v2293, %v2293
        %2299 = vrot.lane.b32.xlu0 %v2139, 120
        %v2300 = vpop.permute.xlu0 %2299
        %2302 = vrot.lane.b32.xlu0 %v2139, 112
        %v2303 = vpop.permute.xlu0 %2302
        %2305 = vrot.lane.b32.xlu0 %v2139, 104
        %v2306 = vpop.permute.xlu0 %2305
        %v2308 = vcombine.low %v2139, %v2303
        %v2309 = vcombine.high %v2139, %v2303
        %v2311 = vunpack.c.l.s4 1983009808
        %v2312 = vunpack.c.0.s8 %v2311
        %v2313 = vlaneseq
        %v2314 = vshrl.u32 %v2313, 7
        %v2315 = vsub.s32 %v2312, %v2314
        %v2316 = vrot.slane %v2308, %v2315
        %v2318 = vunpack.c.l.s4 1983009808
        %v2319 = vunpack.c.0.s8 %v2318
        %v2320 = vlaneseq
        %v2321 = vshrl.u32 %v2320, 7
        %v2322 = vsub.s32 %v2319, %v2321
        %v2323 = vrot.slane %v2309, %v2322
        %v2324 = vcombine.low %v2300, %v2306
        %v2325 = vcombine.high %v2300, %v2306
        %v2327 = vunpack.c.l.s4 1983009808
        %v2328 = vunpack.c.0.s8 %v2327
        %v2329 = vlaneseq
        %v2330 = vshrl.u32 %v2329, 7
        %v2331 = vsub.s32 %v2328, %v2330
        %v2332 = vrot.slane %v2324, %v2331
        %v2334 = vunpack.c.l.s4 1983009808
        %v2335 = vunpack.c.0.s8 %v2334
        %v2336 = vlaneseq
        %v2337 = vshrl.u32 %v2336, 7
        %v2338 = vsub.s32 %v2335, %v2337
        %v2339 = vrot.slane %v2325, %v2338
        %v2340 = vcombine.low %v2316, %v2332
        %v2341 = vcombine.high %v2316, %v2332
        %v2343 = vunpack.c.l.s4 1934713408
        %v2344 = vunpack.c.0.s8 %v2343
        %v2345 = vlaneseq
        %v2346 = vshrl.u32 %v2345, 7
        %v2347 = vsub.s32 %v2344, %v2346
        %v2348 = vrot.slane %v2340, %v2347
        %v2350 = vunpack.c.l.s4 1934713408
        %v2351 = vunpack.c.0.s8 %v2350
        %v2352 = vlaneseq
        %v2353 = vshrl.u32 %v2352, 7
        %v2354 = vsub.s32 %v2351, %v2353
        %v2355 = vrot.slane %v2341, %v2354
        %v2356 = vcombine.low %v2323, %v2339
        %v2357 = vcombine.high %v2323, %v2339
        %v2359 = vunpack.c.l.s4 1934713408
        %v2360 = vunpack.c.0.s8 %v2359
        %v2361 = vlaneseq
        %v2362 = vshrl.u32 %v2361, 7
        %v2363 = vsub.s32 %v2360, %v2362
        %v2364 = vrot.slane %v2356, %v2363
        %v2366 = vunpack.c.l.s4 1934713408
        %v2367 = vunpack.c.0.s8 %v2366
        %v2368 = vlaneseq
        %v2369 = vshrl.u32 %v2368, 7
        %v2370 = vsub.s32 %v2367, %v2369
        %v2371 = vrot.slane %v2357, %v2370
        %v2372 = vcombine.high %v2348, 0.0
        %v2373 = vcombine.high %v2355, 0.0
        %v2374 = vcombine.high %v2364, 0.0
        %v2375 = vcombine.high %v2371, 0.0
        %v2376 = vcombine.low %v2348, %v2355
        %v2378 = vunpack.c.l.s4 1983009808
        %v2379 = vunpack.c.0.s8 %v2378
        %v2380 = vlaneseq
        %v2381 = vshrl.u32 %v2380, 7
        %v2382 = vsub.s32 %v2379, %v2381
        %v2383 = vrot.slane %v2376, %v2382
        %v2384 = vcombine.low %v2372, %v2373
        %v2386 = vunpack.c.l.s4 1983009808
        %v2387 = vunpack.c.0.s8 %v2386
        %v2388 = vlaneseq
        %v2389 = vshrl.u32 %v2388, 7
        %v2390 = vsub.s32 %v2387, %v2389
        %v2391 = vrot.slane %v2384, %v2390
        %v2392 = vcombine.low %v2364, %v2371
        %v2394 = vunpack.c.l.s4 1983009808
        %v2395 = vunpack.c.0.s8 %v2394
        %v2396 = vlaneseq
        %v2397 = vshrl.u32 %v2396, 7
        %v2398 = vsub.s32 %v2395, %v2397
        %v2399 = vrot.slane %v2392, %v2398
        %v2400 = vcombine.low %v2374, %v2375
        %v2402 = vunpack.c.l.s4 1983009808
        %v2403 = vunpack.c.0.s8 %v2402
        %v2404 = vlaneseq
        %v2405 = vshrl.u32 %v2404, 7
        %v2406 = vsub.s32 %v2403, %v2405
        %v2407 = vrot.slane %v2400, %v2406
        %v2408 = vcombine.low %v2383, %v2391
        %v2409 = vcombine.high %v2383, %v2391
        %v2411 = vunpack.c.l.s4 1934713408
        %v2412 = vunpack.c.0.s8 %v2411
        %v2413 = vlaneseq
        %v2414 = vshrl.u32 %v2413, 7
        %v2415 = vsub.s32 %v2412, %v2414
        %v2416 = vrot.slane %v2408, %v2415
        %v2418 = vunpack.c.l.s4 1934713408
        %v2419 = vunpack.c.0.s8 %v2418
        %v2420 = vlaneseq
        %v2421 = vshrl.u32 %v2420, 7
        %v2422 = vsub.s32 %v2419, %v2421
        %v2423 = vrot.slane %v2409, %v2422
        %v2424 = vcombine.low %v2399, %v2407
        %v2425 = vcombine.high %v2399, %v2407
        %v2427 = vunpack.c.l.s4 1934713408
        %v2428 = vunpack.c.0.s8 %v2427
        %v2429 = vlaneseq
        %v2430 = vshrl.u32 %v2429, 7
        %v2431 = vsub.s32 %v2428, %v2430
        %v2432 = vrot.slane %v2424, %v2431
        %v2434 = vunpack.c.l.s4 1934713408
        %v2435 = vunpack.c.0.s8 %v2434
        %v2436 = vlaneseq
        %v2437 = vshrl.u32 %v2436, 7
        %v2438 = vsub.s32 %v2435, %v2437
        %v2439 = vrot.slane %v2425, %v2438
        %v2440 = vcombine.low %v2416, %v2432
        %v2441 = vcombine.high %v2416, %v2432
        %v2442 = vcombine.low %v2423, %v2439
        %v2443 = vcombine.high %v2423, %v2439
        %v2444 = vpack.c.bf16 %v2440, %v2440
        %v2445 = vpack.c.bf16 %v2441, %v2441
        %v2446 = vpack.c.bf16 %v2442, %v2442
        %v2447 = vpack.c.bf16 %v2443, %v2443
        %2448 = vrot.lane.b32.xlu0 %v2139, 96
        %v2449 = vpop.permute.xlu0 %2448
        %2450 = vrot.lane.b32.xlu0 %v2300, 96
        %v2451 = vpop.permute.xlu0 %2450
        %2452 = vrot.lane.b32.xlu0 %v2303, 96
        %v2453 = vpop.permute.xlu0 %2452
        %2454 = vrot.lane.b32.xlu0 %v2306, 96
        %v2455 = vpop.permute.xlu0 %2454
        %v2460 = vcombine.low %v2449, %v2453
        %v2461 = vcombine.high %v2449, %v2453
        %v2463 = vunpack.c.l.s4 1983009808
        %v2464 = vunpack.c.0.s8 %v2463
        %v2465 = vlaneseq
        %v2466 = vshrl.u32 %v2465, 7
        %v2467 = vsub.s32 %v2464, %v2466
        %v2468 = vrot.slane %v2460, %v2467
        %v2470 = vunpack.c.l.s4 1983009808
        %v2471 = vunpack.c.0.s8 %v2470
        %v2472 = vlaneseq
        %v2473 = vshrl.u32 %v2472, 7
        %v2474 = vsub.s32 %v2471, %v2473
        %v2475 = vrot.slane %v2461, %v2474
        %v2476 = vcombine.low %v2451, %v2455
        %v2477 = vcombine.high %v2451, %v2455
        %v2479 = vunpack.c.l.s4 1983009808
        %v2480 = vunpack.c.0.s8 %v2479
        %v2481 = vlaneseq
        %v2482 = vshrl.u32 %v2481, 7
        %v2483 = vsub.s32 %v2480, %v2482
        %v2484 = vrot.slane %v2476, %v2483
        %v2486 = vunpack.c.l.s4 1983009808
        %v2487 = vunpack.c.0.s8 %v2486
        %v2488 = vlaneseq
        %v2489 = vshrl.u32 %v2488, 7
        %v2490 = vsub.s32 %v2487, %v2489
        %v2491 = vrot.slane %v2477, %v2490
        %v2492 = vcombine.low %v2468, %v2484
        %v2493 = vcombine.high %v2468, %v2484
        %v2495 = vunpack.c.l.s4 1934713408
        %v2496 = vunpack.c.0.s8 %v2495
        %v2497 = vlaneseq
        %v2498 = vshrl.u32 %v2497, 7
        %v2499 = vsub.s32 %v2496, %v2498
        %v2500 = vrot.slane %v2492, %v2499
        %v2502 = vunpack.c.l.s4 1934713408
        %v2503 = vunpack.c.0.s8 %v2502
        %v2504 = vlaneseq
        %v2505 = vshrl.u32 %v2504, 7
        %v2506 = vsub.s32 %v2503, %v2505
        %v2507 = vrot.slane %v2493, %v2506
        %v2508 = vcombine.low %v2475, %v2491
        %v2509 = vcombine.high %v2475, %v2491
        %v2511 = vunpack.c.l.s4 1934713408
        %v2512 = vunpack.c.0.s8 %v2511
        %v2513 = vlaneseq
        %v2514 = vshrl.u32 %v2513, 7
        %v2515 = vsub.s32 %v2512, %v2514
        %v2516 = vrot.slane %v2508, %v2515
        %v2518 = vunpack.c.l.s4 1934713408
        %v2519 = vunpack.c.0.s8 %v2518
        %v2520 = vlaneseq
        %v2521 = vshrl.u32 %v2520, 7
        %v2522 = vsub.s32 %v2519, %v2521
        %v2523 = vrot.slane %v2509, %v2522
        %v2524 = vcombine.high %v2500, 0.0
        %v2525 = vcombine.high %v2507, 0.0
        %v2526 = vcombine.high %v2516, 0.0
        %v2527 = vcombine.high %v2523, 0.0
        %v2528 = vcombine.low %v2500, %v2507
        %v2530 = vunpack.c.l.s4 1983009808
        %v2531 = vunpack.c.0.s8 %v2530
        %v2532 = vlaneseq
        %v2533 = vshrl.u32 %v2532, 7
        %v2534 = vsub.s32 %v2531, %v2533
        %v2535 = vrot.slane %v2528, %v2534
        %v2536 = vcombine.low %v2524, %v2525
        %v2538 = vunpack.c.l.s4 1983009808
        %v2539 = vunpack.c.0.s8 %v2538
        %v2540 = vlaneseq
        %v2541 = vshrl.u32 %v2540, 7
        %v2542 = vsub.s32 %v2539, %v2541
        %v2543 = vrot.slane %v2536, %v2542
        %v2544 = vcombine.low %v2516, %v2523
        %v2546 = vunpack.c.l.s4 1983009808
        %v2547 = vunpack.c.0.s8 %v2546
        %v2548 = vlaneseq
        %v2549 = vshrl.u32 %v2548, 7
        %v2550 = vsub.s32 %v2547, %v2549
        %v2551 = vrot.slane %v2544, %v2550
        %v2552 = vcombine.low %v2526, %v2527
        %v2554 = vunpack.c.l.s4 1983009808
        %v2555 = vunpack.c.0.s8 %v2554
        %v2556 = vlaneseq
        %v2557 = vshrl.u32 %v2556, 7
        %v2558 = vsub.s32 %v2555, %v2557
        %v2559 = vrot.slane %v2552, %v2558
        %v2560 = vcombine.low %v2535, %v2543
        %v2561 = vcombine.high %v2535, %v2543
        %v2563 = vunpack.c.l.s4 1934713408
        %v2564 = vunpack.c.0.s8 %v2563
        %v2565 = vlaneseq
        %v2566 = vshrl.u32 %v2565, 7
        %v2567 = vsub.s32 %v2564, %v2566
        %v2568 = vrot.slane %v2560, %v2567
        %v2570 = vunpack.c.l.s4 1934713408
        %v2571 = vunpack.c.0.s8 %v2570
        %v2572 = vlaneseq
        %v2573 = vshrl.u32 %v2572, 7
        %v2574 = vsub.s32 %v2571, %v2573
        %v2575 = vrot.slane %v2561, %v2574
        %v2576 = vcombine.low %v2551, %v2559
        %v2577 = vcombine.high %v2551, %v2559
        %v2579 = vunpack.c.l.s4 1934713408
        %v2580 = vunpack.c.0.s8 %v2579
        %v2581 = vlaneseq
        %v2582 = vshrl.u32 %v2581, 7
        %v2583 = vsub.s32 %v2580, %v2582
        %v2584 = vrot.slane %v2576, %v2583
        %v2586 = vunpack.c.l.s4 1934713408
        %v2587 = vunpack.c.0.s8 %v2586
        %v2588 = vlaneseq
        %v2589 = vshrl.u32 %v2588, 7
        %v2590 = vsub.s32 %v2587, %v2589
        %v2591 = vrot.slane %v2577, %v2590
        %v2592 = vcombine.low %v2568, %v2584
        %v2593 = vcombine.high %v2568, %v2584
        %v2594 = vcombine.low %v2575, %v2591
        %v2595 = vcombine.high %v2575, %v2591
        %v2596 = vpack.c.bf16 %v2592, %v2592
        %v2597 = vpack.c.bf16 %v2593, %v2593
        %v2598 = vpack.c.bf16 %v2594, %v2594
        %v2599 = vpack.c.bf16 %v2595, %v2595
        %v2601 = vsel %vm1329, %v2294, 0
        %v2604 = vsel %vm1329, %v2444, 0
        %2606 = vmatprep.subr.bf16.mxu0 0
        %2607 = vmatpush1.bf16.xpose.msra.mxu0 %v2604
        %2608 = vmatprep.subr.bf16.mxu0 0
        %2609 = vmatpush1.bf16.xpose.msra.mxu0 0
        %2610 = vmatprep.subr.bf16.mxu0 0
        %2611 = vmatpush1.bf16.xpose.msra.mxu0 0
        %2612 = vmatprep.subr.bf16.mxu0 0
        %2613 = vmatpush1.bf16.xpose.msra.mxu0 0
        %2614 = vmatprep.subr.bf16.mxu0 0
        %2615 = vmatpush1.bf16.xpose.msra.mxu0 0
        %2616 = vmatprep.subr.bf16.mxu0 0
        %2617 = vmatpush1.bf16.xpose.msra.mxu0 0
        %2618 = vmatprep.subr.bf16.mxu0 0
        %2619 = vmatpush1.bf16.xpose.msra.mxu0 0
        %2620 = vmatprep.subr.bf16.mxu0 0
        %2621 = vmatpush1.bf16.xpose.msra.mxu0 0
        %2622 = vmatprep.subr.bf16.mxu0 0
        %2623 = vmatpush1.bf16.xpose.msra.mxu0 0
        %2624 = vmatprep.subr.bf16.mxu0 0
        %2625 = vmatpush1.bf16.xpose.msra.mxu0 0
        %2626 = vmatprep.subr.bf16.mxu0 0
        %2627 = vmatpush1.bf16.xpose.msra.mxu0 0
        %2628 = vmatprep.subr.bf16.mxu0 0
        %2629 = vmatpush1.bf16.xpose.msra.mxu0 0
        %2630 = vmatprep.subr.bf16.mxu0 0
        %2631 = vmatpush1.bf16.xpose.msra.mxu0 0
        %2632 = vmatprep.subr.bf16.mxu0 0
        %2633 = vmatpush1.bf16.xpose.msra.mxu0 0
        %2634 = vmatprep.subr.bf16.mxu0 0
        %2635 = vmatpush1.bf16.xpose.msra.mxu0 0
        %2636 = vmatprep.subr.bf16.mxu0 0
        %2637 = vmatpush1.bf16.xpose.msra.mxu0 0
        %2638 = vmatprep.mubr.bf16.mxu0 0
        %2639 = vmatmul.mubr.bf16.gmra.mrb[0].mxu0 %v2601
        %v2640 = vpop.f32.mrb[0].mxu0
        %v2641 = vadd.f32 0.0, %v2640
        %v2642 = vpop.f32.mrb[0].mxu0
        %v2643 = vpop.f32.mrb[0].mxu0
        %v2644 = vpop.f32.mrb[0].mxu0
        %2645 = vdwg.mxu0
        %v2647 = vsel %vm1329, %v2295, 0
        %v2650 = vsel %vm1329, %v2445, 0
        %2652 = vmatprep.subr.bf16.mxu0 0
        %2653 = vmatpush1.bf16.xpose.msra.mxu0 %v2650
        %2654 = vmatprep.subr.bf16.mxu0 0
        %2655 = vmatpush1.bf16.xpose.msra.mxu0 0
        %2656 = vmatprep.subr.bf16.mxu0 0
        %2657 = vmatpush1.bf16.xpose.msra.mxu0 0
        %2658 = vmatprep.subr.bf16.mxu0 0
        %2659 = vmatpush1.bf16.xpose.msra.mxu0 0
        %2660 = vmatprep.subr.bf16.mxu0 0
        %2661 = vmatpush1.bf16.xpose.msra.mxu0 0
        %2662 = vmatprep.subr.bf16.mxu0 0
        %2663 = vmatpush1.bf16.xpose.msra.mxu0 0
        %2664 = vmatprep.subr.bf16.mxu0 0
        %2665 = vmatpush1.bf16.xpose.msra.mxu0 0
        %2666 = vmatprep.subr.bf16.mxu0 0
        %2667 = vmatpush1.bf16.xpose.msra.mxu0 0
        %2668 = vmatprep.subr.bf16.mxu0 0
        %2669 = vmatpush1.bf16.xpose.msra.mxu0 0
        %2670 = vmatprep.subr.bf16.mxu0 0
        %2671 = vmatpush1.bf16.xpose.msra.mxu0 0
        %2672 = vmatprep.subr.bf16.mxu0 0
        %2673 = vmatpush1.bf16.xpose.msra.mxu0 0
        %2674 = vmatprep.subr.bf16.mxu0 0
        %2675 = vmatpush1.bf16.xpose.msra.mxu0 0
        %2676 = vmatprep.subr.bf16.mxu0 0
        %2677 = vmatpush1.bf16.xpose.msra.mxu0 0
        %2678 = vmatprep.subr.bf16.mxu0 0
        %2679 = vmatpush1.bf16.xpose.msra.mxu0 0
        %2680 = vmatprep.subr.bf16.mxu0 0
        %2681 = vmatpush1.bf16.xpose.msra.mxu0 0
        %2682 = vmatprep.subr.bf16.mxu0 0
        %2683 = vmatpush1.bf16.xpose.msra.mxu0 0
        %2684 = vmatprep.mubr.bf16.mxu0 0
        %2685 = vmatmul.mubr.bf16.gmra.mrb[0].mxu0 %v2647
        %v2686 = vpop.f32.mrb[0].mxu0
        %v2687 = vadd.f32 0.0, %v2686
        %v2688 = vpop.f32.mrb[0].mxu0
        %v2689 = vpop.f32.mrb[0].mxu0
        %v2690 = vpop.f32.mrb[0].mxu0
        %2691 = vdwg.mxu0
        %v2693 = vsel %vm1329, %v2296, 0
        %v2696 = vsel %vm1329, %v2446, 0
        %2698 = vmatprep.subr.bf16.mxu0 0
        %2699 = vmatpush1.bf16.xpose.msra.mxu0 %v2696
        %2700 = vmatprep.subr.bf16.mxu0 0
        %2701 = vmatpush1.bf16.xpose.msra.mxu0 0
        %2702 = vmatprep.subr.bf16.mxu0 0
        %2703 = vmatpush1.bf16.xpose.msra.mxu0 0
        %2704 = vmatprep.subr.bf16.mxu0 0
        %2705 = vmatpush1.bf16.xpose.msra.mxu0 0
        %2706 = vmatprep.subr.bf16.mxu0 0
        %2707 = vmatpush1.bf16.xpose.msra.mxu0 0
        %2708 = vmatprep.subr.bf16.mxu0 0
        %2709 = vmatpush1.bf16.xpose.msra.mxu0 0
        %2710 = vmatprep.subr.bf16.mxu0 0
        %2711 = vmatpush1.bf16.xpose.msra.mxu0 0
        %2712 = vmatprep.subr.bf16.mxu0 0
        %2713 = vmatpush1.bf16.xpose.msra.mxu0 0
        %2714 = vmatprep.subr.bf16.mxu0 0
        %2715 = vmatpush1.bf16.xpose.msra.mxu0 0
        %2716 = vmatprep.subr.bf16.mxu0 0
        %2717 = vmatpush1.bf16.xpose.msra.mxu0 0
        %2718 = vmatprep.subr.bf16.mxu0 0
        %2719 = vmatpush1.bf16.xpose.msra.mxu0 0
        %2720 = vmatprep.subr.bf16.mxu0 0
        %2721 = vmatpush1.bf16.xpose.msra.mxu0 0
        %2722 = vmatprep.subr.bf16.mxu0 0
        %2723 = vmatpush1.bf16.xpose.msra.mxu0 0
        %2724 = vmatprep.subr.bf16.mxu0 0
        %2725 = vmatpush1.bf16.xpose.msra.mxu0 0
        %2726 = vmatprep.subr.bf16.mxu0 0
        %2727 = vmatpush1.bf16.xpose.msra.mxu0 0
        %2728 = vmatprep.subr.bf16.mxu0 0
        %2729 = vmatpush1.bf16.xpose.msra.mxu0 0
        %2730 = vmatprep.mubr.bf16.mxu0 0
        %2731 = vmatmul.mubr.bf16.gmra.mrb[0].mxu0 %v2693
        %v2732 = vpop.f32.mrb[0].mxu0
        %v2733 = vadd.f32 0.0, %v2732
        %v2734 = vpop.f32.mrb[0].mxu0
        %v2735 = vpop.f32.mrb[0].mxu0
        %v2736 = vpop.f32.mrb[0].mxu0
        %2737 = vdwg.mxu0
        %v2739 = vsel %vm1329, %v2297, 0
        %v2742 = vsel %vm1329, %v2447, 0
        %2744 = vmatprep.subr.bf16.mxu0 0
        %2745 = vmatpush1.bf16.xpose.msra.mxu0 %v2742
        %2746 = vmatprep.subr.bf16.mxu0 0
        %2747 = vmatpush1.bf16.xpose.msra.mxu0 0
        %2748 = vmatprep.subr.bf16.mxu0 0
        %2749 = vmatpush1.bf16.xpose.msra.mxu0 0
        %2750 = vmatprep.subr.bf16.mxu0 0
        %2751 = vmatpush1.bf16.xpose.msra.mxu0 0
        %2752 = vmatprep.subr.bf16.mxu0 0
        %2753 = vmatpush1.bf16.xpose.msra.mxu0 0
        %2754 = vmatprep.subr.bf16.mxu0 0
        %2755 = vmatpush1.bf16.xpose.msra.mxu0 0
        %2756 = vmatprep.subr.bf16.mxu0 0
        %2757 = vmatpush1.bf16.xpose.msra.mxu0 0
        %2758 = vmatprep.subr.bf16.mxu0 0
        %2759 = vmatpush1.bf16.xpose.msra.mxu0 0
        %2760 = vmatprep.subr.bf16.mxu0 0
        %2761 = vmatpush1.bf16.xpose.msra.mxu0 0
        %2762 = vmatprep.subr.bf16.mxu0 0
        %2763 = vmatpush1.bf16.xpose.msra.mxu0 0
        %2764 = vmatprep.subr.bf16.mxu0 0
        %2765 = vmatpush1.bf16.xpose.msra.mxu0 0
        %2766 = vmatprep.subr.bf16.mxu0 0
        %2767 = vmatpush1.bf16.xpose.msra.mxu0 0
        %2768 = vmatprep.subr.bf16.mxu0 0
        %2769 = vmatpush1.bf16.xpose.msra.mxu0 0
        %2770 = vmatprep.subr.bf16.mxu0 0
        %2771 = vmatpush1.bf16.xpose.msra.mxu0 0
        %2772 = vmatprep.subr.bf16.mxu0 0
        %2773 = vmatpush1.bf16.xpose.msra.mxu0 0
        %2774 = vmatprep.subr.bf16.mxu0 0
        %2775 = vmatpush1.bf16.xpose.msra.mxu0 0
        %2776 = vmatprep.mubr.bf16.mxu0 0
        %2777 = vmatmul.mubr.bf16.gmra.mrb[0].mxu0 %v2739
        %v2778 = vpop.f32.mrb[0].mxu0
        %v2779 = vadd.f32 0.0, %v2778
        %v2780 = vpop.f32.mrb[0].mxu0
        %v2781 = vpop.f32.mrb[0].mxu0
        %v2782 = vpop.f32.mrb[0].mxu0
        %2783 = vdwg.mxu0
        %v2784 = vmul.f32 %v2641, 0.35355338
        %v2785 = vmul.f32 %v2687, 0.35355338
        %v2786 = vmul.f32 %v2733, 0.35355338
        %v2787 = vmul.f32 %v2779, 0.35355338
        %v2788 = vsel %vm1329, %v2784, -inf
        %2789 = vmax.xlane.f32.xlu0 %v2788
        %v2790 = vpop.xlane.xlu0 %2789
        %v2791 = vsel %vm1329, %v2785, -inf
        %2792 = vmax.xlane.f32.xlu0 %v2791
        %v2793 = vpop.xlane.xlu0 %2792
        %v2794 = vsel %vm1329, %v2786, -inf
        %2795 = vmax.xlane.f32.xlu0 %v2794
        %v2796 = vpop.xlane.xlu0 %2795
        %v2797 = vsel %vm1329, %v2787, -inf
        %2798 = vmax.xlane.f32.xlu0 %v2797
        %v2799 = vpop.xlane.xlu0 %2798
        %v2800 = vsub.f32 %v2784, %v2790
        %v2801 = vsub.f32 %v2785, %v2793
        %v2802 = vsub.f32 %v2786, %v2796
        %v2803 = vsub.f32 %v2787, %v2799
        %v2804 = vmul.f32 %v2800, 1.442695
        %v2805 = vpow.pop %v2804
        %v2806 = vmul.f32 %v2801, 1.442695
        %v2807 = vpow.pop %v2806
        %v2808 = vmul.f32 %v2802, 1.442695
        %v2809 = vpow.pop %v2808
        %v2810 = vmul.f32 %v2803, 1.442695
        %v2811 = vpow.pop %v2810
        %v2812 = vsel %vm1329, %v2805, 0.0
        %2813 = vadd.xlane.f32.xlu0 %v2812
        %v2814 = vpop.xlane.xlu0 %2813
        %v2815 = vsel %vm1329, %v2807, 0.0
        %2816 = vadd.xlane.f32.xlu0 %v2815
        %v2817 = vpop.xlane.xlu0 %2816
        %v2818 = vsel %vm1329, %v2809, 0.0
        %2819 = vadd.xlane.f32.xlu0 %v2818
        %v2820 = vpop.xlane.xlu0 %2819
        %v2821 = vsel %vm1329, %v2811, 0.0
        %2822 = vadd.xlane.f32.xlu0 %v2821
        %v2823 = vpop.xlane.xlu0 %2822
        %v2824 = vrcp.pop %v2814
        %v2825 = vrcp.pop %v2817
        %v2826 = vrcp.pop %v2820
        %v2827 = vrcp.pop %v2823
        %v2828 = vmul.f32 %v2805, %v2824
        %v2829 = vmul.f32 %v2807, %v2825
        %v2830 = vmul.f32 %v2809, %v2826
        %v2831 = vmul.f32 %v2811, %v2827
        %v2832 = vpack.c.bf16 %v2828, %v2828
        %v2833 = vpack.c.bf16 %v2829, %v2829
        %v2834 = vpack.c.bf16 %v2830, %v2830
        %v2835 = vpack.c.bf16 %v2831, %v2831
        %v2837 = vsel %vm1329, %v2832, 0
        %v2840 = vsel %vm1580, %v2596, 0
        %2842 = vmatprep.subr.bf16.mxu0 0
        %2843 = vmatpush1.bf16.msra.mxu0 %v2840
        %2844 = vmatprep.subr.bf16.mxu0 0
        %2845 = vmatpush1.bf16.msra.mxu0 0
        %2846 = vmatprep.subr.bf16.mxu0 0
        %2847 = vmatpush1.bf16.msra.mxu0 0
        %2848 = vmatprep.subr.bf16.mxu0 0
        %2849 = vmatpush1.bf16.msra.mxu0 0
        %2850 = vmatprep.subr.bf16.mxu0 0
        %2851 = vmatpush1.bf16.msra.mxu0 0
        %2852 = vmatprep.subr.bf16.mxu0 0
        %2853 = vmatpush1.bf16.msra.mxu0 0
        %2854 = vmatprep.subr.bf16.mxu0 0
        %2855 = vmatpush1.bf16.msra.mxu0 0
        %2856 = vmatprep.subr.bf16.mxu0 0
        %2857 = vmatpush1.bf16.msra.mxu0 0
        %2858 = vmatprep.subr.bf16.mxu0 0
        %2859 = vmatpush1.bf16.msra.mxu0 0
        %2860 = vmatprep.subr.bf16.mxu0 0
        %2861 = vmatpush1.bf16.msra.mxu0 0
        %2862 = vmatprep.subr.bf16.mxu0 0
        %2863 = vmatpush1.bf16.msra.mxu0 0
        %2864 = vmatprep.subr.bf16.mxu0 0
        %2865 = vmatpush1.bf16.msra.mxu0 0
        %2866 = vmatprep.subr.bf16.mxu0 0
        %2867 = vmatpush1.bf16.msra.mxu0 0
        %2868 = vmatprep.subr.bf16.mxu0 0
        %2869 = vmatpush1.bf16.msra.mxu0 0
        %2870 = vmatprep.subr.bf16.mxu0 0
        %2871 = vmatpush1.bf16.msra.mxu0 0
        %2872 = vmatprep.subr.bf16.mxu0 0
        %2873 = vmatpush1.bf16.msra.mxu0 0
        %2874 = vmatprep.mubr.bf16.mxu0 0
        %2875 = vmatmul.mubr.bf16.gmra.mrb[0].mxu0 %v2837
        %v2876 = vpop.f32.mrb[0].mxu0
        %v2877 = vadd.f32 0.0, %v2876
        %v2878 = vpop.f32.mrb[0].mxu0
        %v2879 = vpop.f32.mrb[0].mxu0
        %v2880 = vpop.f32.mrb[0].mxu0
        %2881 = vdwg.mxu0
        %v2883 = vsel %vm1329, %v2833, 0
        %v2886 = vsel %vm1580, %v2597, 0
        %2888 = vmatprep.subr.bf16.mxu0 0
        %2889 = vmatpush1.bf16.msra.mxu0 %v2886
        %2890 = vmatprep.subr.bf16.mxu0 0
        %2891 = vmatpush1.bf16.msra.mxu0 0
        %2892 = vmatprep.subr.bf16.mxu0 0
        %2893 = vmatpush1.bf16.msra.mxu0 0
        %2894 = vmatprep.subr.bf16.mxu0 0
        %2895 = vmatpush1.bf16.msra.mxu0 0
        %2896 = vmatprep.subr.bf16.mxu0 0
        %2897 = vmatpush1.bf16.msra.mxu0 0
        %2898 = vmatprep.subr.bf16.mxu0 0
        %2899 = vmatpush1.bf16.msra.mxu0 0
        %2900 = vmatprep.subr.bf16.mxu0 0
        %2901 = vmatpush1.bf16.msra.mxu0 0
        %2902 = vmatprep.subr.bf16.mxu0 0
        %2903 = vmatpush1.bf16.msra.mxu0 0
        %2904 = vmatprep.subr.bf16.mxu0 0
        %2905 = vmatpush1.bf16.msra.mxu0 0
        %2906 = vmatprep.subr.bf16.mxu0 0
        %2907 = vmatpush1.bf16.msra.mxu0 0
        %2908 = vmatprep.subr.bf16.mxu0 0
        %2909 = vmatpush1.bf16.msra.mxu0 0
        %2910 = vmatprep.subr.bf16.mxu0 0
        %2911 = vmatpush1.bf16.msra.mxu0 0
        %2912 = vmatprep.subr.bf16.mxu0 0
        %2913 = vmatpush1.bf16.msra.mxu0 0
        %2914 = vmatprep.subr.bf16.mxu0 0
        %2915 = vmatpush1.bf16.msra.mxu0 0
        %2916 = vmatprep.subr.bf16.mxu0 0
        %2917 = vmatpush1.bf16.msra.mxu0 0
        %2918 = vmatprep.subr.bf16.mxu0 0
        %2919 = vmatpush1.bf16.msra.mxu0 0
        %2920 = vmatprep.mubr.bf16.mxu0 0
        %2921 = vmatmul.mubr.bf16.gmra.mrb[0].mxu0 %v2883
        %v2922 = vpop.f32.mrb[0].mxu0
        %v2923 = vadd.f32 0.0, %v2922
        %v2924 = vpop.f32.mrb[0].mxu0
        %v2925 = vpop.f32.mrb[0].mxu0
        %v2926 = vpop.f32.mrb[0].mxu0
        %2927 = vdwg.mxu0
        %v2929 = vsel %vm1329, %v2834, 0
        %v2932 = vsel %vm1580, %v2598, 0
        %2934 = vmatprep.subr.bf16.mxu0 0
        %2935 = vmatpush1.bf16.msra.mxu0 %v2932
        %2936 = vmatprep.subr.bf16.mxu0 0
        %2937 = vmatpush1.bf16.msra.mxu0 0
        %2938 = vmatprep.subr.bf16.mxu0 0
        %2939 = vmatpush1.bf16.msra.mxu0 0
        %2940 = vmatprep.subr.bf16.mxu0 0
        %2941 = vmatpush1.bf16.msra.mxu0 0
        %2942 = vmatprep.subr.bf16.mxu0 0
        %2943 = vmatpush1.bf16.msra.mxu0 0
        %2944 = vmatprep.subr.bf16.mxu0 0
        %2945 = vmatpush1.bf16.msra.mxu0 0
        %2946 = vmatprep.subr.bf16.mxu0 0
        %2947 = vmatpush1.bf16.msra.mxu0 0
        %2948 = vmatprep.subr.bf16.mxu0 0
        %2949 = vmatpush1.bf16.msra.mxu0 0
        %2950 = vmatprep.subr.bf16.mxu0 0
        %2951 = vmatpush1.bf16.msra.mxu0 0
        %2952 = vmatprep.subr.bf16.mxu0 0
        %2953 = vmatpush1.bf16.msra.mxu0 0
        %2954 = vmatprep.subr.bf16.mxu0 0
        %2955 = vmatpush1.bf16.msra.mxu0 0
        %2956 = vmatprep.subr.bf16.mxu0 0
        %2957 = vmatpush1.bf16.msra.mxu0 0
        %2958 = vmatprep.subr.bf16.mxu0 0
        %2959 = vmatpush1.bf16.msra.mxu0 0
        %2960 = vmatprep.subr.bf16.mxu0 0
        %2961 = vmatpush1.bf16.msra.mxu0 0
        %2962 = vmatprep.subr.bf16.mxu0 0
        %2963 = vmatpush1.bf16.msra.mxu0 0
        %2964 = vmatprep.subr.bf16.mxu0 0
        %2965 = vmatpush1.bf16.msra.mxu0 0
        %2966 = vmatprep.mubr.bf16.mxu0 0
        %2967 = vmatmul.mubr.bf16.gmra.mrb[0].mxu0 %v2929
        %v2968 = vpop.f32.mrb[0].mxu0
        %v2969 = vadd.f32 0.0, %v2968
        %v2970 = vpop.f32.mrb[0].mxu0
        %v2971 = vpop.f32.mrb[0].mxu0
        %v2972 = vpop.f32.mrb[0].mxu0
        %2973 = vdwg.mxu0
        %v2975 = vsel %vm1329, %v2835, 0
        %v2978 = vsel %vm1580, %v2599, 0
        %2980 = vmatprep.subr.bf16.mxu0 0
        %2981 = vmatpush1.bf16.msra.mxu0 %v2978
        %2982 = vmatprep.subr.bf16.mxu0 0
        %2983 = vmatpush1.bf16.msra.mxu0 0
        %2984 = vmatprep.subr.bf16.mxu0 0
        %2985 = vmatpush1.bf16.msra.mxu0 0
        %2986 = vmatprep.subr.bf16.mxu0 0
        %2987 = vmatpush1.bf16.msra.mxu0 0
        %2988 = vmatprep.subr.bf16.mxu0 0
        %2989 = vmatpush1.bf16.msra.mxu0 0
        %2990 = vmatprep.subr.bf16.mxu0 0
        %2991 = vmatpush1.bf16.msra.mxu0 0
        %2992 = vmatprep.subr.bf16.mxu0 0
        %2993 = vmatpush1.bf16.msra.mxu0 0
        %2994 = vmatprep.subr.bf16.mxu0 0
        %2995 = vmatpush1.bf16.msra.mxu0 0
        %2996 = vmatprep.subr.bf16.mxu0 0
        %2997 = vmatpush1.bf16.msra.mxu0 0
        %2998 = vmatprep.subr.bf16.mxu0 0
        %2999 = vmatpush1.bf16.msra.mxu0 0
        %3000 = vmatprep.subr.bf16.mxu0 0
        %3001 = vmatpush1.bf16.msra.mxu0 0
        %3002 = vmatprep.subr.bf16.mxu0 0
        %3003 = vmatpush1.bf16.msra.mxu0 0
        %3004 = vmatprep.subr.bf16.mxu0 0
        %3005 = vmatpush1.bf16.msra.mxu0 0
        %3006 = vmatprep.subr.bf16.mxu0 0
        %3007 = vmatpush1.bf16.msra.mxu0 0
        %3008 = vmatprep.subr.bf16.mxu0 0
        %3009 = vmatpush1.bf16.msra.mxu0 0
        %3010 = vmatprep.subr.bf16.mxu0 0
        %3011 = vmatpush1.bf16.msra.mxu0 0
        %3012 = vmatprep.mubr.bf16.mxu0 0
        %3013 = vmatmul.mubr.bf16.gmra.mrb[0].mxu0 %v2975
        %v3014 = vpop.f32.mrb[0].mxu0
        %v3015 = vadd.f32 0.0, %v3014
        %v3016 = vpop.f32.mrb[0].mxu0
        %v3017 = vpop.f32.mrb[0].mxu0
        %v3018 = vpop.f32.mrb[0].mxu0
        %3019 = vdwg.mxu0
        %v3020 = vcombine.low %v2877, %v2969
        %v3021 = vcombine.high %v2877, %v2969
        %v3023 = vunpack.c.l.s4 1983009808
        %v3024 = vunpack.c.0.s8 %v3023
        %v3025 = vlaneseq
        %v3026 = vshrl.u32 %v3025, 7
        %v3027 = vsub.s32 %v3024, %v3026
        %v3028 = vrot.slane %v3020, %v3027
        %v3030 = vunpack.c.l.s4 1983009808
        %v3031 = vunpack.c.0.s8 %v3030
        %v3032 = vlaneseq
        %v3033 = vshrl.u32 %v3032, 7
        %v3034 = vsub.s32 %v3031, %v3033
        %v3035 = vrot.slane %v3021, %v3034
        %v3036 = vcombine.low %v2923, %v3015
        %v3037 = vcombine.high %v2923, %v3015
        %v3039 = vunpack.c.l.s4 1983009808
        %v3040 = vunpack.c.0.s8 %v3039
        %v3041 = vlaneseq
        %v3042 = vshrl.u32 %v3041, 7
        %v3043 = vsub.s32 %v3040, %v3042
        %v3044 = vrot.slane %v3036, %v3043
        %v3046 = vunpack.c.l.s4 1983009808
        %v3047 = vunpack.c.0.s8 %v3046
        %v3048 = vlaneseq
        %v3049 = vshrl.u32 %v3048, 7
        %v3050 = vsub.s32 %v3047, %v3049
        %v3051 = vrot.slane %v3037, %v3050
        %v3052 = vcombine.low %v3028, %v3044
        %v3053 = vcombine.high %v3028, %v3044
        %v3055 = vunpack.c.l.s4 1934713408
        %v3056 = vunpack.c.0.s8 %v3055
        %v3057 = vlaneseq
        %v3058 = vshrl.u32 %v3057, 7
        %v3059 = vsub.s32 %v3056, %v3058
        %v3060 = vrot.slane %v3052, %v3059
        %v3062 = vunpack.c.l.s4 1934713408
        %v3063 = vunpack.c.0.s8 %v3062
        %v3064 = vlaneseq
        %v3065 = vshrl.u32 %v3064, 7
        %v3066 = vsub.s32 %v3063, %v3065
        %v3067 = vrot.slane %v3053, %v3066
        %v3068 = vcombine.low %v3035, %v3051
        %v3069 = vcombine.high %v3035, %v3051
        %v3071 = vunpack.c.l.s4 1934713408
        %v3072 = vunpack.c.0.s8 %v3071
        %v3073 = vlaneseq
        %v3074 = vshrl.u32 %v3073, 7
        %v3075 = vsub.s32 %v3072, %v3074
        %v3076 = vrot.slane %v3068, %v3075
        %v3078 = vunpack.c.l.s4 1934713408
        %v3079 = vunpack.c.0.s8 %v3078
        %v3080 = vlaneseq
        %v3081 = vshrl.u32 %v3080, 7
        %v3082 = vsub.s32 %v3079, %v3081
        %v3083 = vrot.slane %v3069, %v3082
        %v3084 = vcombine.high %v3060, 0.0
        %v3085 = vcombine.high %v3067, 0.0
        %v3086 = vcombine.high %v3076, 0.0
        %v3087 = vcombine.high %v3083, 0.0
        %v3088 = vcombine.low %v3060, %v3067
        %v3090 = vunpack.c.l.s4 1983009808
        %v3091 = vunpack.c.0.s8 %v3090
        %v3092 = vlaneseq
        %v3093 = vshrl.u32 %v3092, 7
        %v3094 = vsub.s32 %v3091, %v3093
        %v3095 = vrot.slane %v3088, %v3094
        %v3096 = vcombine.low %v3084, %v3085
        %v3098 = vunpack.c.l.s4 1983009808
        %v3099 = vunpack.c.0.s8 %v3098
        %v3100 = vlaneseq
        %v3101 = vshrl.u32 %v3100, 7
        %v3102 = vsub.s32 %v3099, %v3101
        %v3103 = vrot.slane %v3096, %v3102
        %v3104 = vcombine.low %v3076, %v3083
        %v3106 = vunpack.c.l.s4 1983009808
        %v3107 = vunpack.c.0.s8 %v3106
        %v3108 = vlaneseq
        %v3109 = vshrl.u32 %v3108, 7
        %v3110 = vsub.s32 %v3107, %v3109
        %v3111 = vrot.slane %v3104, %v3110
        %v3112 = vcombine.low %v3086, %v3087
        %v3114 = vunpack.c.l.s4 1983009808
        %v3115 = vunpack.c.0.s8 %v3114
        %v3116 = vlaneseq
        %v3117 = vshrl.u32 %v3116, 7
        %v3118 = vsub.s32 %v3115, %v3117
        %v3119 = vrot.slane %v3112, %v3118
        %v3120 = vcombine.low %v3095, %v3103
        %v3121 = vcombine.high %v3095, %v3103
        %v3123 = vunpack.c.l.s4 1934713408
        %v3124 = vunpack.c.0.s8 %v3123
        %v3125 = vlaneseq
        %v3126 = vshrl.u32 %v3125, 7
        %v3127 = vsub.s32 %v3124, %v3126
        %v3128 = vrot.slane %v3120, %v3127
        %v3130 = vunpack.c.l.s4 1934713408
        %v3131 = vunpack.c.0.s8 %v3130
        %v3132 = vlaneseq
        %v3133 = vshrl.u32 %v3132, 7
        %v3134 = vsub.s32 %v3131, %v3133
        %v3135 = vrot.slane %v3121, %v3134
        %v3136 = vcombine.low %v3111, %v3119
        %v3137 = vcombine.high %v3111, %v3119
        %v3139 = vunpack.c.l.s4 1934713408
        %v3140 = vunpack.c.0.s8 %v3139
        %v3141 = vlaneseq
        %v3142 = vshrl.u32 %v3141, 7
        %v3143 = vsub.s32 %v3140, %v3142
        %v3144 = vrot.slane %v3136, %v3143
        %v3146 = vunpack.c.l.s4 1934713408
        %v3147 = vunpack.c.0.s8 %v3146
        %v3148 = vlaneseq
        %v3149 = vshrl.u32 %v3148, 7
        %v3150 = vsub.s32 %v3147, %v3149
        %v3151 = vrot.slane %v3137, %v3150
        %v3152 = vcombine.low %v3128, %v3144
        %v3153 = vcombine.high %v3128, %v3144
        %v3154 = vcombine.low %v3135, %v3151
        %v3155 = vcombine.high %v3135, %v3151
        %3157 = vrot.lane.b32.xlu0 %v3153, 8
        %v3158 = vpop.permute.xlu0 %3157
        %3161 = vrot.lane.b32.xlu0 %v3154, 16
        %v3162 = vpop.permute.xlu0 %3161
        %3165 = vrot.lane.b32.xlu0 %v3155, 24
        %v3166 = vpop.permute.xlu0 %3165
        %v3168 = vsel %vm1329, %v3152, %v3158
        %v3169 = vsel %vm1911, %v3168, %v3162
        %v3170 = vsel %vm1913, %v3169, %v3166
        %v3171 = vpack.c.bf16 %v3170, %v3170
        %v3176 = vunpack.c.l.b16 %v2144
        %v3177 = vunpack.c.l.b16 %v2145
        %v3178 = vunpack.c.l.b16 %v2146
        %v3179 = vunpack.c.l.b16 %v2147
        %v3180 = vpack.c.b16 %v3177, %v3176
        %v3181 = vpack.c.b16 %v3179, %v3178
        %v3185 = vsel %vm827, %v3171, 0
        %3187 = vmatprep.subr.bf16.mxu0 0
        %3188 = vmatpush1.bf16.msra.mxu0 %v3180
        %3189 = vmatprep.subr.bf16.mxu0 0
        %3190 = vmatpush1.bf16.msra.mxu0 %v3181
        %3191 = vmatprep.subr.bf16.mxu0 0
        %3192 = vmatpush1.bf16.msra.mxu0 0
        %3193 = vmatprep.subr.bf16.mxu0 0
        %3194 = vmatpush1.bf16.msra.mxu0 0
        %3195 = vmatprep.subr.bf16.mxu0 0
        %3196 = vmatpush1.bf16.msra.mxu0 0
        %3197 = vmatprep.subr.bf16.mxu0 0
        %3198 = vmatpush1.bf16.msra.mxu0 0
        %3199 = vmatprep.subr.bf16.mxu0 0
        %3200 = vmatpush1.bf16.msra.mxu0 0
        %3201 = vmatprep.subr.bf16.mxu0 0
        %3202 = vmatpush1.bf16.msra.mxu0 0
        %3203 = vmatprep.subr.bf16.mxu0 0
        %3204 = vmatpush1.bf16.msra.mxu0 0
        %3205 = vmatprep.subr.bf16.mxu0 0
        %3206 = vmatpush1.bf16.msra.mxu0 0
        %3207 = vmatprep.subr.bf16.mxu0 0
        %3208 = vmatpush1.bf16.msra.mxu0 0
        %3209 = vmatprep.subr.bf16.mxu0 0
        %3210 = vmatpush1.bf16.msra.mxu0 0
        %3211 = vmatprep.subr.bf16.mxu0 0
        %3212 = vmatpush1.bf16.msra.mxu0 0
        %3213 = vmatprep.subr.bf16.mxu0 0
        %3214 = vmatpush1.bf16.msra.mxu0 0
        %3215 = vmatprep.subr.bf16.mxu0 0
        %3216 = vmatpush1.bf16.msra.mxu0 0
        %3217 = vmatprep.subr.bf16.mxu0 0
        %3218 = vmatpush1.bf16.msra.mxu0 0
        %3219 = vmatprep.mubr.bf16.mxu0 0
        %3220 = vmatmul.mubr.bf16.gmra.mrb[0].mxu0 %v3185
        %v3221 = vpop.f32.mrb[0].mxu0
        %v3222 = vadd.f32 0.0, %v3221
        %v3223 = vpop.f32.mrb[0].mxu0
        %v3224 = vpop.f32.mrb[0].mxu0
        %v3225 = vpop.f32.mrb[0].mxu0
        %3226 = vdwg.mxu0
        %v3227 = vadd.f32 %v2009, %v3222
        %v3228 = vld [vmem:[#allocation19] sm:$0x1]
        %v3230 = vlaneseq
        %v3231 = vshrl.u32 %v3230, 7
        %v3232 = vsub.s32 0, %v3231
        %v3233 = vrot.slane %v3228, %v3232
        %v3235 = vadd.f32 %v3227, %v3233
        %v3236 = vld [vmem:[%s14] sm:$0x1]
        %v3237 = vld [vmem:[%s15] sm:$0x1]
        %v3238 = vsel %vm827, %v3235, 0.0
        %3239 = vadd.xlane.f32.xlu0 %v3238
        %v3240 = vpop.xlane.xlu0 %3239
        %v3241 = vmul.f32 %v3240, %v1985
        %v3242 = vsub.f32 %v3235, %v3241
        %v3243 = vmul.f32 %v3242, %v3242
        %v3244 = vsel %vm827, %v3243, 0.0
        %3245 = vadd.xlane.f32.xlu0 %v3244
        %v3246 = vpop.xlane.xlu0 %3245
        %v3247 = vmul.f32 %v3246, %v1985
        %v3248 = vadd.f32 %v3247, 1e-05
        %v3249 = vrsqrt.pop %v3248
        %v3250 = vmul.f32 %v3242, %v3249
        %v3252 = vlaneseq
        %v3253 = vshrl.u32 %v3252, 7
        %v3254 = vsub.s32 0, %v3253
        %v3255 = vrot.slane %v3236, %v3254
        %v3257 = vmul.f32 %v3250, %v3255
        %v3259 = vlaneseq
        %v3260 = vshrl.u32 %v3259, 7
        %v3261 = vsub.s32 0, %v3260
        %v3262 = vrot.slane %v3237, %v3261
        %v3264 = vadd.f32 %v3257, %v3262
        %v3265 = vpack.c.bf16 %v3264, %v3264
        %v3266 = vld [vmem:[%s16] sm:$0xf]
        %v3267 = vld [vmem:[%s16 + $0x4] sm:$0xf]
        %v3268 = vld [vmem:[%s16 + $0x8] sm:$0xf]
        %v3269 = vld [vmem:[%s16 + $0xc] sm:$0xf]
        %v3274 = vunpack.c.l.b16 %v3266
        %v3275 = vunpack.c.l.b16 %v3267
        %v3276 = vunpack.c.l.b16 %v3268
        %v3277 = vunpack.c.l.b16 %v3269
        %v3278 = vpack.c.b16 %v3275, %v3274
        %v3279 = vpack.c.b16 %v3277, %v3276
        %v3283 = vsel %vm827, %v3265, 0
        %3285 = vmatprep.subr.bf16.mxu0 0
        %3286 = vmatpush1.bf16.msra.mxu0 %v3278
        %3287 = vmatprep.subr.bf16.mxu0 0
        %3288 = vmatpush1.bf16.msra.mxu0 %v3279
        %3289 = vmatprep.subr.bf16.mxu0 0
        %3290 = vmatpush1.bf16.msra.mxu0 0
        %3291 = vmatprep.subr.bf16.mxu0 0
        %3292 = vmatpush1.bf16.msra.mxu0 0
        %3293 = vmatprep.subr.bf16.mxu0 0
        %3294 = vmatpush1.bf16.msra.mxu0 0
        %3295 = vmatprep.subr.bf16.mxu0 0
        %3296 = vmatpush1.bf16.msra.mxu0 0
        %3297 = vmatprep.subr.bf16.mxu0 0
        %3298 = vmatpush1.bf16.msra.mxu0 0
        %3299 = vmatprep.subr.bf16.mxu0 0
        %3300 = vmatpush1.bf16.msra.mxu0 0
        %3301 = vmatprep.subr.bf16.mxu0 0
        %3302 = vmatpush1.bf16.msra.mxu0 0
        %3303 = vmatprep.subr.bf16.mxu0 0
        %3304 = vmatpush1.bf16.msra.mxu0 0
        %3305 = vmatprep.subr.bf16.mxu0 0
        %3306 = vmatpush1.bf16.msra.mxu0 0
        %3307 = vmatprep.subr.bf16.mxu0 0
        %3308 = vmatpush1.bf16.msra.mxu0 0
        %3309 = vmatprep.subr.bf16.mxu0 0
        %3310 = vmatpush1.bf16.msra.mxu0 0
        %3311 = vmatprep.subr.bf16.mxu0 0
        %3312 = vmatpush1.bf16.msra.mxu0 0
        %3313 = vmatprep.subr.bf16.mxu0 0
        %3314 = vmatpush1.bf16.msra.mxu0 0
        %3315 = vmatprep.subr.bf16.mxu0 0
        %3316 = vmatpush1.bf16.msra.mxu0 0
        %3317 = vmatprep.mubr.bf16.mxu0 0
        %3318 = vmatmul.mubr.bf16.gmra.mrb[0].mxu0 %v3283
        %v3319 = vpop.f32.mrb[0].mxu0
        %v3320 = vadd.f32 0.0, %v3319
        %v3321 = vpop.f32.mrb[0].mxu0
        %v3322 = vpop.f32.mrb[0].mxu0
        %v3323 = vpop.f32.mrb[0].mxu0
        %3324 = vdwg.mxu0
        %v3325 = vadd.f32 %v3264, %v3320
        %v3326 = vld [vmem:[%s17] sm:$0x1]
        %v3328 = vlaneseq
        %v3329 = vshrl.u32 %v3328, 7
        %v3330 = vsub.s32 0, %v3329
        %v3331 = vrot.slane %v3326, %v3330
        %v3333 = vadd.f32 %v3325, %v3331
        %v3334 = vld [vmem:[%s18] sm:$0x1]
        %v3335 = vld [vmem:[%s19] sm:$0x1]
        %v3336 = vsel %vm827, %v3333, 0.0
        %3337 = vadd.xlane.f32.xlu0 %v3336
        %v3338 = vpop.xlane.xlu0 %3337
        %v3339 = vmul.f32 %v3338, %v1985
        %v3340 = vsub.f32 %v3333, %v3339
        %v3341 = vmul.f32 %v3340, %v3340
        %v3342 = vsel %vm827, %v3341, 0.0
        %3343 = vadd.xlane.f32.xlu0 %v3342
        %v3344 = vpop.xlane.xlu0 %3343
        %v3345 = vmul.f32 %v3344, %v1985
        %v3346 = vadd.f32 %v3345, 1e-05
        %v3347 = vrsqrt.pop %v3346
        %v3348 = vmul.f32 %v3340, %v3347
        %v3350 = vlaneseq
        %v3351 = vshrl.u32 %v3350, 7
        %v3352 = vsub.s32 0, %v3351
        %v3353 = vrot.slane %v3334, %v3352
        %v3355 = vmul.f32 %v3348, %v3353
        %v3357 = vlaneseq
        %v3358 = vshrl.u32 %v3357, 7
        %v3359 = vsub.s32 0, %v3358
        %v3360 = vrot.slane %v3335, %v3359
        %v3362 = vadd.f32 %v3355, %v3360
        %3363 = vst.msk [vmem:[%s799] sm:$0xff] %vm827, %v3362
        %s3364 = sand.u32 %s482, 1
        %s3365 = scalar_lea.sflag [#allocation4], %s3364
        %s3366 = sand.u32 %s482, 1
        %s3367 = smul.addr %s3366, 8
        %s3368 = scalar_lea.vmem [#allocation20], %s3367
        // Predicated region
        $region145: #{tpu_custom_call.1} parent=99 // pred_check
          %p3369 = pneg %p492
        $region146: #{tpu_custom_call.1} parent=99 // pred_check_branch
          %3371 = sbr.rel (%p3369) target = $region148
        $region147: #{tpu_custom_call.1} parent=99 // pred_region
          %s3373 = ssub.s32 128, 128
          %3374 = vsyncadd %s3365, %s3373
          %s3375 = smul.addr %s44, 128
          %s3376 = scalar_lea.hbm %s20, %s3375
          %s3378 = sshll.u32 %s3368, 4
          %s3379 = int_to_ptr.vmem [resolvable:$true] %s3378
          %3381 = dma.vmem_to_hbm [thread:$0]  %s3379, 128, %s3376, %s3365
        $region148: #{tpu_custom_call.1} parent=99 // pred_fallthru
          _
      $region100: #{tpu_custom_call.1} parent=5 // pred_fallthru
        _
      %p3382 = scmp.le.s32.totalorder 2, %s39
      // Predicated region
      $region149: #{tpu_custom_call.1} parent=5 // pred_check
        %p3383 = pneg %p3382
      $region150: #{tpu_custom_call.1} parent=5 // pred_check_branch
        %3385 = sbr.rel (%p3383) target = $region152
      $region151: #{tpu_custom_call.1} parent=5 // pred_region
        %s3386 = ssub.s32 %s39, 2
        // Predicated region
        $region153: #{tpu_custom_call.1} parent=151 // pred_check
          %p3387 = pneg %p498
        $region154: #{tpu_custom_call.1} parent=151 // pred_check_branch
          %3389 = sbr.rel (%p3387) target = $region156
        $region155: #{tpu_custom_call.1} parent=151 // pred_region
          %s3390 = sand.u32 %s483, 1
          %s3391 = scalar_lea.sflag [#allocation4], %s3390
          %s3392 = sand.u32 %s483, 1
          %s3393 = smul.addr %s3392, 8
          %s3394 = scalar_lea.vmem [#allocation20], %s3393
          %3395 = dma.done %s3391, 128
        $region156: #{tpu_custom_call.1} parent=151 // pred_fallthru
          _
      $region152: #{tpu_custom_call.1} parent=5 // pred_fallthru
        _
    $region6: #{tpu_custom_call.1} parent=1 // loop_footer
      %s43 = sadd.s32 1, %s39
    $region7: #{tpu_custom_call.1} parent=1 // loop_footer_branch
      %38 = sbr.rel target = $region3
    $region8: #{tpu_custom_call.1} parent=1 // loop_exit
      _
    %3396 = vsyncpa [#allocation3], 1
    %s3397 = scalar_lea.sflag [#allocation3], 1
    %3398 = vsyncpa %s3397, 1
    %3399 = vsyncpa [#allocation6], 1
    %s3400 = scalar_lea.sflag [#allocation6], 1
    %3401 = vsyncpa %s3400, 1
    %3402 = vsyncpa [#allocation9], 1
    %3403 = vsyncpa [#allocation12], 1
    %3404 = vsyncpa [#allocation15], 1
    %3405 = vsyncpa [#allocation18], 1
    %3406 = vsyncpa [#allocation4], 1
    %s3407 = scalar_lea.sflag [#allocation4], 1
    %3408 = vsyncpa %s3407, 1

</llo_original>
